<compile_context>
chip_gen: v7x
topology: tpu7x:2x2x1
jax: 0.10.0
libtpu: 0.0.40
codegen_flags: <defaults>
</compile_context>

<pallas_src>
import math

import jax
import jax.numpy as jnp
from jax.experimental import pallas as pl
from jax.experimental.pallas import tpu as pltpu


def _round_up(x, m):
    return ((x + m - 1) // m) * m


# ---------------------------------------------------------------------------
# FFT_for_Period (plain JAX glue).
# TODO(synk): periods must be static Python ints (mirrors torch's
# .detach().cpu().numpy()), so this uses jax.device_get and the full forward is
# not end-to-end jittable; the Pallas kernels themselves are jitted by
# pallas_call.
# ---------------------------------------------------------------------------
def fft_for_period(x, k):
    xf = jnp.fft.rfft(x, axis=1)                  # (B, T//2+1, N) complex
    amp = jnp.abs(xf)                             # (B, T//2+1, N)
    freq = amp.mean(axis=0).mean(axis=-1)         # (T//2+1,)
    freq = freq.at[0].set(0.0)
    _, top_idx = jax.lax.top_k(freq, k)
    top_idx_np = jax.device_get(top_idx)
    periods = [int(x.shape[1]) // int(i) for i in top_idx_np]
    period_weight = amp.mean(axis=-1)[:, top_idx]  # (B, k)
    return periods, period_weight


# ---------------------------------------------------------------------------
# GELU. TODO(synk): tanh approximation (EUP slot) instead of nn.GELU()'s exact
# erf; |error| ~1e-3, accepted by the perf review.
# ---------------------------------------------------------------------------
def _gelu(x):
    c = 0.7978845608028654  # sqrt(2/pi)
    return 0.5 * x * (1.0 + jnp.tanh(c * (x + 0.044715 * x * x * x)))


# ---------------------------------------------------------------------------
# Fused Inception_Block_V1 -> GELU -> Inception_Block_V1 Pallas kernel.
#
# Layout: each batch element is a row-major flattened, zero-padded spatial grid
# (Hp*Wp rows on sublanes) x channels (lanes); Wp and the left pad lp are
# multiples of 8 so row (du) offsets and the h1 / halo stores are all
# sublane-aligned.  Per block, a dv-stacked copy of the operand is built in
# VMEM (only D sublane-shifted reads), then the conv is D bf16 MXU matmuls over
# aligned slices with K = D*Cin, accumulated in f32.
# ---------------------------------------------------------------------------
def _make_conv_pair_kernel(D, pmax, Wp, lp, LH, start, scale_mid):
    RR = LH + (D - 1) * Wp      # rows of the dv-stacked operand that are read

    def _dv_stack(dst_ref, src_ref):
        # dst[lp + t, dv*C:(dv+1)*C] = src[lp + (dv - pmax) + t]
        # -> one aligned full-width store; the D source slices carry the only
        #    sublane shifts on this path (was D*D shifted tap slices).
        dst_ref[lp:lp + RR, :] = jnp.concatenate(
            [src_ref[lp + dv - pmax:lp + dv - pmax + RR, :] for dv in range(D)],
            axis=-1)

    def _conv(stacked_ref, w_ref):
        # D MXU matmuls over aligned, lane-contiguous slices (K = D*Cin each).
        acc = jnp.dot(stacked_ref[lp:lp + LH, :], w_ref[0],
                      preferred_element_type=jnp.float32)
        for du in range(1, D):
            o = du * Wp + lp            # multiple of 8 -> aligned, dense loads
            acc = acc + jnp.dot(stacked_ref[o:o + LH, :], w_ref[du],
                                preferred_element_type=jnp.float32)
        return acc

    def kernel(pw_ref, x_ref, w1_ref, b1_ref, w2_ref, b2_ref, mask_ref,
               o_ref, xs_ref, mid_ref, mids_ref):
        cmid = mid_ref.shape[-1]
        n_rows = mid_ref.shape[0]
        pw = pw_ref[pl.program_id(0)]

        # ---- Inception block 1 ----
        _dv_stack(xs_ref, x_ref)
        acc1 = _conv(xs_ref, w1_ref) + b1_ref[...]
        # GELU in f32; mask zeroes the intra-row padding columns.  The
        # softmax(period_weight) scale is folded into the smaller tensor.
        if scale_mid:
            h1 = _gelu(acc1) * (mask_ref[...] * pw)
        else:
            h1 = _gelu(acc1) * mask_ref[...]

        # Re-embed into the zero-padded grid (bf16, aligned stores).  Halo rows
        # are re-zeroed every step so core-parallel execution on multi-TC parts
        # stays correct (interior is fully overwritten each step).
        nbot = n_rows - start - LH
        if start > 0:
            mid_ref[:start, :] = jnp.zeros((start, cmid), jnp.bfloat16)
        if nbot > 0:
            mid_ref[start + LH:, :] = jnp.zeros((nbot, cmid), jnp.bfloat16)
        mid_ref[start:start + LH, :] = h1.astype(jnp.bfloat16)

        # ---- Inception block 2 (cmid is a 128-multiple -> lane-dense) ----
        _dv_stack(mids_ref, mid_ref)
        acc2 = _conv(mids_ref, w2_ref)

        # Fused epilogue; output rows = H*Wp and cout padded to 128 -> dense vst.
        if scale_mid:
            o_ref[...] = acc2 + b2_ref[...] * pw
        else:
            o_ref[...] = (acc2 + b2_ref[...]) * pw

    return kernel


def inception_pair_pallas(xflat, pw_k, w1, b1, w2, b2, mask, *,
                          D, pmax, Wp, lp, start, LH):
    B, HpWp, cin = xflat.shape
    cmid = w1.shape[-1]
    cout_p = w2.shape[-1]
    kernel = _make_conv_pair_kernel(D, pmax, Wp, lp, LH, start,
                                    scale_mid=(cmid <= cout_p))
    # NOTE: weight/bias/mask blocks have a constant index_map, so Pallas fetches
    # them once (no re-DMA across steps).
    # TODO(synk): for production shapes, tile the H rows (halo'd row tiles) as a
    # second parallel grid axis (keeps the working set inside v7x's 64 MiB VMEM
    # and feeds both TCs when B is small) and single-buffer the invariant
    # weight operands (pipeline_mode=pl.Buffered(1)).
    # TODO(synk): on v6e/v7x pad cmid/cout to 256 multiples once d_ff/d_model
    # >= 128 to fill the 256x256 MXU (128 is already optimal on v5e).
    return pl.pallas_call(
        kernel,
        out_shape=jax.ShapeDtypeStruct((B, LH, cout_p), jnp.float32),
        grid_spec=pltpu.PrefetchScalarGridSpec(
            num_scalar_prefetch=0,
            grid=(B,),
            in_specs=[
                pl.BlockSpec(memory_space=pltpu.MemorySpace.SMEM),      # pw (B,)
                pl.BlockSpec((None, HpWp, cin), lambda b: (b, 0, 0)),   # x  bf16
                pl.BlockSpec(w1.shape, lambda b: (0, 0, 0)),            # w1 (D, D*cin, cmid)
                pl.BlockSpec(b1.shape, lambda b: (0, 0)),               # b1 (1, cmid)
                pl.BlockSpec(w2.shape, lambda b: (0, 0, 0)),            # w2 (D, D*cmid, cout_p)
                pl.BlockSpec(b2.shape, lambda b: (0, 0)),               # b2 (1, cout_p)
                pl.BlockSpec(mask.shape, lambda b: (0, 0)),             # mask (LH, 1)
            ],
            out_specs=pl.BlockSpec((None, LH, cout_p), lambda b: (b, 0, 0)),
            scratch_shapes=[
                pltpu.VMEM((HpWp, D * cin), jnp.bfloat16),   # dv-stacked x
                pltpu.VMEM((HpWp, cmid), jnp.bfloat16),      # mid (padded grid)
                pltpu.VMEM((HpWp, D * cmid), jnp.bfloat16),  # dv-stacked mid
            ],
        ),
        compiler_params=pltpu.CompilerParams(
            dimension_semantics=("parallel",),
            vmem_limit_bytes=48 * 1024 * 1024,
        ),
    )(pw_k, xflat, w1, b1, w2, b2, mask)


# ---------------------------------------------------------------------------
# Parameters: the num_kernels convs of an Inception block are combined into a
# single (D, D) tap table (1/num_kernels mean folded in, biases are 0), the
# input channels padded to the stacked layout's lane width, the output channels
# padded to a 128 multiple, stored bf16 as (D, D*cin_pad, cout_pad).
# ---------------------------------------------------------------------------
def _init_inception_combined(key, cin, cout, num_kernels, cin_pad, cout_pad):
    pmax = num_kernels - 1
    D = 2 * num_kernels - 1
    wc = jnp.zeros((D, D, cin, cout), jnp.float32)
    for i in range(num_kernels):
        ksz = 2 * i + 1
        key, sub = jax.random.split(key)
        std = math.sqrt(2.0 / (cout * ksz * ksz))   # kaiming_normal fan_out, relu
        w = jax.random.normal(sub, (cout, cin, ksz, ksz), jnp.float32) * std
        wt = jnp.transpose(w, (2, 3, 1, 0))         # (ksz, ksz, cin, cout)
        wc = wc.at[pmax - i:pmax - i + ksz, pmax - i:pmax - i + ksz].add(wt)
        # conv bias: nn.init.constant_(bias, 0) -> contributes 0
    wc = wc * (1.0 / float(num_kernels))
    wc = jnp.pad(wc, ((0, 0), (0, 0), (0, cin_pad - cin), (0, cout_pad - cout)))
    w_st = wc.reshape(D, D * cin_pad, cout_pad).astype(jnp.bfloat16)
    b_st = jnp.zeros((1, cout_pad), jnp.float32)
    return w_st, b_st, key


def init_params(key, d_model, d_ff, num_kernels):
    cmid_pad = _round_up(d_ff, 128)      # lane-dense mid / matmul-1 N / matmul-2 K
    cout_pad = _round_up(d_model, 128)   # lane-dense kernel output
    w1, b1, key = _init_inception_combined(key, d_model, d_ff, num_kernels,
                                           d_model, cmid_pad)
    w2, b2, key = _init_inception_combined(key, d_ff, d_model, num_kernels,
                                           cmid_pad, cout_pad)
    return {"w1": w1, "b1": b1, "w2": w2, "b2": b2}


# ---------------------------------------------------------------------------
# TimesBlock forward
# ---------------------------------------------------------------------------
def timesblock_forward(x, params, config):
    B, T, N = x.shape
    seq_len = config["seg_len"]
    k = config["top_k"]
    num_kernels = config["num_kernels"]
    pmax = num_kernels - 1
    D = 2 * num_kernels - 1
    assert T == seq_len

    periods, period_weight = fft_for_period(x, k)
    pw = jax.nn.softmax(period_weight, axis=1)      # (B, k)

    res = x                                         # residual accumulate in XLA
    for ki, period in enumerate(periods):
        if seq_len % period != 0:
            length = (seq_len // period + 1) * period
            pad = jnp.zeros((B, length - seq_len, N), x.dtype)
            out = jnp.concatenate([x, pad], axis=1)
        else:
            length = seq_len
            out = x
        H, W = length // period, period
        lp = _round_up(max(pmax, 1), 8) if pmax > 0 else 0   # aligned left pad
        Wp = _round_up(lp + W + pmax, 8)                     # aligned row stride
        Hp = H + 2 * pmax + 1          # +1 bottom halo row: full H*Wp rows computed
        start = pmax * Wp + lp                                # multiple of 8
        LH = H * Wp                                           # kernel output rows

        # NHWC, zero-pad spatially, flatten rows -> (B, Hp*Wp, N), bf16 for DMA/MXU.
        grid = out.reshape(B, H, W, N)
        grid = jnp.pad(grid, ((0, 0), (pmax, pmax + 1), (lp, Wp - lp - W), (0, 0)))
        xflat = grid.reshape(B, Hp * Wp, N).astype(jnp.bfloat16)

        # Precomputed column-validity mask (hoisted out of the kernel).
        mask = ((jnp.arange(LH) % Wp) < W).astype(jnp.float32).reshape(LH, 1)

        conv = inception_pair_pallas(
            xflat, pw[:, ki], params["w1"], params["b1"],
            params["w2"], params["b2"], mask,
            D=D, pmax=pmax, Wp=Wp, lp=lp, start=start, LH=LH)  # (B, H*Wp, cout_pad)

        # Un-flatten valid positions and drop channel padding (no extra pad pass).
        conv = conv.reshape(B, H, Wp, -1)[:, :, :W, :N].reshape(B, length, N)
        res = res + conv[:, :seq_len, :]
    return res


# ---------------------------------------------------------------------------
if __name__ == "__main__":
    config = {"seg_len": 16, "top_k": 2, "d_model": 8, "d_ff": 16,
              "num_kernels": 3}
    key = jax.random.PRNGKey(0)
    kx, kp = jax.random.split(key)

    B, T, N = 2, config["seg_len"], config["d_model"]
    x = jax.random.normal(kx, (B, T, N), jnp.float32)
    params = init_params(kp, config["d_model"], config["d_ff"],
                         config["num_kernels"])

    out = timesblock_forward(x, params, config)
    jax.block_until_ready(out)
    assert out.shape == (B, T, N)
    print("KERNEL_OK")
</pallas_src>

<mosaic_0001>
module attributes {stable_mosaic.version = 11 : i64} {
  func.func @kernel(%arg0: i32, %arg1: memref<2xf32, #tpu.memory_space<smem>>, %arg2: memref<1x144x8xbf16, #tpu.memory_space<vmem>>, %arg3: memref<5x40x128xbf16, #tpu.memory_space<vmem>>, %arg4: memref<1x128xf32, #tpu.memory_space<vmem>>, %arg5: memref<5x640x128xbf16, #tpu.memory_space<vmem>>, %arg6: memref<1x128xf32, #tpu.memory_space<vmem>>, %arg7: memref<64x1xf32, #tpu.memory_space<vmem>>, %arg8: memref<1x64x128xf32, #tpu.memory_space<vmem>>, %arg9: memref<144x40xbf16, #tpu.memory_space<vmem>>, %arg10: memref<144x128xbf16, #tpu.memory_space<vmem>>, %arg11: memref<144x640xbf16, #tpu.memory_space<vmem>>) attributes {dimension_semantics = [#tpu.dimension_semantics<parallel>], iteration_bounds = array<i64: 2>, scalar_prefetch = 0 : i64, scratch_operands = 3 : i64, tpu.core_type = #tpu.core_type<tc>, window_params = [{transform_indices = @transform_0, window_bounds = array<i64: 2>}, {transform_indices = @transform_1, window_bounds = array<i64: 1, 144, 8>}, {pipeline_mode = #tpu.pipeline_mode<synchronous>, transform_indices = @transform_2, window_bounds = array<i64: 5, 40, 128>}, {pipeline_mode = #tpu.pipeline_mode<synchronous>, transform_indices = @transform_3, window_bounds = array<i64: 1, 128>}, {pipeline_mode = #tpu.pipeline_mode<synchronous>, transform_indices = @transform_4, window_bounds = array<i64: 5, 640, 128>}, {pipeline_mode = #tpu.pipeline_mode<synchronous>, transform_indices = @transform_5, window_bounds = array<i64: 1, 128>}, {pipeline_mode = #tpu.pipeline_mode<synchronous>, transform_indices = @transform_6, window_bounds = array<i64: 64, 1>}, {transform_indices = @transform_7, window_bounds = array<i64: 1, 64, 128>}]} {
    %0 = arith.index_cast %arg0 : i32 to index
    %1 = memref.load %arg1[%0] : memref<2xf32, #tpu.memory_space<smem>>
    %c0 = arith.constant 0 : index
    %c6 = arith.constant 6 : index
    %c0_0 = arith.constant 0 : index
    %2 = vector.load %arg2[%c0, %c6, %c0_0] : memref<1x144x8xbf16, #tpu.memory_space<vmem>>, vector<1x128x8xbf16>
    %3 = vector.shape_cast %2 : vector<1x128x8xbf16> to vector<128x8xbf16>
    %c0_1 = arith.constant 0 : index
    %c7 = arith.constant 7 : index
    %c0_2 = arith.constant 0 : index
    %4 = vector.load %arg2[%c0_1, %c7, %c0_2] : memref<1x144x8xbf16, #tpu.memory_space<vmem>>, vector<1x128x8xbf16>
    %5 = vector.shape_cast %4 : vector<1x128x8xbf16> to vector<128x8xbf16>
    %c0_3 = arith.constant 0 : index
    %c8 = arith.constant 8 : index
    %c0_4 = arith.constant 0 : index
    %6 = vector.load %arg2[%c0_3, %c8, %c0_4] : memref<1x144x8xbf16, #tpu.memory_space<vmem>>, vector<1x128x8xbf16>
    %7 = vector.shape_cast %6 : vector<1x128x8xbf16> to vector<128x8xbf16>
    %c0_5 = arith.constant 0 : index
    %c9 = arith.constant 9 : index
    %c0_6 = arith.constant 0 : index
    %8 = vector.load %arg2[%c0_5, %c9, %c0_6] : memref<1x144x8xbf16, #tpu.memory_space<vmem>>, vector<1x128x8xbf16>
    %9 = vector.shape_cast %8 : vector<1x128x8xbf16> to vector<128x8xbf16>
    %c0_7 = arith.constant 0 : index
    %c10 = arith.constant 10 : index
    %c0_8 = arith.constant 0 : index
    %10 = vector.load %arg2[%c0_7, %c10, %c0_8] : memref<1x144x8xbf16, #tpu.memory_space<vmem>>, vector<1x128x8xbf16>
    %11 = vector.shape_cast %10 : vector<1x128x8xbf16> to vector<128x8xbf16>
    %12 = tpu.concatenate %3, %5, %7, %9, %11 in 1 : vector<128x8xbf16>, vector<128x8xbf16>, vector<128x8xbf16>, vector<128x8xbf16>, vector<128x8xbf16> -> vector<128x40xbf16>
    %c8_9 = arith.constant 8 : index
    %c0_10 = arith.constant 0 : index
    %13 = vector.load %arg9[%c8_9, %c0_10] : memref<144x40xbf16, #tpu.memory_space<vmem>>, vector<128x40xbf16>
    tpu.vector_store %arg9[%c8_9, %c0_10], %12 {strides = array<i32>} : memref<144x40xbf16, #tpu.memory_space<vmem>>, vector<128x40xbf16>,
    %c8_11 = arith.constant 8 : index
    %c0_12 = arith.constant 0 : index
    %14 = vector.load %arg9[%c8_11, %c0_12] : memref<144x40xbf16, #tpu.memory_space<vmem>>, vector<64x40xbf16>
    %c0_13 = arith.constant 0 : index
    %c0_14 = arith.constant 0 : index
    %c0_15 = arith.constant 0 : index
    %15 = vector.load %arg3[%c0_13, %c0_14, %c0_15] : memref<5x40x128xbf16, #tpu.memory_space<vmem>>, vector<1x40x128xbf16>
    %16 = vector.shape_cast %15 : vector<1x40x128xbf16> to vector<40x128xbf16>
    %cst = arith.constant dense<0.000000e+00> : vector<64x128xf32>
    %17 = tpu.matmul %14, %16, %cst {dimension_numbers = #tpu.dot_dimension_numbers<[1], [0], [0], [1], [0, 0, 1, 1], [], []>} : vector<64x40xbf16>, vector<40x128xbf16>, vector<64x128xf32> -> vector<64x128xf32>
    %c24 = arith.constant 24 : index
    %c0_16 = arith.constant 0 : index
    %18 = vector.load %arg9[%c24, %c0_16] : memref<144x40xbf16, #tpu.memory_space<vmem>>, vector<64x40xbf16>
    %c1 = arith.constant 1 : index
    %c0_17 = arith.constant 0 : index
    %c0_18 = arith.constant 0 : index
    %19 = vector.load %arg3[%c1, %c0_17, %c0_18] : memref<5x40x128xbf16, #tpu.memory_space<vmem>>, vector<1x40x128xbf16>
    %20 = vector.shape_cast %19 : vector<1x40x128xbf16> to vector<40x128xbf16>
    %cst_19 = arith.constant dense<0.000000e+00> : vector<64x128xf32>
    %21 = tpu.matmul %18, %20, %cst_19 {dimension_numbers = #tpu.dot_dimension_numbers<[1], [0], [0], [1], [0, 0, 1, 1], [], []>} : vector<64x40xbf16>, vector<40x128xbf16>, vector<64x128xf32> -> vector<64x128xf32>
    %22 = arith.addf %17, %21 : vector<64x128xf32>
    %c40 = arith.constant 40 : index
    %c0_20 = arith.constant 0 : index
    %23 = vector.load %arg9[%c40, %c0_20] : memref<144x40xbf16, #tpu.memory_space<vmem>>, vector<64x40xbf16>
    %c2 = arith.constant 2 : index
    %c0_21 = arith.constant 0 : index
    %c0_22 = arith.constant 0 : index
    %24 = vector.load %arg3[%c2, %c0_21, %c0_22] : memref<5x40x128xbf16, #tpu.memory_space<vmem>>, vector<1x40x128xbf16>
    %25 = vector.shape_cast %24 : vector<1x40x128xbf16> to vector<40x128xbf16>
    %cst_23 = arith.constant dense<0.000000e+00> : vector<64x128xf32>
    %26 = tpu.matmul %23, %25, %cst_23 {dimension_numbers = #tpu.dot_dimension_numbers<[1], [0], [0], [1], [0, 0, 1, 1], [], []>} : vector<64x40xbf16>, vector<40x128xbf16>, vector<64x128xf32> -> vector<64x128xf32>
    %27 = arith.addf %22, %26 : vector<64x128xf32>
    %c56 = arith.constant 56 : index
    %c0_24 = arith.constant 0 : index
    %28 = vector.load %arg9[%c56, %c0_24] : memref<144x40xbf16, #tpu.memory_space<vmem>>, vector<64x40xbf16>
    %c3 = arith.constant 3 : index
    %c0_25 = arith.constant 0 : index
    %c0_26 = arith.constant 0 : index
    %29 = vector.load %arg3[%c3, %c0_25, %c0_26] : memref<5x40x128xbf16, #tpu.memory_space<vmem>>, vector<1x40x128xbf16>
    %30 = vector.shape_cast %29 : vector<1x40x128xbf16> to vector<40x128xbf16>
    %cst_27 = arith.constant dense<0.000000e+00> : vector<64x128xf32>
    %31 = tpu.matmul %28, %30, %cst_27 {dimension_numbers = #tpu.dot_dimension_numbers<[1], [0], [0], [1], [0, 0, 1, 1], [], []>} : vector<64x40xbf16>, vector<40x128xbf16>, vector<64x128xf32> -> vector<64x128xf32>
    %32 = arith.addf %27, %31 : vector<64x128xf32>
    %c72 = arith.constant 72 : index
    %c0_28 = arith.constant 0 : index
    %33 = vector.load %arg9[%c72, %c0_28] : memref<144x40xbf16, #tpu.memory_space<vmem>>, vector<64x40xbf16>
    %c4 = arith.constant 4 : index
    %c0_29 = arith.constant 0 : index
    %c0_30 = arith.constant 0 : index
    %34 = vector.load %arg3[%c4, %c0_29, %c0_30] : memref<5x40x128xbf16, #tpu.memory_space<vmem>>, vector<1x40x128xbf16>
    %35 = vector.shape_cast %34 : vector<1x40x128xbf16> to vector<40x128xbf16>
    %cst_31 = arith.constant dense<0.000000e+00> : vector<64x128xf32>
    %36 = tpu.matmul %33, %35, %cst_31 {dimension_numbers = #tpu.dot_dimension_numbers<[1], [0], [0], [1], [0, 0, 1, 1], [], []>} : vector<64x40xbf16>, vector<40x128xbf16>, vector<64x128xf32> -> vector<64x128xf32>
    %37 = arith.addf %32, %36 : vector<64x128xf32>
    %c0_32 = arith.constant 0 : index
    %c0_33 = arith.constant 0 : index
    %38 = vector.load %arg4[%c0_32, %c0_33] : memref<1x128xf32, #tpu.memory_space<vmem>>, vector<1x128xf32>
    %39 = vector.broadcast %38 : vector<1x128xf32> to vector<64x128xf32>
    %40 = arith.addf %37, %39 : vector<64x128xf32>
    %cst_34 = arith.constant 5.000000e-01 : f32
    %41 = vector.broadcast %cst_34 : f32 to vector<64x128xf32>
    %42 = arith.mulf %41, %40 : vector<64x128xf32>
    %cst_35 = arith.constant 4.471500e-02 : f32
    %43 = vector.broadcast %cst_35 : f32 to vector<64x128xf32>
    %44 = arith.mulf %43, %40 : vector<64x128xf32>
    %45 = arith.mulf %44, %40 : vector<64x128xf32>
    %46 = arith.mulf %45, %40 : vector<64x128xf32>
    %47 = arith.addf %40, %46 : vector<64x128xf32>
    %cst_36 = arith.constant 0.797884583 : f32
    %48 = vector.broadcast %cst_36 : f32 to vector<64x128xf32>
    %49 = arith.mulf %48, %47 : vector<64x128xf32>
    %50 = math.tanh %49 : vector<64x128xf32>
    %cst_37 = arith.constant 1.000000e+00 : f32
    %51 = vector.broadcast %cst_37 : f32 to vector<64x128xf32>
    %52 = arith.addf %51, %50 : vector<64x128xf32>
    %53 = arith.mulf %42, %52 : vector<64x128xf32>
    %c0_38 = arith.constant 0 : index
    %c0_39 = arith.constant 0 : index
    %54 = vector.load %arg7[%c0_38, %c0_39] : memref<64x1xf32, #tpu.memory_space<vmem>>, vector<64x1xf32>
    %55 = vector.broadcast %1 : f32 to vector<64x1xf32>
    %56 = arith.mulf %54, %55 : vector<64x1xf32>
    %57 = vector.broadcast %56 : vector<64x1xf32> to vector<64x128xf32>
    %58 = arith.mulf %53, %57 : vector<64x128xf32>
    %cst_40 = arith.constant 0.000000e+00 : bf16
    %59 = vector.broadcast %cst_40 : bf16 to vector<40x128xbf16>
    %c0_41 = arith.constant 0 : index
    %c0_42 = arith.constant 0 : index
    %60 = vector.load %arg10[%c0_41, %c0_42] : memref<144x128xbf16, #tpu.memory_space<vmem>>, vector<40x128xbf16>
    tpu.vector_store %arg10[%c0_41, %c0_42], %59 {strides = array<i32>} : memref<144x128xbf16, #tpu.memory_space<vmem>>, vector<40x128xbf16>,
    %cst_43 = arith.constant 0.000000e+00 : bf16
    %61 = vector.broadcast %cst_43 : bf16 to vector<40x128xbf16>
    %c104 = arith.constant 104 : index
    %c0_44 = arith.constant 0 : index
    %62 = vector.load %arg10[%c104, %c0_44] : memref<144x128xbf16, #tpu.memory_space<vmem>>, vector<40x128xbf16>
    tpu.vector_store %arg10[%c104, %c0_44], %61 {strides = array<i32>} : memref<144x128xbf16, #tpu.memory_space<vmem>>, vector<40x128xbf16>,
    %63 = arith.truncf %58 : vector<64x128xf32> to vector<64x128xbf16>
    %c40_45 = arith.constant 40 : index
    %c0_46 = arith.constant 0 : index
    %64 = vector.load %arg10[%c40_45, %c0_46] : memref<144x128xbf16, #tpu.memory_space<vmem>>, vector<64x128xbf16>
    tpu.vector_store %arg10[%c40_45, %c0_46], %63 {strides = array<i32>} : memref<144x128xbf16, #tpu.memory_space<vmem>>, vector<64x128xbf16>,
    %c6_47 = arith.constant 6 : index
    %c0_48 = arith.constant 0 : index
    %65 = vector.load %arg10[%c6_47, %c0_48] : memref<144x128xbf16, #tpu.memory_space<vmem>>, vector<128x128xbf16>
    %c7_49 = arith.constant 7 : index
    %c0_50 = arith.constant 0 : index
    %66 = vector.load %arg10[%c7_49, %c0_50] : memref<144x128xbf16, #tpu.memory_space<vmem>>, vector<128x128xbf16>
    %c8_51 = arith.constant 8 : index
    %c0_52 = arith.constant 0 : index
    %67 = vector.load %arg10[%c8_51, %c0_52] : memref<144x128xbf16, #tpu.memory_space<vmem>>, vector<128x128xbf16>
    %c9_53 = arith.constant 9 : index
    %c0_54 = arith.constant 0 : index
    %68 = vector.load %arg10[%c9_53, %c0_54] : memref<144x128xbf16, #tpu.memory_space<vmem>>, vector<128x128xbf16>
    %c10_55 = arith.constant 10 : index
    %c0_56 = arith.constant 0 : index
    %69 = vector.load %arg10[%c10_55, %c0_56] : memref<144x128xbf16, #tpu.memory_space<vmem>>, vector<128x128xbf16>
    %70 = tpu.concatenate %65, %66, %67, %68, %69 in 1 : vector<128x128xbf16>, vector<128x128xbf16>, vector<128x128xbf16>, vector<128x128xbf16>, vector<128x128xbf16> -> vector<128x640xbf16>
    %c8_57 = arith.constant 8 : index
    %c0_58 = arith.constant 0 : index
    %71 = vector.load %arg11[%c8_57, %c0_58] : memref<144x640xbf16, #tpu.memory_space<vmem>>, vector<128x640xbf16>
    tpu.vector_store %arg11[%c8_57, %c0_58], %70 {strides = array<i32>} : memref<144x640xbf16, #tpu.memory_space<vmem>>, vector<128x640xbf16>,
    %c8_59 = arith.constant 8 : index
    %c0_60 = arith.constant 0 : index
    %72 = vector.load %arg11[%c8_59, %c0_60] : memref<144x640xbf16, #tpu.memory_space<vmem>>, vector<64x640xbf16>
    %c0_61 = arith.constant 0 : index
    %c0_62 = arith.constant 0 : index
    %c0_63 = arith.constant 0 : index
    %73 = vector.load %arg5[%c0_61, %c0_62, %c0_63] : memref<5x640x128xbf16, #tpu.memory_space<vmem>>, vector<1x640x128xbf16>
    %74 = vector.shape_cast %73 : vector<1x640x128xbf16> to vector<640x128xbf16>
    %cst_64 = arith.constant dense<0.000000e+00> : vector<64x128xf32>
    %75 = tpu.matmul %72, %74, %cst_64 {dimension_numbers = #tpu.dot_dimension_numbers<[1], [0], [0], [1], [0, 0, 1, 1], [], []>} : vector<64x640xbf16>, vector<640x128xbf16>, vector<64x128xf32> -> vector<64x128xf32>
    %c24_65 = arith.constant 24 : index
    %c0_66 = arith.constant 0 : index
    %76 = vector.load %arg11[%c24_65, %c0_66] : memref<144x640xbf16, #tpu.memory_space<vmem>>, vector<64x640xbf16>
    %c1_67 = arith.constant 1 : index
    %c0_68 = arith.constant 0 : index
    %c0_69 = arith.constant 0 : index
    %77 = vector.load %arg5[%c1_67, %c0_68, %c0_69] : memref<5x640x128xbf16, #tpu.memory_space<vmem>>, vector<1x640x128xbf16>
    %78 = vector.shape_cast %77 : vector<1x640x128xbf16> to vector<640x128xbf16>
    %cst_70 = arith.constant dense<0.000000e+00> : vector<64x128xf32>
    %79 = tpu.matmul %76, %78, %cst_70 {dimension_numbers = #tpu.dot_dimension_numbers<[1], [0], [0], [1], [0, 0, 1, 1], [], []>} : vector<64x640xbf16>, vector<640x128xbf16>, vector<64x128xf32> -> vector<64x128xf32>
    %80 = arith.addf %75, %79 : vector<64x128xf32>
    %c40_71 = arith.constant 40 : index
    %c0_72 = arith.constant 0 : index
    %81 = vector.load %arg11[%c40_71, %c0_72] : memref<144x640xbf16, #tpu.memory_space<vmem>>, vector<64x640xbf16>
    %c2_73 = arith.constant 2 : index
    %c0_74 = arith.constant 0 : index
    %c0_75 = arith.constant 0 : index
    %82 = vector.load %arg5[%c2_73, %c0_74, %c0_75] : memref<5x640x128xbf16, #tpu.memory_space<vmem>>, vector<1x640x128xbf16>
    %83 = vector.shape_cast %82 : vector<1x640x128xbf16> to vector<640x128xbf16>
    %cst_76 = arith.constant dense<0.000000e+00> : vector<64x128xf32>
    %84 = tpu.matmul %81, %83, %cst_76 {dimension_numbers = #tpu.dot_dimension_numbers<[1], [0], [0], [1], [0, 0, 1, 1], [], []>} : vector<64x640xbf16>, vector<640x128xbf16>, vector<64x128xf32> -> vector<64x128xf32>
    %85 = arith.addf %80, %84 : vector<64x128xf32>
    %c56_77 = arith.constant 56 : index
    %c0_78 = arith.constant 0 : index
    %86 = vector.load %arg11[%c56_77, %c0_78] : memref<144x640xbf16, #tpu.memory_space<vmem>>, vector<64x640xbf16>
    %c3_79 = arith.constant 3 : index
    %c0_80 = arith.constant 0 : index
    %c0_81 = arith.constant 0 : index
    %87 = vector.load %arg5[%c3_79, %c0_80, %c0_81] : memref<5x640x128xbf16, #tpu.memory_space<vmem>>, vector<1x640x128xbf16>
    %88 = vector.shape_cast %87 : vector<1x640x128xbf16> to vector<640x128xbf16>
    %cst_82 = arith.constant dense<0.000000e+00> : vector<64x128xf32>
    %89 = tpu.matmul %86, %88, %cst_82 {dimension_numbers = #tpu.dot_dimension_numbers<[1], [0], [0], [1], [0, 0, 1, 1], [], []>} : vector<64x640xbf16>, vector<640x128xbf16>, vector<64x128xf32> -> vector<64x128xf32>
    %90 = arith.addf %85, %89 : vector<64x128xf32>
    %c72_83 = arith.constant 72 : index
    %c0_84 = arith.constant 0 : index
    %91 = vector.load %arg11[%c72_83, %c0_84] : memref<144x640xbf16, #tpu.memory_space<vmem>>, vector<64x640xbf16>
    %c4_85 = arith.constant 4 : index
    %c0_86 = arith.constant 0 : index
    %c0_87 = arith.constant 0 : index
    %92 = vector.load %arg5[%c4_85, %c0_86, %c0_87] : memref<5x640x128xbf16, #tpu.memory_space<vmem>>, vector<1x640x128xbf16>
    %93 = vector.shape_cast %92 : vector<1x640x128xbf16> to vector<640x128xbf16>
    %cst_88 = arith.constant dense<0.000000e+00> : vector<64x128xf32>
    %94 = tpu.matmul %91, %93, %cst_88 {dimension_numbers = #tpu.dot_dimension_numbers<[1], [0], [0], [1], [0, 0, 1, 1], [], []>} : vector<64x640xbf16>, vector<640x128xbf16>, vector<64x128xf32> -> vector<64x128xf32>
    %95 = arith.addf %90, %94 : vector<64x128xf32>
    %c0_89 = arith.constant 0 : index
    %c0_90 = arith.constant 0 : index
    %96 = vector.load %arg6[%c0_89, %c0_90] : memref<1x128xf32, #tpu.memory_space<vmem>>, vector<1x128xf32>
    %97 = vector.broadcast %1 : f32 to vector<1x128xf32>
    %98 = arith.mulf %96, %97 : vector<1x128xf32>
    %99 = vector.broadcast %98 : vector<1x128xf32> to vector<64x128xf32>
    %100 = arith.addf %95, %99 : vector<64x128xf32>
    %c0_91 = arith.constant 0 : index
    %c0_92 = arith.constant 0 : index
    %c0_93 = arith.constant 0 : index
    %101 = vector.load %arg8[%c0_91, %c0_92, %c0_93] : memref<1x64x128xf32, #tpu.memory_space<vmem>>, vector<1x64x128xf32>
    %102 = vector.shape_cast %101 : vector<1x64x128xf32> to vector<64x128xf32>
    %103 = vector.shape_cast %100 : vector<64x128xf32> to vector<1x64x128xf32>
    tpu.vector_store %arg8[%c0_91, %c0_92, %c0_93], %103 {strides = array<i32>} : memref<1x64x128xf32, #tpu.memory_space<vmem>>, vector<1x64x128xf32>,
    return
  }
  func.func @transform_0(%arg0: i32) -> i32 {
    %c0_i32 = arith.constant 0 : i32
    %c0_i32_0 = arith.constant 0 : i32
    return %c0_i32 : i32
  }
  func.func @transform_1(%arg0: i32) -> (i32, i32, i32) {
    %c0_i32 = arith.constant 0 : i32
    %c0_i32_0 = arith.constant 0 : i32
    %c0_i32_1 = arith.constant 0 : i32
    return %arg0, %c0_i32, %c0_i32_0 : i32, i32, i32
  }
  func.func @transform_2(%arg0: i32) -> (i32, i32, i32) {
    %c0_i32 = arith.constant 0 : i32
    %c0_i32_0 = arith.constant 0 : i32
    %c0_i32_1 = arith.constant 0 : i32
    %c0_i32_2 = arith.constant 0 : i32
    return %c0_i32, %c0_i32_0, %c0_i32_1 : i32, i32, i32
  }
  func.func @transform_3(%arg0: i32) -> (i32, i32) {
    %c0_i32 = arith.constant 0 : i32
    %c0_i32_0 = arith.constant 0 : i32
    %c0_i32_1 = arith.constant 0 : i32
    return %c0_i32, %c0_i32_0 : i32, i32
  }
  func.func @transform_4(%arg0: i32) -> (i32, i32, i32) {
    %c0_i32 = arith.constant 0 : i32
    %c0_i32_0 = arith.constant 0 : i32
    %c0_i32_1 = arith.constant 0 : i32
    %c0_i32_2 = arith.constant 0 : i32
    return %c0_i32, %c0_i32_0, %c0_i32_1 : i32, i32, i32
  }
  func.func @transform_5(%arg0: i32) -> (i32, i32) {
    %c0_i32 = arith.constant 0 : i32
    %c0_i32_0 = arith.constant 0 : i32
    %c0_i32_1 = arith.constant 0 : i32
    return %c0_i32, %c0_i32_0 : i32, i32
  }
  func.func @transform_6(%arg0: i32) -> (i32, i32) {
    %c0_i32 = arith.constant 0 : i32
    %c0_i32_0 = arith.constant 0 : i32
    %c0_i32_1 = arith.constant 0 : i32
    return %c0_i32, %c0_i32_0 : i32, i32
  }
  func.func @transform_7(%arg0: i32) -> (i32, i32, i32) {
    %c0_i32 = arith.constant 0 : i32
    %c0_i32_0 = arith.constant 0 : i32
    %c0_i32_1 = arith.constant 0 : i32
    return %arg0, %c0_i32, %c0_i32_0 : i32, i32, i32
  }
}

</mosaic_0001>

<llo_original>
// kernel: tpu_custom_call.1
$region0: #{tpu_custom_call.1}
  #allocation0 [shape = 'u32[]', space=smem, size = 0x4, offset = 0x4, fixed_abs, tag = 'smem constant byte address 0x4 - core index']
  #allocation1 [shape = 'u32[144,128]{1,0:T(1,128)}', space=vmem, size = 0x12000, scoped, tag = 'internal scratch']
  #allocation2 [shape = 'bf16[144,40]{1,0:T(16,128)(2,1)}', space=vmem, size = 0x9000, scoped, tag = 'scratch operand']
  #allocation3 [shape = 'bf16[144,128]{1,0:T(16,128)(2,1)}', space=vmem, size = 0x9000, scoped, tag = 'scratch operand']
  #allocation4 [shape = 'bf16[144,640]{1,0:T(16,128)(2,1)}', space=vmem, size = 0x2d000, scoped, tag = 'scratch operand']
  %s0 = inlined_call_operand.vmem [shape: f32[2], index: 0, kind: input, shape index: {}]
  %s1 = inlined_call_operand.vmem [shape: bf16[2,144,8], index: 1, kind: input, shape index: {}]
  %s2 = inlined_call_operand.vmem [shape: bf16[5,40,128], index: 2, kind: input, shape index: {}]
  %s3 = inlined_call_operand.vmem [shape: f32[1,128], index: 3, kind: input, shape index: {}]
  %s4 = inlined_call_operand.hbm [shape: bf16[5,640,128], index: 4, kind: input, shape index: {}]
  %s5 = inlined_call_operand.vmem [shape: f32[1,128], index: 5, kind: input, shape index: {}]
  %s6 = inlined_call_operand.vmem [shape: f32[64,1], index: 6, kind: input, shape index: {}]
  %s7 = inlined_call_operand.hbm [shape: f32[2,64,128], index: 7, kind: output, shape index: {}]
  %s8 = sld [smem:[#allocation0]]
  $region69: #{tpu_custom_call.1} parent=0
    _
  %s10 = ssub.s32 1, %s8
  %s11 = scalar_select 0, %s10, %s8
  $region1: #{tpu_custom_call.1} parent=0
    #allocation5 [shape = 'u8[512]{0}', space=smem, size = 0x200, scoped, tag = 'input window, operand 0, single buffered']
    #allocation6 [shape = 's32[2]{0}', space=sflag, size = 0x8, scoped, tag = 'scoped memory for tpu_custom_call.1']
    #allocation7 [shape = 's32[2]{0}', space=sflag, size = 0x8, scoped, tag = 'scoped memory for tpu_custom_call.1']
    #allocation8 [shape = 's32[2]{0}', space=sflag, size = 0x8, scoped, tag = 'scoped memory for tpu_custom_call.1']
    #allocation9 [shape = 'u8[819200]{0}', space=vmem, size = 0xc8000, scoped, tag = 'input window, operand 4, single buffered']
    #allocation10 [shape = 'u8[65536]{0}', space=vmem, size = 0x10000, scoped, tag = 'output window, operand 0']
    %12 = vsyncpa [#allocation8], 0
    %13 = vsyncpa [#allocation6], 0
    %14 = vsyncpa [#allocation7], 0
    %s15 = scalar_lea.sflag [#allocation7], 1
    %16 = vsyncpa %s15, 0
    loop: start=0, step=1, limit=4
    $region2: #{tpu_custom_call.1} parent=1 // loop_pre_header
      _
    $region3: #{tpu_custom_call.1} parent=1 // loop_header
      %s18 = sphi 0, %s22
      %p19 = scmp.ge.s32.totalorder %s18, 4
      %s26 = sphi 0, %s26
      %s28 = sphi 0, %s26
      %s29 = sphi 0, %s28
      %s43 = sphi 0, %s29
      %s49 = sphi 0, %s51
      %s52 = sphi 0, %s49
      %s53 = sphi 0, %s52
      %s69 = sphi 0, %s53
      %s73 = sphi 0, %s73
      %s75 = sphi 0, %s73
      %s76 = sphi 0, %s75
      %s90 = sphi 0, %s76
      %s94 = sphi 0, %s94
      %s96 = sphi 0, %s94
      %s97 = sphi 0, %s96
      %s111 = sphi 0, %s97
      %s115 = sphi 0, %s115
      %s117 = sphi 0, %s115
      %s118 = sphi 0, %s117
      %s132 = sphi 0, %s118
      %s136 = sphi 0, %s136
      %s138 = sphi 0, %s136
      %s139 = sphi 0, %s138
      %s153 = sphi 0, %s139
      %s157 = sphi 0, %s157
      %s159 = sphi 0, %s157
      %s160 = sphi 0, %s159
      %s174 = sphi 0, %s160
      %s180 = sphi 0, %s182
      %s183 = sphi 0, %s180
      %s184 = sphi 0, %s183
      %s200 = sphi 0, %s184
    $region4: #{tpu_custom_call.1} parent=1 // loop_header_branch
      %21 = sbr.rel (%p19) target = $region8
    $region5: #{tpu_custom_call.1} parent=1 // loop_body
      %s23 = ssub.s32 %s18, 1
      %s24 = ssub.s32 %s18, 2
      %s25 = sadd.s32 %s18, 1
      %s27 = sadd.s32 %s26, 1
      %p30 = scmp.eq.s32.totalorder %s18, 1
      %p31 = scmp.ne.s32.totalorder %s26, %s28
      %p32 = scmp.eq.s32.totalorder %s18, 0
      %p33 = por %p31, %p32
      %p34 = scmp.ne.s32.totalorder %s26, %s28
      %p35 = scmp.eq.s32.totalorder %s23, 1
      %p36 = por %p34, %p35
      %p37 = scmp.ne.s32.totalorder %s28, %s29
      %p38 = scmp.eq.s32.totalorder %s23, 0
      %p39 = por %p37, %p38
      %p40 = scmp.ne.s32.totalorder %s28, %s29
      %p41 = scmp.eq.s32.totalorder %s24, 1
      %p42 = por %p40, %p41
      %p44 = scmp.ne.s32.totalorder %s29, %s43
      %p45 = scmp.eq.s32.totalorder %s24, 0
      %p46 = por %p44, %p45
      %s47 = ssub.s32 %s18, %s25
      %p48 = scmp.eq.s32.totalorder %s47, 0
      %s50 = sadd.s32 %s49, 1
      %s51 = scalar_select %p48, %s49, %s50
      %p54 = pneg %p48
      %p55 = scmp.eq.s32.totalorder %s18, 1
      %p56 = por %p54, %p55
      %p57 = scmp.ne.s32.totalorder %s49, %s52
      %p58 = scmp.eq.s32.totalorder %s18, 0
      %p59 = por %p57, %p58
      %p60 = scmp.ne.s32.totalorder %s49, %s52
      %p61 = scmp.eq.s32.totalorder %s23, 1
      %p62 = por %p60, %p61
      %p63 = scmp.ne.s32.totalorder %s52, %s53
      %p64 = scmp.eq.s32.totalorder %s23, 0
      %p65 = por %p63, %p64
      %p66 = scmp.ne.s32.totalorder %s52, %s53
      %p67 = scmp.eq.s32.totalorder %s24, 1
      %p68 = por %p66, %p67
      %p70 = scmp.ne.s32.totalorder %s53, %s69
      %p71 = scmp.eq.s32.totalorder %s24, 0
      %p72 = por %p70, %p71
      %s74 = sadd.s32 %s73, 1
      %p77 = scmp.eq.s32.totalorder %s18, 1
      %p78 = scmp.ne.s32.totalorder %s73, %s75
      %p79 = scmp.eq.s32.totalorder %s18, 0
      %p80 = por %p78, %p79
      %p81 = scmp.ne.s32.totalorder %s73, %s75
      %p82 = scmp.eq.s32.totalorder %s23, 1
      %p83 = por %p81, %p82
      %p84 = scmp.ne.s32.totalorder %s75, %s76
      %p85 = scmp.eq.s32.totalorder %s23, 0
      %p86 = por %p84, %p85
      %p87 = scmp.ne.s32.totalorder %s75, %s76
      %p88 = scmp.eq.s32.totalorder %s24, 1
      %p89 = por %p87, %p88
      %p91 = scmp.ne.s32.totalorder %s76, %s90
      %p92 = scmp.eq.s32.totalorder %s24, 0
      %p93 = por %p91, %p92
      %s95 = sadd.s32 %s94, 1
      %p98 = scmp.eq.s32.totalorder %s18, 1
      %p99 = scmp.ne.s32.totalorder %s94, %s96
      %p100 = scmp.eq.s32.totalorder %s18, 0
      %p101 = por %p99, %p100
      %p102 = scmp.ne.s32.totalorder %s94, %s96
      %p103 = scmp.eq.s32.totalorder %s23, 1
      %p104 = por %p102, %p103
      %p105 = scmp.ne.s32.totalorder %s96, %s97
      %p106 = scmp.eq.s32.totalorder %s23, 0
      %p107 = por %p105, %p106
      %p108 = scmp.ne.s32.totalorder %s96, %s97
      %p109 = scmp.eq.s32.totalorder %s24, 1
      %p110 = por %p108, %p109
      %p112 = scmp.ne.s32.totalorder %s97, %s111
      %p113 = scmp.eq.s32.totalorder %s24, 0
      %p114 = por %p112, %p113
      %s116 = sadd.s32 %s115, 1
      %p119 = scmp.eq.s32.totalorder %s18, 1
      %p120 = scmp.ne.s32.totalorder %s115, %s117
      %p121 = scmp.eq.s32.totalorder %s18, 0
      %p122 = por %p120, %p121
      %p123 = scmp.ne.s32.totalorder %s115, %s117
      %p124 = scmp.eq.s32.totalorder %s23, 1
      %p125 = por %p123, %p124
      %p126 = scmp.ne.s32.totalorder %s117, %s118
      %p127 = scmp.eq.s32.totalorder %s23, 0
      %p128 = por %p126, %p127
      %p129 = scmp.ne.s32.totalorder %s117, %s118
      %p130 = scmp.eq.s32.totalorder %s24, 1
      %p131 = por %p129, %p130
      %p133 = scmp.ne.s32.totalorder %s118, %s132
      %p134 = scmp.eq.s32.totalorder %s24, 0
      %p135 = por %p133, %p134
      %s137 = sadd.s32 %s136, 1
      %p140 = scmp.eq.s32.totalorder %s18, 1
      %p141 = scmp.ne.s32.totalorder %s136, %s138
      %p142 = scmp.eq.s32.totalorder %s18, 0
      %p143 = por %p141, %p142
      %p144 = scmp.ne.s32.totalorder %s136, %s138
      %p145 = scmp.eq.s32.totalorder %s23, 1
      %p146 = por %p144, %p145
      %p147 = scmp.ne.s32.totalorder %s138, %s139
      %p148 = scmp.eq.s32.totalorder %s23, 0
      %p149 = por %p147, %p148
      %p150 = scmp.ne.s32.totalorder %s138, %s139
      %p151 = scmp.eq.s32.totalorder %s24, 1
      %p152 = por %p150, %p151
      %p154 = scmp.ne.s32.totalorder %s139, %s153
      %p155 = scmp.eq.s32.totalorder %s24, 0
      %p156 = por %p154, %p155
      %s158 = sadd.s32 %s157, 1
      %p161 = scmp.eq.s32.totalorder %s18, 1
      %p162 = scmp.ne.s32.totalorder %s157, %s159
      %p163 = scmp.eq.s32.totalorder %s18, 0
      %p164 = por %p162, %p163
      %p165 = scmp.ne.s32.totalorder %s157, %s159
      %p166 = scmp.eq.s32.totalorder %s23, 1
      %p167 = por %p165, %p166
      %p168 = scmp.ne.s32.totalorder %s159, %s160
      %p169 = scmp.eq.s32.totalorder %s23, 0
      %p170 = por %p168, %p169
      %p171 = scmp.ne.s32.totalorder %s159, %s160
      %p172 = scmp.eq.s32.totalorder %s24, 1
      %p173 = por %p171, %p172
      %p175 = scmp.ne.s32.totalorder %s160, %s174
      %p176 = scmp.eq.s32.totalorder %s24, 0
      %p177 = por %p175, %p176
      %s178 = ssub.s32 %s18, %s25
      %p179 = scmp.eq.s32.totalorder %s178, 0
      %s181 = sadd.s32 %s180, 1
      %s182 = scalar_select %p179, %s180, %s181
      %p185 = pneg %p179
      %p186 = scmp.eq.s32.totalorder %s18, 1
      %p187 = por %p185, %p186
      %p188 = scmp.ne.s32.totalorder %s180, %s183
      %p189 = scmp.eq.s32.totalorder %s18, 0
      %p190 = por %p188, %p189
      %p191 = scmp.ne.s32.totalorder %s180, %s183
      %p192 = scmp.eq.s32.totalorder %s23, 1
      %p193 = por %p191, %p192
      %p194 = scmp.ne.s32.totalorder %s183, %s184
      %p195 = scmp.eq.s32.totalorder %s23, 0
      %p196 = por %p194, %p195
      %p197 = scmp.ne.s32.totalorder %s183, %s184
      %p198 = scmp.eq.s32.totalorder %s24, 1
      %p199 = por %p197, %p198
      %p201 = scmp.ne.s32.totalorder %s184, %s200
      %p202 = scmp.eq.s32.totalorder %s24, 0
      %p203 = por %p201, %p202
      %p204 = scmp.le.s32.totalorder 1, %s18
      %p205 = scmp.lt.s32.totalorder %s18, 3
      %p206 = pnand %p204, %p205
      %p207 = pneg %p206
      // Predicated region
      $region9: #{tpu_custom_call.1} parent=5 // pred_check
        _
      $region10: #{tpu_custom_call.1} parent=5 // pred_check_branch
        %209 = sbr.rel (%p206) target = $region12
      $region11: #{tpu_custom_call.1} parent=5 // pred_region
        %s210 = ssub.s32 %s18, 1
        // Predicated region
        $region13: #{tpu_custom_call.1} parent=11 // pred_check
          %p211 = pneg %p39
        $region14: #{tpu_custom_call.1} parent=11 // pred_check_branch
          %213 = sbr.rel (%p211) target = $region16
        $region15: #{tpu_custom_call.1} parent=11 // pred_region
          %s215 = ssub.s32 16, 16
          %216 = vsyncadd [#allocation8], %s215
          %s218 = sshll.u32 %s0, 4
          %s219 = int_to_ptr.vmem [resolvable:$true] %s218
          %221 = dma.vmem_to_smem %s219, 16, [#allocation5], [#allocation8]
        $region16: #{tpu_custom_call.1} parent=11 // pred_fallthru
          _
        // Predicated region
        $region17: #{tpu_custom_call.1} parent=11 // pred_check
          %p222 = pneg %p86
        $region18: #{tpu_custom_call.1} parent=11 // pred_check_branch
          %224 = sbr.rel (%p222) target = $region20
        $region19: #{tpu_custom_call.1} parent=11 // pred_region
          _
        $region20: #{tpu_custom_call.1} parent=11 // pred_fallthru
          _
        // Predicated region
        $region21: #{tpu_custom_call.1} parent=11 // pred_check
          %p225 = pneg %p107
        $region22: #{tpu_custom_call.1} parent=11 // pred_check_branch
          %227 = sbr.rel (%p225) target = $region24
        $region23: #{tpu_custom_call.1} parent=11 // pred_region
          _
        $region24: #{tpu_custom_call.1} parent=11 // pred_fallthru
          _
        // Predicated region
        $region25: #{tpu_custom_call.1} parent=11 // pred_check
          %p228 = pneg %p128
        $region26: #{tpu_custom_call.1} parent=11 // pred_check_branch
          %230 = sbr.rel (%p228) target = $region28
        $region27: #{tpu_custom_call.1} parent=11 // pred_region
          %s232 = ssub.s32 25600, 25600
          %233 = vsyncadd [#allocation6], %s232
          %s234 = sshll.u32 [#allocation9], 4
          %s235 = int_to_ptr.vmem [resolvable:$true] %s234
          %240 = dma.hbm_to_vmem [thread:$0]  %s4, 25600, %s235, [#allocation6], 64, 64, 4
        $region28: #{tpu_custom_call.1} parent=11 // pred_fallthru
          _
        // Predicated region
        $region29: #{tpu_custom_call.1} parent=11 // pred_check
          %p241 = pneg %p149
        $region30: #{tpu_custom_call.1} parent=11 // pred_check_branch
          %243 = sbr.rel (%p241) target = $region32
        $region31: #{tpu_custom_call.1} parent=11 // pred_region
          _
        $region32: #{tpu_custom_call.1} parent=11 // pred_fallthru
          _
        // Predicated region
        $region33: #{tpu_custom_call.1} parent=11 // pred_check
          %p244 = pneg %p170
        $region34: #{tpu_custom_call.1} parent=11 // pred_check_branch
          %246 = sbr.rel (%p244) target = $region36
        $region35: #{tpu_custom_call.1} parent=11 // pred_region
          _
        $region36: #{tpu_custom_call.1} parent=11 // pred_fallthru
          _
      $region12: #{tpu_custom_call.1} parent=5 // pred_fallthru
        _
      %p247 = scmp.lt.s32.totalorder %s18, 2
      // Predicated region
      $region37: #{tpu_custom_call.1} parent=5 // pred_check
        %p248 = pneg %p247
      $region38: #{tpu_custom_call.1} parent=5 // pred_check_branch
        %250 = sbr.rel (%p248) target = $region40
      $region39: #{tpu_custom_call.1} parent=5 // pred_region
        // Predicated region
        $region41: #{tpu_custom_call.1} parent=39 // pred_check
          %p251 = pneg %p59
        $region42: #{tpu_custom_call.1} parent=39 // pred_check_branch
          %253 = sbr.rel (%p251) target = $region44
        $region43: #{tpu_custom_call.1} parent=39 // pred_region
          %p254 = scmp.lt.s32.totalorder %s18, 1
          %s255 = scalar_select %p254, %s18, 1
          %s256 = smul.addr %s255, 18
          %s257 = smul.addr %s256, 4
          %s258 = scalar_lea.vmem %s1, %s257
        $region44: #{tpu_custom_call.1} parent=39 // pred_fallthru
          _
      $region40: #{tpu_custom_call.1} parent=5 // pred_fallthru
        _
      %p259 = scmp.le.s32.totalorder 1, %s18
      %p260 = scmp.lt.s32.totalorder %s18, 3
      %p261 = pnand %p259, %p260
      %p262 = pneg %p261
      // Predicated region
      $region45: #{tpu_custom_call.1} parent=5 // pred_check
        _
      $region46: #{tpu_custom_call.1} parent=5 // pred_check_branch
        %264 = sbr.rel (%p261) target = $region48
      $region47: #{tpu_custom_call.1} parent=5 // pred_region
        %s265 = ssub.s32 %s18, 1
        // Predicated region
        $region49: #{tpu_custom_call.1} parent=47 // pred_check
          %p266 = pneg %p39
        $region50: #{tpu_custom_call.1} parent=47 // pred_check_branch
          %268 = sbr.rel (%p266) target = $region52
        $region51: #{tpu_custom_call.1} parent=47 // pred_region
          %269 = dma.done [#allocation8], 16
        $region52: #{tpu_custom_call.1} parent=47 // pred_fallthru
          _
        // Predicated region
        $region53: #{tpu_custom_call.1} parent=47 // pred_check
          %p270 = pneg %p128
        $region54: #{tpu_custom_call.1} parent=47 // pred_check_branch
          %272 = sbr.rel (%p270) target = $region56
        $region55: #{tpu_custom_call.1} parent=47 // pred_region
          %273 = dma.done [#allocation6], 25600
        $region56: #{tpu_custom_call.1} parent=47 // pred_fallthru
          _
        %274 = sfence
        %p275 = pneg %p39
        %p276 = pneg %p36
        %p277 = scmp.lt.s32.totalorder %s23, 1
        %s278 = scalar_select %p277, %s23, 1
        %s279 = smul.addr %s278, 18
        %s280 = smul.addr %s279, 4
        %s281 = scalar_lea.vmem %s1, %s280
        %p282 = pneg %p65
        %p283 = pneg %p62
        %p284 = pneg %p86
        %p285 = pneg %p83
        %p286 = pneg %p107
        %p287 = pneg %p104
        %p288 = pneg %p128
        %p289 = pneg %p125
        %p290 = pneg %p149
        %p291 = pneg %p146
        %p292 = pneg %p170
        %p293 = pneg %p167
        %p294 = pneg %p196
        %p295 = pneg %p193
        %s296 = sand.u32 %s183, 1
        %s297 = scalar_lea.sflag [#allocation7], %s296
        %s298 = sand.u32 %s183, 1
        %s299 = smul.addr %s298, 64
        %s300 = scalar_lea.vmem [#allocation10], %s299
        %p301 = scmp.lt.s32.totalorder %s23, 1
        %s302 = scalar_select %p301, %s23, 1
        %s303 = smul.addr %s302, 18
        %s304 = smul.addr %s303, 4
        %s305 = scalar_lea.vmem %s1, %s304
        %s307 = sld [smem:[#allocation5 + %s23]]
        %v308 = vld [vmem:[%s305] sm:$0x8]
        %v309 = vld [vmem:[%s305 + $0x4] sm:$0xf]
        %v310 = vld [vmem:[%s305 + $0x8] sm:$0xf]
        %v311 = vld [vmem:[%s305 + $0xc] sm:$0xf]
        %v312 = vld [vmem:[%s305 + $0x10] sm:$0xf]
        %v313 = vld [vmem:[%s305 + $0x14] sm:$0xf]
        %v314 = vld [vmem:[%s305 + $0x18] sm:$0xf]
        %v315 = vld [vmem:[%s305 + $0x1c] sm:$0xf]
        %v316 = vld [vmem:[%s305 + $0x20] sm:$0xf]
        %v317 = vld [vmem:[%s305 + $0x24] sm:$0xf]
        %v318 = vld [vmem:[%s305 + $0x28] sm:$0xf]
        %v319 = vld [vmem:[%s305 + $0x2c] sm:$0xf]
        %v320 = vld [vmem:[%s305 + $0x30] sm:$0xf]
        %v321 = vld [vmem:[%s305 + $0x34] sm:$0xf]
        %v322 = vld [vmem:[%s305 + $0x38] sm:$0xf]
        %v323 = vld [vmem:[%s305 + $0x3c] sm:$0xf]
        %v324 = vld [vmem:[%s305 + $0x40] sm:$0x7]
        %v325 = vld [vmem:[%s305 + $0x40] sm:$0xf]
        %v326 = vld [vmem:[%s305 + $0x44] sm:$0x1]
        %v327 = vld [vmem:[%s305 + $0x4] sm:$0xe]
        %v345 = vunpack.c.l.b16 %v308
        %v346 = vunpack.c.l.b16 %v309
        %v347 = vunpack.c.l.b16 %v310
        %v348 = vunpack.c.l.b16 %v311
        %v349 = vunpack.c.l.b16 %v312
        %v350 = vunpack.c.l.b16 %v313
        %v351 = vunpack.c.l.b16 %v314
        %v352 = vunpack.c.l.b16 %v315
        %v353 = vunpack.c.l.b16 %v316
        %v354 = vunpack.c.l.b16 %v317
        %v355 = vunpack.c.l.b16 %v318
        %v356 = vunpack.c.l.b16 %v319
        %v357 = vunpack.c.l.b16 %v320
        %v358 = vunpack.c.l.b16 %v321
        %v359 = vunpack.c.l.b16 %v322
        %v360 = vunpack.c.l.b16 %v323
        %v361 = vunpack.c.l.b16 %v324
        %v362 = vpack.c.b16 %v346, %v345
        %v363 = vpack.c.b16 %v348, %v347
        %v364 = vpack.c.b16 %v350, %v349
        %v365 = vpack.c.b16 %v352, %v351
        %v366 = vpack.c.b16 %v354, %v353
        %v367 = vpack.c.b16 %v356, %v355
        %v368 = vpack.c.b16 %v358, %v357
        %v369 = vpack.c.b16 %v360, %v359
        %v370 = vpack.c.b16 %v361, %v361
        %v372 = vunpack.c.l.b16 %v325
        %v373 = vpack.c.b16 %v372, %v372
        %vm374 = vsmask.f32 7424
        %v376 = vshrl.u32 %v362, 16
        %v378 = vshll.u32 %v362, 16
        %v380 = vrot.slane %v378, 1
        %v381 = vor.u32 %v376, %v380
        %v383 = vshll.u32 %v363, 16
        %v385 = vrot.slane %v383, 1
        %v386 = vsel %vm374, %v381, %v385
        %v387 = vshrl.u32 %v363, 16
        %v389 = vor.u32 %v387, %v385
        %v391 = vshll.u32 %v364, 16
        %v393 = vrot.slane %v391, 1
        %v394 = vsel %vm374, %v389, %v393
        %v395 = vshrl.u32 %v364, 16
        %v397 = vor.u32 %v395, %v393
        %v399 = vshll.u32 %v365, 16
        %v401 = vrot.slane %v399, 1
        %v402 = vsel %vm374, %v397, %v401
        %v403 = vshrl.u32 %v365, 16
        %v405 = vor.u32 %v403, %v401
        %v407 = vshll.u32 %v366, 16
        %v409 = vrot.slane %v407, 1
        %v410 = vsel %vm374, %v405, %v409
        %v411 = vshrl.u32 %v366, 16
        %v413 = vor.u32 %v411, %v409
        %v415 = vshll.u32 %v367, 16
        %v417 = vrot.slane %v415, 1
        %v418 = vsel %vm374, %v413, %v417
        %v419 = vshrl.u32 %v367, 16
        %v421 = vor.u32 %v419, %v417
        %v423 = vshll.u32 %v368, 16
        %v425 = vrot.slane %v423, 1
        %v426 = vsel %vm374, %v421, %v425
        %v427 = vshrl.u32 %v368, 16
        %v429 = vor.u32 %v427, %v425
        %v431 = vshll.u32 %v369, 16
        %v433 = vrot.slane %v431, 1
        %v434 = vsel %vm374, %v429, %v433
        %v435 = vshrl.u32 %v369, 16
        %v437 = vor.u32 %v435, %v433
        %v439 = vshll.u32 %v373, 16
        %v441 = vrot.slane %v439, 1
        %v442 = vsel %vm374, %v437, %v441
        %v443 = vshrl.u32 %v373, 16
        %v445 = vor.u32 %v443, %v441
        %446 = vrot.lane.b32.xlu0 %v386, 8
        %v447 = vpop.permute.xlu0 %446
        %448 = vrot.lane.b32.xlu0 %v394, 8
        %v449 = vpop.permute.xlu0 %448
        %450 = vrot.lane.b32.xlu0 %v402, 8
        %v451 = vpop.permute.xlu0 %450
        %452 = vrot.lane.b32.xlu0 %v410, 8
        %v453 = vpop.permute.xlu0 %452
        %454 = vrot.lane.b32.xlu0 %v418, 8
        %v455 = vpop.permute.xlu0 %454
        %456 = vrot.lane.b32.xlu0 %v426, 8
        %v457 = vpop.permute.xlu0 %456
        %458 = vrot.lane.b32.xlu0 %v434, 8
        %v459 = vpop.permute.xlu0 %458
        %460 = vrot.lane.b32.xlu0 %v442, 8
        %v461 = vpop.permute.xlu0 %460
        %462 = vrot.lane.b32.xlu0 %v445, 8
        %v463 = vpop.permute.xlu0 %462
        %v464 = vpack.c.b16 %v347, %v346
        %v465 = vpack.c.b16 %v349, %v348
        %v466 = vpack.c.b16 %v351, %v350
        %v467 = vpack.c.b16 %v353, %v352
        %v468 = vpack.c.b16 %v355, %v354
        %v469 = vpack.c.b16 %v357, %v356
        %v470 = vpack.c.b16 %v359, %v358
        %v471 = vpack.c.b16 %v372, %v360
        %vm472 = vcmask 1042432
        %v473 = vrot.slane %v464, 5
        %v474 = vrot.slane %v465, 5
        %v475 = vsel %vm472, %v473, %v474
        %v476 = vrot.slane %v466, 5
        %v477 = vsel %vm472, %v474, %v476
        %v478 = vrot.slane %v467, 5
        %v479 = vsel %vm472, %v476, %v478
        %v480 = vrot.slane %v468, 5
        %v481 = vsel %vm472, %v478, %v480
        %v482 = vrot.slane %v469, 5
        %v483 = vsel %vm472, %v480, %v482
        %v484 = vrot.slane %v470, 5
        %v485 = vsel %vm472, %v482, %v484
        %v486 = vrot.slane %v471, 5
        %v487 = vsel %vm472, %v484, %v486
        %488 = vrot.lane.b32.xlu0 %v473, 16
        %v489 = vpop.permute.xlu0 %488
        %490 = vrot.lane.b32.xlu0 %v475, 16
        %v491 = vpop.permute.xlu0 %490
        %492 = vrot.lane.b32.xlu0 %v477, 16
        %v493 = vpop.permute.xlu0 %492
        %494 = vrot.lane.b32.xlu0 %v479, 16
        %v495 = vpop.permute.xlu0 %494
        %496 = vrot.lane.b32.xlu0 %v481, 16
        %v497 = vpop.permute.xlu0 %496
        %498 = vrot.lane.b32.xlu0 %v483, 16
        %v499 = vpop.permute.xlu0 %498
        %500 = vrot.lane.b32.xlu0 %v485, 16
        %v501 = vpop.permute.xlu0 %500
        %502 = vrot.lane.b32.xlu0 %v487, 16
        %v503 = vpop.permute.xlu0 %502
        %504 = vrot.lane.b32.xlu0 %v486, 16
        %v505 = vpop.permute.xlu0 %504
        %v507 = vunpack.c.l.b16 %v326
        %v508 = vpack.c.b16 %v507, %v507
        %vm509 = vsmask.f32 2304
        %v511 = vshrl.u32 %v464, 16
        %v513 = vrot.slane %v511, 5
        %v514 = vshll.u32 %v464, 16
        %v516 = vrot.slane %v514, 6
        %v517 = vor.u32 %v513, %v516
        %v519 = vshrl.u32 %v465, 16
        %v521 = vrot.slane %v519, 5
        %v522 = vshll.u32 %v465, 16
        %v524 = vrot.slane %v522, 6
        %v525 = vor.u32 %v521, %v524
        %v526 = vsel %vm509, %v517, %v525
        %v528 = vshrl.u32 %v466, 16
        %v530 = vrot.slane %v528, 5
        %v531 = vshll.u32 %v466, 16
        %v533 = vrot.slane %v531, 6
        %v534 = vor.u32 %v530, %v533
        %v535 = vsel %vm509, %v525, %v534
        %v537 = vshrl.u32 %v467, 16
        %v539 = vrot.slane %v537, 5
        %v540 = vshll.u32 %v467, 16
        %v542 = vrot.slane %v540, 6
        %v543 = vor.u32 %v539, %v542
        %v544 = vsel %vm509, %v534, %v543
        %v546 = vshrl.u32 %v468, 16
        %v548 = vrot.slane %v546, 5
        %v549 = vshll.u32 %v468, 16
        %v551 = vrot.slane %v549, 6
        %v552 = vor.u32 %v548, %v551
        %v553 = vsel %vm509, %v543, %v552
        %v555 = vshrl.u32 %v469, 16
        %v557 = vrot.slane %v555, 5
        %v558 = vshll.u32 %v469, 16
        %v560 = vrot.slane %v558, 6
        %v561 = vor.u32 %v557, %v560
        %v562 = vsel %vm509, %v552, %v561
        %v564 = vshrl.u32 %v470, 16
        %v566 = vrot.slane %v564, 5
        %v567 = vshll.u32 %v470, 16
        %v569 = vrot.slane %v567, 6
        %v570 = vor.u32 %v566, %v569
        %v571 = vsel %vm509, %v561, %v570
        %v573 = vshrl.u32 %v471, 16
        %v575 = vrot.slane %v573, 5
        %v576 = vshll.u32 %v471, 16
        %v578 = vrot.slane %v576, 6
        %v579 = vor.u32 %v575, %v578
        %v580 = vsel %vm509, %v570, %v579
        %v582 = vshll.u32 %v508, 16
        %v584 = vrot.slane %v582, 6
        %v585 = vsel %vm509, %v579, %v584
        %586 = vrot.lane.b32.xlu0 %v517, 24
        %v587 = vpop.permute.xlu0 %586
        %588 = vrot.lane.b32.xlu0 %v526, 24
        %v589 = vpop.permute.xlu0 %588
        %590 = vrot.lane.b32.xlu0 %v535, 24
        %v591 = vpop.permute.xlu0 %590
        %592 = vrot.lane.b32.xlu0 %v544, 24
        %v593 = vpop.permute.xlu0 %592
        %594 = vrot.lane.b32.xlu0 %v553, 24
        %v595 = vpop.permute.xlu0 %594
        %596 = vrot.lane.b32.xlu0 %v562, 24
        %v597 = vpop.permute.xlu0 %596
        %598 = vrot.lane.b32.xlu0 %v571, 24
        %v599 = vpop.permute.xlu0 %598
        %600 = vrot.lane.b32.xlu0 %v580, 24
        %v601 = vpop.permute.xlu0 %600
        %602 = vrot.lane.b32.xlu0 %v585, 24
        %v603 = vpop.permute.xlu0 %602
        %v605 = vunpack.c.l.b16 %v327
        %v606 = vpack.c.b16 %v347, %v605
        %vm607 = vcmask 1041408
        %v608 = vrot.slane %v606, 6
        %v609 = vrot.slane %v465, 6
        %v610 = vsel %vm607, %v608, %v609
        %v611 = vrot.slane %v466, 6
        %v612 = vsel %vm607, %v609, %v611
        %v613 = vrot.slane %v467, 6
        %v614 = vsel %vm607, %v611, %v613
        %v615 = vrot.slane %v468, 6
        %v616 = vsel %vm607, %v613, %v615
        %v617 = vrot.slane %v469, 6
        %v618 = vsel %vm607, %v615, %v617
        %v619 = vrot.slane %v470, 6
        %v620 = vsel %vm607, %v617, %v619
        %v621 = vrot.slane %v471, 6
        %v622 = vsel %vm607, %v619, %v621
        %v623 = vrot.slane %v508, 6
        %v624 = vsel %vm607, %v621, %v623
        %625 = vrot.lane.b32.xlu0 %v608, 32
        %v626 = vpop.permute.xlu0 %625
        %627 = vrot.lane.b32.xlu0 %v610, 32
        %v628 = vpop.permute.xlu0 %627
        %629 = vrot.lane.b32.xlu0 %v612, 32
        %v630 = vpop.permute.xlu0 %629
        %631 = vrot.lane.b32.xlu0 %v614, 32
        %v632 = vpop.permute.xlu0 %631
        %633 = vrot.lane.b32.xlu0 %v616, 32
        %v634 = vpop.permute.xlu0 %633
        %635 = vrot.lane.b32.xlu0 %v618, 32
        %v636 = vpop.permute.xlu0 %635
        %637 = vrot.lane.b32.xlu0 %v620, 32
        %v638 = vpop.permute.xlu0 %637
        %639 = vrot.lane.b32.xlu0 %v622, 32
        %v640 = vpop.permute.xlu0 %639
        %641 = vrot.lane.b32.xlu0 %v624, 32
        %v642 = vpop.permute.xlu0 %641
        %vm643 = vcmask 64512
        %v645 = vsel %vm643, %v362, %v447
        %v647 = vsel %vm643, %v363, %v449
        %v649 = vsel %vm643, %v364, %v451
        %v651 = vsel %vm643, %v365, %v453
        %v653 = vsel %vm643, %v366, %v455
        %v655 = vsel %vm643, %v367, %v457
        %v657 = vsel %vm643, %v368, %v459
        %v659 = vsel %vm643, %v369, %v461
        %v662 = vsel %vm643, %v370, %v463
        %vm663 = vcmask 130048
        %v665 = vsel %vm663, %v645, %v489
        %v667 = vsel %vm663, %v647, %v491
        %v669 = vsel %vm663, %v649, %v493
        %v671 = vsel %vm663, %v651, %v495
        %v673 = vsel %vm663, %v653, %v497
        %v675 = vsel %vm663, %v655, %v499
        %v677 = vsel %vm663, %v657, %v501
        %v679 = vsel %vm663, %v659, %v503
        %v681 = vsel %vm663, %v662, %v505
        %vm682 = vcmask 195584
        %v684 = vsel %vm682, %v665, %v587
        %v686 = vsel %vm682, %v667, %v589
        %v688 = vsel %vm682, %v669, %v591
        %v690 = vsel %vm682, %v671, %v593
        %v692 = vsel %vm682, %v673, %v595
        %v694 = vsel %vm682, %v675, %v597
        %v696 = vsel %vm682, %v677, %v599
        %v698 = vsel %vm682, %v679, %v601
        %v700 = vsel %vm682, %v681, %v603
        %vm701 = vcmask 261120
        %v703 = vsel %vm701, %v684, %v626
        %v705 = vsel %vm701, %v686, %v628
        %v707 = vsel %vm701, %v688, %v630
        %v709 = vsel %vm701, %v690, %v632
        %v711 = vsel %vm701, %v692, %v634
        %v713 = vsel %vm701, %v694, %v636
        %v715 = vsel %vm701, %v696, %v638
        %v717 = vsel %vm701, %v698, %v640
        %v719 = vsel %vm701, %v700, %v642
        %vm729 = vcmask 1040384
        %v730 = vrot.slane %v703, 7
        %v731 = vrot.slane %v705, 7
        %v732 = vsel %vm729, %v730, %v731
        %v733 = vrot.slane %v707, 7
        %v734 = vsel %vm729, %v731, %v733
        %v735 = vrot.slane %v709, 7
        %v736 = vsel %vm729, %v733, %v735
        %v737 = vrot.slane %v711, 7
        %v738 = vsel %vm729, %v735, %v737
        %v739 = vrot.slane %v713, 7
        %v740 = vsel %vm729, %v737, %v739
        %v741 = vrot.slane %v715, 7
        %v742 = vsel %vm729, %v739, %v741
        %v743 = vrot.slane %v717, 7
        %v744 = vsel %vm729, %v741, %v743
        %v745 = vrot.slane %v719, 7
        %v746 = vsel %vm729, %v743, %v745
        %vm756 = vcmask 326660
        %757 = vst.msk [vmem:[#allocation2] sm:$0xf0] %vm756, %v730
        %vm758 = vcmask 326656
        %759 = vst.msk [vmem:[#allocation2 + $0x8] sm:$0xff] %vm758, %v732
        %760 = vst.msk [vmem:[#allocation2 + $0x10] sm:$0xff] %vm758, %v734
        %761 = vst.msk [vmem:[#allocation2 + $0x18] sm:$0xff] %vm758, %v736
        %762 = vst.msk [vmem:[#allocation2 + $0x20] sm:$0xff] %vm758, %v738
        %763 = vst.msk [vmem:[#allocation2 + $0x28] sm:$0xff] %vm758, %v740
        %764 = vst.msk [vmem:[#allocation2 + $0x30] sm:$0xff] %vm758, %v742
        %765 = vst.msk [vmem:[#allocation2 + $0x38] sm:$0xff] %vm758, %v744
        %vm766 = vcmask 322560
        %767 = vst.msk [vmem:[#allocation2 + $0x40] sm:$0xf] %vm766, %v746
        %v768 = vld [vmem:[#allocation2] sm:$0xf0]
        %v769 = vld [vmem:[#allocation2 + $0x8] sm:$0xff]
        %v770 = vld [vmem:[#allocation2 + $0x10] sm:$0xff]
        %v771 = vld [vmem:[#allocation2 + $0x18] sm:$0xff]
        %v772 = vld [vmem:[#allocation2 + $0x20] sm:$0xf]
        %v773 = vld [vmem:[%s2] sm:$0xf]
        %v774 = vld [vmem:[%s2 + $0x4] sm:$0xf]
        %v775 = vld [vmem:[%s2 + $0x8] sm:$0xf]
        %v776 = vld [vmem:[%s2 + $0xc] sm:$0xf]
        %v777 = vld [vmem:[%s2 + $0x10] sm:$0xf]
        %v778 = vld [vmem:[#allocation2 + $0x8] sm:$0xf0]
        %v779 = vld [vmem:[#allocation2 + $0x20] sm:$0xff]
        %v780 = vld [vmem:[#allocation2 + $0x28] sm:$0xf]
        %s781 = scalar_lea.vmem %s2, 20
        %v782 = vld [vmem:[%s781] sm:$0xf]
        %v783 = vld [vmem:[%s781 + $0x4] sm:$0xf]
        %v784 = vld [vmem:[%s781 + $0x8] sm:$0xf]
        %v785 = vld [vmem:[%s781 + $0xc] sm:$0xf]
        %v786 = vld [vmem:[%s781 + $0x10] sm:$0xf]
        %vm792 = vcmask 1043456
        %v793 = vrot.slane %v778, 4
        %v794 = vrot.slane %v770, 4
        %v795 = vsel %vm792, %v793, %v794
        %v796 = vrot.slane %v771, 4
        %v797 = vsel %vm792, %v794, %v796
        %v798 = vrot.slane %v779, 4
        %v799 = vsel %vm792, %v796, %v798
        %v800 = vrot.slane %v780, 4
        %v801 = vsel %vm792, %v798, %v800
        %v807 = vunpack.c.l.b16 %v782
        %v808 = vunpack.c.l.b16 %v783
        %v809 = vunpack.c.l.b16 %v784
        %v810 = vunpack.c.l.b16 %v785
        %v811 = vunpack.c.l.b16 %v786
        %v812 = vpack.c.b16 %v808, %v807
        %v813 = vpack.c.b16 %v810, %v809
        %v814 = vpack.c.b16 %v811, %v811
        %v818 = vsel %vm758, %v795, 0
        %v821 = vsel %vm758, %v797, 0
        %v824 = vsel %vm758, %v799, 0
        %v827 = vsel %vm758, %v801, 0
        %vm829 = vcmask 1043456
        %v831 = vsel %vm829, %v814, 0
        %833 = vmatprep.subr.bf16.mxu0 0
        %834 = vmatpush1.bf16.msra.mxu0 %v812
        %835 = vmatprep.subr.bf16.mxu0 0
        %836 = vmatpush1.bf16.msra.mxu0 %v813
        %837 = vmatprep.subr.bf16.mxu0 0
        %838 = vmatpush1.bf16.msra.mxu0 %v831
        %839 = vmatprep.subr.bf16.mxu0 0
        %840 = vmatpush1.bf16.msra.mxu0 0
        %841 = vmatprep.subr.bf16.mxu0 0
        %842 = vmatpush1.bf16.msra.mxu0 0
        %843 = vmatprep.subr.bf16.mxu0 0
        %844 = vmatpush1.bf16.msra.mxu0 0
        %845 = vmatprep.subr.bf16.mxu0 0
        %846 = vmatpush1.bf16.msra.mxu0 0
        %847 = vmatprep.subr.bf16.mxu0 0
        %848 = vmatpush1.bf16.msra.mxu0 0
        %849 = vmatprep.subr.bf16.mxu0 0
        %850 = vmatpush1.bf16.msra.mxu0 0
        %851 = vmatprep.subr.bf16.mxu0 0
        %852 = vmatpush1.bf16.msra.mxu0 0
        %853 = vmatprep.subr.bf16.mxu0 0
        %854 = vmatpush1.bf16.msra.mxu0 0
        %855 = vmatprep.subr.bf16.mxu0 0
        %856 = vmatpush1.bf16.msra.mxu0 0
        %857 = vmatprep.subr.bf16.mxu0 0
        %858 = vmatpush1.bf16.msra.mxu0 0
        %859 = vmatprep.subr.bf16.mxu0 0
        %860 = vmatpush1.bf16.msra.mxu0 0
        %861 = vmatprep.subr.bf16.mxu0 0
        %862 = vmatpush1.bf16.msra.mxu0 0
        %863 = vmatprep.subr.bf16.mxu0 0
        %864 = vmatpush1.bf16.msra.mxu0 0
        %865 = vmatprep.mubr.bf16.mxu0 0
        %866 = vmatmul.mubr.bf16.gmra.mrb[0].mxu0 %v818
        %v867 = vpop.f32.mrb[0].mxu0
        %v868 = vadd.f32 0.0, %v867
        %v869 = vpop.f32.mrb[0].mxu0
        %v870 = vpop.f32.mrb[0].mxu0
        %v871 = vadd.f32 0.0, %v870
        %v872 = vpop.f32.mrb[0].mxu0
        %873 = vmatprep.mubr.bf16.mxu0 0
        %874 = vmatmul.mubr.bf16.gmra.mrb[0].mxu0 %v821
        %v875 = vpop.f32.mrb[0].mxu0
        %v876 = vadd.f32 0.0, %v875
        %v877 = vpop.f32.mrb[0].mxu0
        %v878 = vpop.f32.mrb[0].mxu0
        %v879 = vadd.f32 0.0, %v878
        %v880 = vpop.f32.mrb[0].mxu0
        %881 = vmatprep.mubr.bf16.mxu0 0
        %882 = vmatmul.mubr.bf16.gmra.mrb[0].mxu0 %v824
        %v883 = vpop.f32.mrb[0].mxu0
        %v884 = vadd.f32 0.0, %v883
        %v885 = vpop.f32.mrb[0].mxu0
        %v886 = vpop.f32.mrb[0].mxu0
        %v887 = vadd.f32 0.0, %v886
        %v888 = vpop.f32.mrb[0].mxu0
        %889 = vmatprep.mubr.bf16.mxu0 0
        %890 = vmatmul.mubr.bf16.gmra.mrb[0].mxu0 %v827
        %v891 = vpop.f32.mrb[0].mxu0
        %v892 = vadd.f32 0.0, %v891
        %v893 = vpop.f32.mrb[0].mxu0
        %v894 = vpop.f32.mrb[0].mxu0
        %v895 = vadd.f32 0.0, %v894
        %v896 = vpop.f32.mrb[0].mxu0
        %897 = vdwg.mxu0
        %v901 = vrot.slane %v768, 4
        %v902 = vrot.slane %v769, 4
        %v903 = vsel %vm792, %v901, %v902
        %v904 = vsel %vm792, %v902, %v794
        %v905 = vrot.slane %v772, 4
        %v906 = vsel %vm792, %v796, %v905
        %v912 = vunpack.c.l.b16 %v773
        %v913 = vunpack.c.l.b16 %v774
        %v914 = vunpack.c.l.b16 %v775
        %v915 = vunpack.c.l.b16 %v776
        %v916 = vunpack.c.l.b16 %v777
        %v917 = vpack.c.b16 %v913, %v912
        %v918 = vpack.c.b16 %v915, %v914
        %v919 = vpack.c.b16 %v916, %v916
        %v923 = vsel %vm758, %v903, 0
        %v926 = vsel %vm758, %v904, 0
        %v929 = vsel %vm758, %v906, 0
        %v932 = vsel %vm829, %v919, 0
        %934 = vmatprep.subr.bf16.mxu0 0
        %935 = vmatpush1.bf16.msra.mxu0 %v917
        %936 = vmatprep.subr.bf16.mxu0 0
        %937 = vmatpush1.bf16.msra.mxu0 %v918
        %938 = vmatprep.subr.bf16.mxu0 0
        %939 = vmatpush1.bf16.msra.mxu0 %v932
        %940 = vmatprep.subr.bf16.mxu0 0
        %941 = vmatpush1.bf16.msra.mxu0 0
        %942 = vmatprep.subr.bf16.mxu0 0
        %943 = vmatpush1.bf16.msra.mxu0 0
        %944 = vmatprep.subr.bf16.mxu0 0
        %945 = vmatpush1.bf16.msra.mxu0 0
        %946 = vmatprep.subr.bf16.mxu0 0
        %947 = vmatpush1.bf16.msra.mxu0 0
        %948 = vmatprep.subr.bf16.mxu0 0
        %949 = vmatpush1.bf16.msra.mxu0 0
        %950 = vmatprep.subr.bf16.mxu0 0
        %951 = vmatpush1.bf16.msra.mxu0 0
        %952 = vmatprep.subr.bf16.mxu0 0
        %953 = vmatpush1.bf16.msra.mxu0 0
        %954 = vmatprep.subr.bf16.mxu0 0
        %955 = vmatpush1.bf16.msra.mxu0 0
        %956 = vmatprep.subr.bf16.mxu0 0
        %957 = vmatpush1.bf16.msra.mxu0 0
        %958 = vmatprep.subr.bf16.mxu0 0
        %959 = vmatpush1.bf16.msra.mxu0 0
        %960 = vmatprep.subr.bf16.mxu0 0
        %961 = vmatpush1.bf16.msra.mxu0 0
        %962 = vmatprep.subr.bf16.mxu0 0
        %963 = vmatpush1.bf16.msra.mxu0 0
        %964 = vmatprep.subr.bf16.mxu0 0
        %965 = vmatpush1.bf16.msra.mxu0 0
        %966 = vmatprep.mubr.bf16.mxu0 0
        %967 = vmatmul.mubr.bf16.gmra.mrb[0].mxu0 %v923
        %v968 = vpop.f32.mrb[0].mxu0
        %v969 = vadd.f32 %v868, %v968
        %v970 = vpop.f32.mrb[0].mxu0
        %v971 = vpop.f32.mrb[0].mxu0
        %v972 = vadd.f32 %v871, %v971
        %v973 = vpop.f32.mrb[0].mxu0
        %974 = vmatprep.mubr.bf16.mxu0 0
        %975 = vmatmul.mubr.bf16.gmra.mrb[0].mxu0 %v926
        %v976 = vpop.f32.mrb[0].mxu0
        %v977 = vadd.f32 %v876, %v976
        %v978 = vpop.f32.mrb[0].mxu0
        %v979 = vpop.f32.mrb[0].mxu0
        %v980 = vadd.f32 %v879, %v979
        %v981 = vpop.f32.mrb[0].mxu0
        %982 = vmatprep.mubr.bf16.mxu0 0
        %983 = vmatmul.mubr.bf16.gmra.mrb[0].mxu0 %v821
        %v984 = vpop.f32.mrb[0].mxu0
        %v985 = vadd.f32 %v884, %v984
        %v986 = vpop.f32.mrb[0].mxu0
        %v987 = vpop.f32.mrb[0].mxu0
        %v988 = vadd.f32 %v887, %v987
        %v989 = vpop.f32.mrb[0].mxu0
        %990 = vmatprep.mubr.bf16.mxu0 0
        %991 = vmatmul.mubr.bf16.gmra.mrb[0].mxu0 %v929
        %v992 = vpop.f32.mrb[0].mxu0
        %v993 = vadd.f32 %v892, %v992
        %v994 = vpop.f32.mrb[0].mxu0
        %v995 = vpop.f32.mrb[0].mxu0
        %v996 = vadd.f32 %v895, %v995
        %v997 = vpop.f32.mrb[0].mxu0
        %998 = vdwg.mxu0
        %v999 = vld [vmem:[#allocation2 + $0x10] sm:$0xf0]
        %v1000 = vld [vmem:[#allocation2 + $0x18] sm:$0xff]
        %v1001 = vld [vmem:[#allocation2 + $0x20] sm:$0xff]
        %v1002 = vld [vmem:[#allocation2 + $0x28] sm:$0xff]
        %v1003 = vld [vmem:[#allocation2 + $0x30] sm:$0xf]
        %s1004 = scalar_lea.vmem %s2, 40
        %v1005 = vld [vmem:[%s1004] sm:$0xf]
        %v1006 = vld [vmem:[%s1004 + $0x4] sm:$0xf]
        %v1007 = vld [vmem:[%s1004 + $0x8] sm:$0xf]
        %v1008 = vld [vmem:[%s1004 + $0xc] sm:$0xf]
        %v1009 = vld [vmem:[%s1004 + $0x10] sm:$0xf]
        %v1015 = vrot.slane %v999, 4
        %v1016 = vrot.slane %v1000, 4
        %v1017 = vsel %vm792, %v1015, %v1016
        %v1018 = vrot.slane %v1001, 4
        %v1019 = vsel %vm792, %v1016, %v1018
        %v1020 = vrot.slane %v1002, 4
        %v1021 = vsel %vm792, %v1018, %v1020
        %v1022 = vrot.slane %v1003, 4
        %v1023 = vsel %vm792, %v1020, %v1022
        %v1029 = vunpack.c.l.b16 %v1005
        %v1030 = vunpack.c.l.b16 %v1006
        %v1031 = vunpack.c.l.b16 %v1007
        %v1032 = vunpack.c.l.b16 %v1008
        %v1033 = vunpack.c.l.b16 %v1009
        %v1034 = vpack.c.b16 %v1030, %v1029
        %v1035 = vpack.c.b16 %v1032, %v1031
        %v1036 = vpack.c.b16 %v1033, %v1033
        %v1040 = vsel %vm758, %v1017, 0
        %v1043 = vsel %vm758, %v1019, 0
        %v1046 = vsel %vm758, %v1021, 0
        %v1049 = vsel %vm758, %v1023, 0
        %v1052 = vsel %vm829, %v1036, 0
        %1054 = vmatprep.subr.bf16.mxu0 0
        %1055 = vmatpush1.bf16.msra.mxu0 %v1034
        %1056 = vmatprep.subr.bf16.mxu0 0
        %1057 = vmatpush1.bf16.msra.mxu0 %v1035
        %1058 = vmatprep.subr.bf16.mxu0 0
        %1059 = vmatpush1.bf16.msra.mxu0 %v1052
        %1060 = vmatprep.subr.bf16.mxu0 0
        %1061 = vmatpush1.bf16.msra.mxu0 0
        %1062 = vmatprep.subr.bf16.mxu0 0
        %1063 = vmatpush1.bf16.msra.mxu0 0
        %1064 = vmatprep.subr.bf16.mxu0 0
        %1065 = vmatpush1.bf16.msra.mxu0 0
        %1066 = vmatprep.subr.bf16.mxu0 0
        %1067 = vmatpush1.bf16.msra.mxu0 0
        %1068 = vmatprep.subr.bf16.mxu0 0
        %1069 = vmatpush1.bf16.msra.mxu0 0
        %1070 = vmatprep.subr.bf16.mxu0 0
        %1071 = vmatpush1.bf16.msra.mxu0 0
        %1072 = vmatprep.subr.bf16.mxu0 0
        %1073 = vmatpush1.bf16.msra.mxu0 0
        %1074 = vmatprep.subr.bf16.mxu0 0
        %1075 = vmatpush1.bf16.msra.mxu0 0
        %1076 = vmatprep.subr.bf16.mxu0 0
        %1077 = vmatpush1.bf16.msra.mxu0 0
        %1078 = vmatprep.subr.bf16.mxu0 0
        %1079 = vmatpush1.bf16.msra.mxu0 0
        %1080 = vmatprep.subr.bf16.mxu0 0
        %1081 = vmatpush1.bf16.msra.mxu0 0
        %1082 = vmatprep.subr.bf16.mxu0 0
        %1083 = vmatpush1.bf16.msra.mxu0 0
        %1084 = vmatprep.subr.bf16.mxu0 0
        %1085 = vmatpush1.bf16.msra.mxu0 0
        %1086 = vmatprep.mubr.bf16.mxu0 0
        %1087 = vmatmul.mubr.bf16.gmra.mrb[0].mxu0 %v1040
        %v1088 = vpop.f32.mrb[0].mxu0
        %v1089 = vadd.f32 0.0, %v1088
        %v1090 = vpop.f32.mrb[0].mxu0
        %v1091 = vpop.f32.mrb[0].mxu0
        %v1092 = vadd.f32 0.0, %v1091
        %v1093 = vpop.f32.mrb[0].mxu0
        %1094 = vmatprep.mubr.bf16.mxu0 0
        %1095 = vmatmul.mubr.bf16.gmra.mrb[0].mxu0 %v1043
        %v1096 = vpop.f32.mrb[0].mxu0
        %v1097 = vadd.f32 0.0, %v1096
        %v1098 = vpop.f32.mrb[0].mxu0
        %v1099 = vpop.f32.mrb[0].mxu0
        %v1100 = vadd.f32 0.0, %v1099
        %v1101 = vpop.f32.mrb[0].mxu0
        %1102 = vmatprep.mubr.bf16.mxu0 0
        %1103 = vmatmul.mubr.bf16.gmra.mrb[0].mxu0 %v1046
        %v1104 = vpop.f32.mrb[0].mxu0
        %v1105 = vadd.f32 0.0, %v1104
        %v1106 = vpop.f32.mrb[0].mxu0
        %v1107 = vpop.f32.mrb[0].mxu0
        %v1108 = vadd.f32 0.0, %v1107
        %v1109 = vpop.f32.mrb[0].mxu0
        %1110 = vmatprep.mubr.bf16.mxu0 0
        %1111 = vmatmul.mubr.bf16.gmra.mrb[0].mxu0 %v1049
        %v1112 = vpop.f32.mrb[0].mxu0
        %v1113 = vadd.f32 0.0, %v1112
        %v1114 = vpop.f32.mrb[0].mxu0
        %v1115 = vpop.f32.mrb[0].mxu0
        %v1116 = vadd.f32 0.0, %v1115
        %v1117 = vpop.f32.mrb[0].mxu0
        %1118 = vdwg.mxu0
        %v1119 = vadd.f32 %v969, %v1089
        %v1120 = vadd.f32 %v972, %v1092
        %v1121 = vadd.f32 %v977, %v1097
        %v1122 = vadd.f32 %v980, %v1100
        %v1123 = vadd.f32 %v985, %v1105
        %v1124 = vadd.f32 %v988, %v1108
        %v1125 = vadd.f32 %v993, %v1113
        %v1126 = vadd.f32 %v996, %v1116
        %v1127 = vld [vmem:[#allocation2 + $0x18] sm:$0xf0]
        %v1128 = vld [vmem:[#allocation2 + $0x20] sm:$0xff]
        %v1129 = vld [vmem:[#allocation2 + $0x28] sm:$0xff]
        %v1130 = vld [vmem:[#allocation2 + $0x30] sm:$0xff]
        %v1131 = vld [vmem:[#allocation2 + $0x38] sm:$0xf]
        %s1132 = scalar_lea.vmem %s2, 60
        %v1133 = vld [vmem:[%s1132] sm:$0xf]
        %v1134 = vld [vmem:[%s1132 + $0x4] sm:$0xf]
        %v1135 = vld [vmem:[%s1132 + $0x8] sm:$0xf]
        %v1136 = vld [vmem:[%s1132 + $0xc] sm:$0xf]
        %v1137 = vld [vmem:[%s1132 + $0x10] sm:$0xf]
        %v1143 = vrot.slane %v1127, 4
        %v1144 = vrot.slane %v1128, 4
        %v1145 = vsel %vm792, %v1143, %v1144
        %v1146 = vrot.slane %v1129, 4
        %v1147 = vsel %vm792, %v1144, %v1146
        %v1148 = vrot.slane %v1130, 4
        %v1149 = vsel %vm792, %v1146, %v1148
        %v1150 = vrot.slane %v1131, 4
        %v1151 = vsel %vm792, %v1148, %v1150
        %v1157 = vunpack.c.l.b16 %v1133
        %v1158 = vunpack.c.l.b16 %v1134
        %v1159 = vunpack.c.l.b16 %v1135
        %v1160 = vunpack.c.l.b16 %v1136
        %v1161 = vunpack.c.l.b16 %v1137
        %v1162 = vpack.c.b16 %v1158, %v1157
        %v1163 = vpack.c.b16 %v1160, %v1159
        %v1164 = vpack.c.b16 %v1161, %v1161
        %v1168 = vsel %vm758, %v1145, 0
        %v1171 = vsel %vm758, %v1147, 0
        %v1174 = vsel %vm758, %v1149, 0
        %v1177 = vsel %vm758, %v1151, 0
        %v1180 = vsel %vm829, %v1164, 0
        %1182 = vmatprep.subr.bf16.mxu0 0
        %1183 = vmatpush1.bf16.msra.mxu0 %v1162
        %1184 = vmatprep.subr.bf16.mxu0 0
        %1185 = vmatpush1.bf16.msra.mxu0 %v1163
        %1186 = vmatprep.subr.bf16.mxu0 0
        %1187 = vmatpush1.bf16.msra.mxu0 %v1180
        %1188 = vmatprep.subr.bf16.mxu0 0
        %1189 = vmatpush1.bf16.msra.mxu0 0
        %1190 = vmatprep.subr.bf16.mxu0 0
        %1191 = vmatpush1.bf16.msra.mxu0 0
        %1192 = vmatprep.subr.bf16.mxu0 0
        %1193 = vmatpush1.bf16.msra.mxu0 0
        %1194 = vmatprep.subr.bf16.mxu0 0
        %1195 = vmatpush1.bf16.msra.mxu0 0
        %1196 = vmatprep.subr.bf16.mxu0 0
        %1197 = vmatpush1.bf16.msra.mxu0 0
        %1198 = vmatprep.subr.bf16.mxu0 0
        %1199 = vmatpush1.bf16.msra.mxu0 0
        %1200 = vmatprep.subr.bf16.mxu0 0
        %1201 = vmatpush1.bf16.msra.mxu0 0
        %1202 = vmatprep.subr.bf16.mxu0 0
        %1203 = vmatpush1.bf16.msra.mxu0 0
        %1204 = vmatprep.subr.bf16.mxu0 0
        %1205 = vmatpush1.bf16.msra.mxu0 0
        %1206 = vmatprep.subr.bf16.mxu0 0
        %1207 = vmatpush1.bf16.msra.mxu0 0
        %1208 = vmatprep.subr.bf16.mxu0 0
        %1209 = vmatpush1.bf16.msra.mxu0 0
        %1210 = vmatprep.subr.bf16.mxu0 0
        %1211 = vmatpush1.bf16.msra.mxu0 0
        %1212 = vmatprep.subr.bf16.mxu0 0
        %1213 = vmatpush1.bf16.msra.mxu0 0
        %1214 = vmatprep.mubr.bf16.mxu0 0
        %1215 = vmatmul.mubr.bf16.gmra.mrb[0].mxu0 %v1168
        %v1216 = vpop.f32.mrb[0].mxu0
        %v1217 = vadd.f32 0.0, %v1216
        %v1218 = vpop.f32.mrb[0].mxu0
        %v1219 = vpop.f32.mrb[0].mxu0
        %v1220 = vadd.f32 0.0, %v1219
        %v1221 = vpop.f32.mrb[0].mxu0
        %1222 = vmatprep.mubr.bf16.mxu0 0
        %1223 = vmatmul.mubr.bf16.gmra.mrb[0].mxu0 %v1171
        %v1224 = vpop.f32.mrb[0].mxu0
        %v1225 = vadd.f32 0.0, %v1224
        %v1226 = vpop.f32.mrb[0].mxu0
        %v1227 = vpop.f32.mrb[0].mxu0
        %v1228 = vadd.f32 0.0, %v1227
        %v1229 = vpop.f32.mrb[0].mxu0
        %1230 = vmatprep.mubr.bf16.mxu0 0
        %1231 = vmatmul.mubr.bf16.gmra.mrb[0].mxu0 %v1174
        %v1232 = vpop.f32.mrb[0].mxu0
        %v1233 = vadd.f32 0.0, %v1232
        %v1234 = vpop.f32.mrb[0].mxu0
        %v1235 = vpop.f32.mrb[0].mxu0
        %v1236 = vadd.f32 0.0, %v1235
        %v1237 = vpop.f32.mrb[0].mxu0
        %1238 = vmatprep.mubr.bf16.mxu0 0
        %1239 = vmatmul.mubr.bf16.gmra.mrb[0].mxu0 %v1177
        %v1240 = vpop.f32.mrb[0].mxu0
        %v1241 = vadd.f32 0.0, %v1240
        %v1242 = vpop.f32.mrb[0].mxu0
        %v1243 = vpop.f32.mrb[0].mxu0
        %v1244 = vadd.f32 0.0, %v1243
        %v1245 = vpop.f32.mrb[0].mxu0
        %1246 = vdwg.mxu0
        %v1247 = vadd.f32 %v1119, %v1217
        %v1248 = vadd.f32 %v1120, %v1220
        %v1249 = vadd.f32 %v1121, %v1225
        %v1250 = vadd.f32 %v1122, %v1228
        %v1251 = vadd.f32 %v1123, %v1233
        %v1252 = vadd.f32 %v1124, %v1236
        %v1253 = vadd.f32 %v1125, %v1241
        %v1254 = vadd.f32 %v1126, %v1244
        %v1255 = vld [vmem:[#allocation2 + $0x20] sm:$0xf0]
        %v1256 = vld [vmem:[#allocation2 + $0x28] sm:$0xff]
        %v1257 = vld [vmem:[#allocation2 + $0x30] sm:$0xff]
        %v1258 = vld [vmem:[#allocation2 + $0x38] sm:$0xff]
        %v1259 = vld [vmem:[#allocation2 + $0x40] sm:$0xf]
        %s1260 = scalar_lea.vmem %s2, 80
        %v1261 = vld [vmem:[%s1260] sm:$0xf]
        %v1262 = vld [vmem:[%s1260 + $0x4] sm:$0xf]
        %v1263 = vld [vmem:[%s1260 + $0x8] sm:$0xf]
        %v1264 = vld [vmem:[%s1260 + $0xc] sm:$0xf]
        %v1265 = vld [vmem:[%s1260 + $0x10] sm:$0xf]
        %v1271 = vrot.slane %v1255, 4
        %v1272 = vrot.slane %v1256, 4
        %v1273 = vsel %vm792, %v1271, %v1272
        %v1274 = vrot.slane %v1257, 4
        %v1275 = vsel %vm792, %v1272, %v1274
        %v1276 = vrot.slane %v1258, 4
        %v1277 = vsel %vm792, %v1274, %v1276
        %v1278 = vrot.slane %v1259, 4
        %v1279 = vsel %vm792, %v1276, %v1278
        %v1285 = vunpack.c.l.b16 %v1261
        %v1286 = vunpack.c.l.b16 %v1262
        %v1287 = vunpack.c.l.b16 %v1263
        %v1288 = vunpack.c.l.b16 %v1264
        %v1289 = vunpack.c.l.b16 %v1265
        %v1290 = vpack.c.b16 %v1286, %v1285
        %v1291 = vpack.c.b16 %v1288, %v1287
        %v1292 = vpack.c.b16 %v1289, %v1289
        %v1296 = vsel %vm758, %v1273, 0
        %v1299 = vsel %vm758, %v1275, 0
        %v1302 = vsel %vm758, %v1277, 0
        %v1305 = vsel %vm758, %v1279, 0
        %v1308 = vsel %vm829, %v1292, 0
        %1310 = vmatprep.subr.bf16.mxu0 0
        %1311 = vmatpush1.bf16.msra.mxu0 %v1290
        %1312 = vmatprep.subr.bf16.mxu0 0
        %1313 = vmatpush1.bf16.msra.mxu0 %v1291
        %1314 = vmatprep.subr.bf16.mxu0 0
        %1315 = vmatpush1.bf16.msra.mxu0 %v1308
        %1316 = vmatprep.subr.bf16.mxu0 0
        %1317 = vmatpush1.bf16.msra.mxu0 0
        %1318 = vmatprep.subr.bf16.mxu0 0
        %1319 = vmatpush1.bf16.msra.mxu0 0
        %1320 = vmatprep.subr.bf16.mxu0 0
        %1321 = vmatpush1.bf16.msra.mxu0 0
        %1322 = vmatprep.subr.bf16.mxu0 0
        %1323 = vmatpush1.bf16.msra.mxu0 0
        %1324 = vmatprep.subr.bf16.mxu0 0
        %1325 = vmatpush1.bf16.msra.mxu0 0
        %1326 = vmatprep.subr.bf16.mxu0 0
        %1327 = vmatpush1.bf16.msra.mxu0 0
        %1328 = vmatprep.subr.bf16.mxu0 0
        %1329 = vmatpush1.bf16.msra.mxu0 0
        %1330 = vmatprep.subr.bf16.mxu0 0
        %1331 = vmatpush1.bf16.msra.mxu0 0
        %1332 = vmatprep.subr.bf16.mxu0 0
        %1333 = vmatpush1.bf16.msra.mxu0 0
        %1334 = vmatprep.subr.bf16.mxu0 0
        %1335 = vmatpush1.bf16.msra.mxu0 0
        %1336 = vmatprep.subr.bf16.mxu0 0
        %1337 = vmatpush1.bf16.msra.mxu0 0
        %1338 = vmatprep.subr.bf16.mxu0 0
        %1339 = vmatpush1.bf16.msra.mxu0 0
        %1340 = vmatprep.subr.bf16.mxu0 0
        %1341 = vmatpush1.bf16.msra.mxu0 0
        %1342 = vmatprep.mubr.bf16.mxu0 0
        %1343 = vmatmul.mubr.bf16.gmra.mrb[0].mxu0 %v1296
        %v1344 = vpop.f32.mrb[0].mxu0
        %v1345 = vadd.f32 0.0, %v1344
        %v1346 = vpop.f32.mrb[0].mxu0
        %v1347 = vpop.f32.mrb[0].mxu0
        %v1348 = vadd.f32 0.0, %v1347
        %v1349 = vpop.f32.mrb[0].mxu0
        %1350 = vmatprep.mubr.bf16.mxu0 0
        %1351 = vmatmul.mubr.bf16.gmra.mrb[0].mxu0 %v1299
        %v1352 = vpop.f32.mrb[0].mxu0
        %v1353 = vadd.f32 0.0, %v1352
        %v1354 = vpop.f32.mrb[0].mxu0
        %v1355 = vpop.f32.mrb[0].mxu0
        %v1356 = vadd.f32 0.0, %v1355
        %v1357 = vpop.f32.mrb[0].mxu0
        %1358 = vmatprep.mubr.bf16.mxu0 0
        %1359 = vmatmul.mubr.bf16.gmra.mrb[0].mxu0 %v1302
        %v1360 = vpop.f32.mrb[0].mxu0
        %v1361 = vadd.f32 0.0, %v1360
        %v1362 = vpop.f32.mrb[0].mxu0
        %v1363 = vpop.f32.mrb[0].mxu0
        %v1364 = vadd.f32 0.0, %v1363
        %v1365 = vpop.f32.mrb[0].mxu0
        %1366 = vmatprep.mubr.bf16.mxu0 0
        %1367 = vmatmul.mubr.bf16.gmra.mrb[0].mxu0 %v1305
        %v1368 = vpop.f32.mrb[0].mxu0
        %v1369 = vadd.f32 0.0, %v1368
        %v1370 = vpop.f32.mrb[0].mxu0
        %v1371 = vpop.f32.mrb[0].mxu0
        %v1372 = vadd.f32 0.0, %v1371
        %v1373 = vpop.f32.mrb[0].mxu0
        %1374 = vdwg.mxu0
        %v1375 = vadd.f32 %v1247, %v1345
        %v1376 = vadd.f32 %v1248, %v1348
        %v1377 = vadd.f32 %v1249, %v1353
        %v1378 = vadd.f32 %v1250, %v1356
        %v1379 = vadd.f32 %v1251, %v1361
        %v1380 = vadd.f32 %v1252, %v1364
        %v1381 = vadd.f32 %v1253, %v1369
        %v1382 = vadd.f32 %v1254, %v1372
        %v1383 = vld [vmem:[%s3] sm:$0x1]
        %v1385 = vlaneseq
        %v1386 = vshrl.u32 %v1385, 7
        %v1387 = vsub.s32 0, %v1386
        %v1388 = vrot.slane %v1383, %v1387
        %v1390 = vadd.f32 %v1375, %v1388
        %v1391 = vadd.f32 %v1376, %v1388
        %v1392 = vadd.f32 %v1377, %v1388
        %v1393 = vadd.f32 %v1378, %v1388
        %v1394 = vadd.f32 %v1379, %v1388
        %v1395 = vadd.f32 %v1380, %v1388
        %v1396 = vadd.f32 %v1381, %v1388
        %v1397 = vadd.f32 %v1382, %v1388
        %v1398 = vmul.f32 %v1390, 0.5
        %v1399 = vmul.f32 %v1391, 0.5
        %v1400 = vmul.f32 %v1392, 0.5
        %v1401 = vmul.f32 %v1393, 0.5
        %v1402 = vmul.f32 %v1394, 0.5
        %v1403 = vmul.f32 %v1395, 0.5
        %v1404 = vmul.f32 %v1396, 0.5
        %v1405 = vmul.f32 %v1397, 0.5
        %v1406 = vmul.f32 %v1390, 0.044715
        %v1407 = vmul.f32 %v1391, 0.044715
        %v1408 = vmul.f32 %v1392, 0.044715
        %v1409 = vmul.f32 %v1393, 0.044715
        %v1410 = vmul.f32 %v1394, 0.044715
        %v1411 = vmul.f32 %v1395, 0.044715
        %v1412 = vmul.f32 %v1396, 0.044715
        %v1413 = vmul.f32 %v1397, 0.044715
        %v1414 = vmul.f32 %v1406, %v1390
        %v1415 = vmul.f32 %v1407, %v1391
        %v1416 = vmul.f32 %v1408, %v1392
        %v1417 = vmul.f32 %v1409, %v1393
        %v1418 = vmul.f32 %v1410, %v1394
        %v1419 = vmul.f32 %v1411, %v1395
        %v1420 = vmul.f32 %v1412, %v1396
        %v1421 = vmul.f32 %v1413, %v1397
        %v1422 = vmul.f32 %v1414, %v1390
        %v1423 = vmul.f32 %v1415, %v1391
        %v1424 = vmul.f32 %v1416, %v1392
        %v1425 = vmul.f32 %v1417, %v1393
        %v1426 = vmul.f32 %v1418, %v1394
        %v1427 = vmul.f32 %v1419, %v1395
        %v1428 = vmul.f32 %v1420, %v1396
        %v1429 = vmul.f32 %v1421, %v1397
        %v1430 = vadd.f32 %v1390, %v1422
        %v1431 = vadd.f32 %v1391, %v1423
        %v1432 = vadd.f32 %v1392, %v1424
        %v1433 = vadd.f32 %v1393, %v1425
        %v1434 = vadd.f32 %v1394, %v1426
        %v1435 = vadd.f32 %v1395, %v1427
        %v1436 = vadd.f32 %v1396, %v1428
        %v1437 = vadd.f32 %v1397, %v1429
        %v1438 = vmul.f32 %v1430, 0.7978846
        %v1439 = vmul.f32 %v1431, 0.7978846
        %v1440 = vmul.f32 %v1432, 0.7978846
        %v1441 = vmul.f32 %v1433, 0.7978846
        %v1442 = vmul.f32 %v1434, 0.7978846
        %v1443 = vmul.f32 %v1435, 0.7978846
        %v1444 = vmul.f32 %v1436, 0.7978846
        %v1445 = vmul.f32 %v1437, 0.7978846
        %v1446 = vtanh.pop %v1438
        %v1447 = vtanh.pop %v1439
        %v1448 = vtanh.pop %v1440
        %v1449 = vtanh.pop %v1441
        %v1450 = vtanh.pop %v1442
        %v1451 = vtanh.pop %v1443
        %v1452 = vtanh.pop %v1444
        %v1453 = vtanh.pop %v1445
        %v1454 = vadd.f32 %v1446, 1.0
        %v1455 = vadd.f32 %v1447, 1.0
        %v1456 = vadd.f32 %v1448, 1.0
        %v1457 = vadd.f32 %v1449, 1.0
        %v1458 = vadd.f32 %v1450, 1.0
        %v1459 = vadd.f32 %v1451, 1.0
        %v1460 = vadd.f32 %v1452, 1.0
        %v1461 = vadd.f32 %v1453, 1.0
        %v1462 = vmul.f32 %v1398, %v1454
        %v1463 = vmul.f32 %v1399, %v1455
        %v1464 = vmul.f32 %v1400, %v1456
        %v1465 = vmul.f32 %v1401, %v1457
        %v1466 = vmul.f32 %v1402, %v1458
        %v1467 = vmul.f32 %v1403, %v1459
        %v1468 = vmul.f32 %v1404, %v1460
        %v1469 = vmul.f32 %v1405, %v1461
        %v1470 = vld [vmem:[%s6] sm:$0xff]
        %v1471 = vld [vmem:[%s6 + $0x8] sm:$0xff]
        %v1472 = vld [vmem:[%s6 + $0x10] sm:$0xff]
        %v1473 = vld [vmem:[%s6 + $0x18] sm:$0xff]
        %v1474 = vld [vmem:[%s6 + $0x20] sm:$0xff]
        %v1475 = vld [vmem:[%s6 + $0x28] sm:$0xff]
        %v1476 = vld [vmem:[%s6 + $0x30] sm:$0xff]
        %v1477 = vld [vmem:[%s6 + $0x38] sm:$0xff]
        %v1478 = vstv %s307
        %v1479 = vmul.f32 %v1470, %v1478
        %v1480 = vmul.f32 %v1471, %v1478
        %v1481 = vmul.f32 %v1472, %v1478
        %v1482 = vmul.f32 %v1473, %v1478
        %v1483 = vmul.f32 %v1474, %v1478
        %v1484 = vmul.f32 %v1475, %v1478
        %v1485 = vmul.f32 %v1476, %v1478
        %v1486 = vmul.f32 %v1477, %v1478
        %1488 = vset.pattern.permute.xlu0 0
        %1489 = vperm.xlu0 %1488, %v1479
        %v1490 = vpop.permute.xlu0 %1489
        %1493 = vset.pattern.permute.xlu0 0
        %1494 = vperm.xlu0 %1493, %v1480
        %v1495 = vpop.permute.xlu0 %1494
        %1498 = vset.pattern.permute.xlu0 0
        %1499 = vperm.xlu0 %1498, %v1481
        %v1500 = vpop.permute.xlu0 %1499
        %1503 = vset.pattern.permute.xlu0 0
        %1504 = vperm.xlu0 %1503, %v1482
        %v1505 = vpop.permute.xlu0 %1504
        %1508 = vset.pattern.permute.xlu0 0
        %1509 = vperm.xlu0 %1508, %v1483
        %v1510 = vpop.permute.xlu0 %1509
        %1513 = vset.pattern.permute.xlu0 0
        %1514 = vperm.xlu0 %1513, %v1484
        %v1515 = vpop.permute.xlu0 %1514
        %1518 = vset.pattern.permute.xlu0 0
        %1519 = vperm.xlu0 %1518, %v1485
        %v1520 = vpop.permute.xlu0 %1519
        %1523 = vset.pattern.permute.xlu0 0
        %1524 = vperm.xlu0 %1523, %v1486
        %v1525 = vpop.permute.xlu0 %1524
        %v1527 = vmul.f32 %v1462, %v1490
        %v1528 = vmul.f32 %v1463, %v1495
        %v1529 = vmul.f32 %v1464, %v1500
        %v1530 = vmul.f32 %v1465, %v1505
        %v1531 = vmul.f32 %v1466, %v1510
        %v1532 = vmul.f32 %v1467, %v1515
        %v1533 = vmul.f32 %v1468, %v1520
        %v1534 = vmul.f32 %v1469, %v1525
        %1535 = vst [vmem:[#allocation3] sm:$0xff] 0
        %1536 = vst [vmem:[#allocation3 + $0x8] sm:$0xff] 0
        %1537 = vst [vmem:[#allocation3 + $0x10] sm:$0xf] 0
        %1538 = vst [vmem:[#allocation3 + $0x30] sm:$0xf0] 0
        %1539 = vst [vmem:[#allocation3 + $0x38] sm:$0xff] 0
        %1540 = vst [vmem:[#allocation3 + $0x40] sm:$0xff] 0
        %v1541 = vpack.c.bf16 %v1528, %v1527
        %v1542 = vpack.c.bf16 %v1530, %v1529
        %v1543 = vpack.c.bf16 %v1532, %v1531
        %v1544 = vpack.c.bf16 %v1534, %v1533
        %v1549 = vrot.slane %v1541, 4
        %v1550 = vrot.slane %v1542, 4
        %v1551 = vsel %vm792, %v1549, %v1550
        %v1552 = vrot.slane %v1543, 4
        %v1553 = vsel %vm792, %v1550, %v1552
        %v1554 = vrot.slane %v1544, 4
        %v1555 = vsel %vm792, %v1552, %v1554
        %1561 = vst [vmem:[#allocation3 + $0x10] sm:$0xf0] %v1549
        %1562 = vst [vmem:[#allocation3 + $0x18] sm:$0xff] %v1551
        %1563 = vst [vmem:[#allocation3 + $0x20] sm:$0xff] %v1553
        %1564 = vst [vmem:[#allocation3 + $0x28] sm:$0xff] %v1555
        %1565 = vst [vmem:[#allocation3 + $0x30] sm:$0xf] %v1554
        %v1566 = vld [vmem:[#allocation3] sm:$0xf8]
        %v1567 = vld [vmem:[#allocation3 + $0x8] sm:$0xff]
        %v1568 = vld [vmem:[#allocation3 + $0x10] sm:$0xff]
        %v1569 = vld [vmem:[#allocation3 + $0x18] sm:$0xff]
        %v1570 = vld [vmem:[#allocation3 + $0x20] sm:$0xff]
        %v1571 = vld [vmem:[#allocation3 + $0x28] sm:$0xff]
        %v1572 = vld [vmem:[#allocation3 + $0x30] sm:$0xff]
        %v1573 = vld [vmem:[#allocation3 + $0x38] sm:$0xff]
        %v1574 = vld [vmem:[#allocation3 + $0x40] sm:$0x7]
        %v1575 = vld [vmem:[#allocation3 + $0x40] sm:$0xf]
        %v1576 = vld [vmem:[#allocation3] sm:$0xf0]
        %v1577 = vld [vmem:[#allocation3 + $0x40] sm:$0x1f]
        %v1578 = vld [vmem:[#allocation3] sm:$0xe0]
        %v1580 = vshrl.u32 %v1566, 16
        %v1582 = vshll.u32 %v1566, 16
        %v1584 = vrot.slane %v1582, 1
        %v1585 = vor.u32 %v1580, %v1584
        %v1587 = vshll.u32 %v1567, 16
        %v1589 = vrot.slane %v1587, 1
        %v1590 = vsel %vm374, %v1585, %v1589
        %v1591 = vshrl.u32 %v1567, 16
        %v1593 = vor.u32 %v1591, %v1589
        %v1595 = vshll.u32 %v1568, 16
        %v1597 = vrot.slane %v1595, 1
        %v1598 = vsel %vm374, %v1593, %v1597
        %v1599 = vshrl.u32 %v1568, 16
        %v1601 = vor.u32 %v1599, %v1597
        %v1603 = vshll.u32 %v1569, 16
        %v1605 = vrot.slane %v1603, 1
        %v1606 = vsel %vm374, %v1601, %v1605
        %v1607 = vshrl.u32 %v1569, 16
        %v1609 = vor.u32 %v1607, %v1605
        %v1611 = vshll.u32 %v1570, 16
        %v1613 = vrot.slane %v1611, 1
        %v1614 = vsel %vm374, %v1609, %v1613
        %v1615 = vshrl.u32 %v1570, 16
        %v1617 = vor.u32 %v1615, %v1613
        %v1619 = vshll.u32 %v1571, 16
        %v1621 = vrot.slane %v1619, 1
        %v1622 = vsel %vm374, %v1617, %v1621
        %v1623 = vshrl.u32 %v1571, 16
        %v1625 = vor.u32 %v1623, %v1621
        %v1627 = vshll.u32 %v1572, 16
        %v1629 = vrot.slane %v1627, 1
        %v1630 = vsel %vm374, %v1625, %v1629
        %v1631 = vshrl.u32 %v1572, 16
        %v1633 = vor.u32 %v1631, %v1629
        %v1635 = vshll.u32 %v1573, 16
        %v1637 = vrot.slane %v1635, 1
        %v1638 = vsel %vm374, %v1633, %v1637
        %v1639 = vshrl.u32 %v1573, 16
        %v1641 = vor.u32 %v1639, %v1637
        %v1643 = vshll.u32 %v1575, 16
        %v1645 = vrot.slane %v1643, 1
        %v1646 = vsel %vm374, %v1641, %v1645
        %v1647 = vshrl.u32 %v1575, 16
        %v1649 = vor.u32 %v1647, %v1645
        %vm1659 = vcmask 1046528
        %v1660 = vrot.slane %v1576, 1
        %v1661 = vrot.slane %v1567, 1
        %v1662 = vsel %vm1659, %v1660, %v1661
        %v1663 = vrot.slane %v1568, 1
        %v1664 = vsel %vm1659, %v1661, %v1663
        %v1665 = vrot.slane %v1569, 1
        %v1666 = vsel %vm1659, %v1663, %v1665
        %v1667 = vrot.slane %v1570, 1
        %v1668 = vsel %vm1659, %v1665, %v1667
        %v1669 = vrot.slane %v1571, 1
        %v1670 = vsel %vm1659, %v1667, %v1669
        %v1671 = vrot.slane %v1572, 1
        %v1672 = vsel %vm1659, %v1669, %v1671
        %v1673 = vrot.slane %v1573, 1
        %v1674 = vsel %vm1659, %v1671, %v1673
        %v1675 = vrot.slane %v1575, 1
        %v1676 = vsel %vm1659, %v1673, %v1675
        %vm1677 = vsmask.f32 6400
        %v1679 = vshrl.u32 %v1576, 16
        %v1681 = vrot.slane %v1679, 1
        %v1682 = vshll.u32 %v1576, 16
        %v1684 = vrot.slane %v1682, 2
        %v1685 = vor.u32 %v1681, %v1684
        %v1686 = vrot.slane %v1591, 1
        %v1687 = vrot.slane %v1587, 2
        %v1688 = vor.u32 %v1686, %v1687
        %v1689 = vsel %vm1677, %v1685, %v1688
        %v1690 = vrot.slane %v1599, 1
        %v1691 = vrot.slane %v1595, 2
        %v1692 = vor.u32 %v1690, %v1691
        %v1693 = vsel %vm1677, %v1688, %v1692
        %v1694 = vrot.slane %v1607, 1
        %v1695 = vrot.slane %v1603, 2
        %v1696 = vor.u32 %v1694, %v1695
        %v1697 = vsel %vm1677, %v1692, %v1696
        %v1698 = vrot.slane %v1615, 1
        %v1699 = vrot.slane %v1611, 2
        %v1700 = vor.u32 %v1698, %v1699
        %v1701 = vsel %vm1677, %v1696, %v1700
        %v1702 = vrot.slane %v1623, 1
        %v1703 = vrot.slane %v1619, 2
        %v1704 = vor.u32 %v1702, %v1703
        %v1705 = vsel %vm1677, %v1700, %v1704
        %v1706 = vrot.slane %v1631, 1
        %v1707 = vrot.slane %v1627, 2
        %v1708 = vor.u32 %v1706, %v1707
        %v1709 = vsel %vm1677, %v1704, %v1708
        %v1710 = vrot.slane %v1639, 1
        %v1711 = vrot.slane %v1635, 2
        %v1712 = vor.u32 %v1710, %v1711
        %v1713 = vsel %vm1677, %v1708, %v1712
        %v1715 = vshrl.u32 %v1577, 16
        %v1717 = vrot.slane %v1715, 1
        %v1718 = vshll.u32 %v1577, 16
        %v1720 = vrot.slane %v1718, 2
        %v1721 = vor.u32 %v1717, %v1720
        %v1722 = vsel %vm1677, %v1712, %v1721
        %vm1725 = vcmask 1045504
        %v1726 = vrot.slane %v1578, 2
        %v1727 = vrot.slane %v1567, 2
        %v1728 = vsel %vm1725, %v1726, %v1727
        %v1729 = vrot.slane %v1568, 2
        %v1730 = vsel %vm1725, %v1727, %v1729
        %v1731 = vrot.slane %v1569, 2
        %v1732 = vsel %vm1725, %v1729, %v1731
        %v1733 = vrot.slane %v1570, 2
        %v1734 = vsel %vm1725, %v1731, %v1733
        %v1735 = vrot.slane %v1571, 2
        %v1736 = vsel %vm1725, %v1733, %v1735
        %v1737 = vrot.slane %v1572, 2
        %v1738 = vsel %vm1725, %v1735, %v1737
        %v1739 = vrot.slane %v1573, 2
        %v1740 = vsel %vm1725, %v1737, %v1739
        %v1741 = vrot.slane %v1577, 2
        %v1742 = vsel %vm1725, %v1739, %v1741
        %v1745 = vrot.slane %v1566, 7
        %v1746 = vrot.slane %v1590, 7
        %v1747 = vrot.slane %v1662, 7
        %v1748 = vrot.slane %v1689, 7
        %v1749 = vrot.slane %v1728, 7
        %v1750 = vrot.slane %v1567, 7
        %v1751 = vsel %vm729, %v1745, %v1750
        %v1752 = vrot.slane %v1598, 7
        %v1753 = vsel %vm729, %v1746, %v1752
        %v1754 = vrot.slane %v1664, 7
        %v1755 = vsel %vm729, %v1747, %v1754
        %v1756 = vrot.slane %v1693, 7
        %v1757 = vsel %vm729, %v1748, %v1756
        %v1758 = vrot.slane %v1730, 7
        %v1759 = vsel %vm729, %v1749, %v1758
        %v1760 = vrot.slane %v1568, 7
        %v1761 = vsel %vm729, %v1750, %v1760
        %v1762 = vrot.slane %v1606, 7
        %v1763 = vsel %vm729, %v1752, %v1762
        %v1764 = vrot.slane %v1666, 7
        %v1765 = vsel %vm729, %v1754, %v1764
        %v1766 = vrot.slane %v1697, 7
        %v1767 = vsel %vm729, %v1756, %v1766
        %v1768 = vrot.slane %v1732, 7
        %v1769 = vsel %vm729, %v1758, %v1768
        %v1770 = vrot.slane %v1569, 7
        %v1771 = vsel %vm729, %v1760, %v1770
        %v1772 = vrot.slane %v1614, 7
        %v1773 = vsel %vm729, %v1762, %v1772
        %v1774 = vrot.slane %v1668, 7
        %v1775 = vsel %vm729, %v1764, %v1774
        %v1776 = vrot.slane %v1701, 7
        %v1777 = vsel %vm729, %v1766, %v1776
        %v1778 = vrot.slane %v1734, 7
        %v1779 = vsel %vm729, %v1768, %v1778
        %v1780 = vrot.slane %v1570, 7
        %v1781 = vsel %vm729, %v1770, %v1780
        %v1782 = vrot.slane %v1622, 7
        %v1783 = vsel %vm729, %v1772, %v1782
        %v1784 = vrot.slane %v1670, 7
        %v1785 = vsel %vm729, %v1774, %v1784
        %v1786 = vrot.slane %v1705, 7
        %v1787 = vsel %vm729, %v1776, %v1786
        %v1788 = vrot.slane %v1736, 7
        %v1789 = vsel %vm729, %v1778, %v1788
        %v1790 = vrot.slane %v1571, 7
        %v1791 = vsel %vm729, %v1780, %v1790
        %v1792 = vrot.slane %v1630, 7
        %v1793 = vsel %vm729, %v1782, %v1792
        %v1794 = vrot.slane %v1672, 7
        %v1795 = vsel %vm729, %v1784, %v1794
        %v1796 = vrot.slane %v1709, 7
        %v1797 = vsel %vm729, %v1786, %v1796
        %v1798 = vrot.slane %v1738, 7
        %v1799 = vsel %vm729, %v1788, %v1798
        %v1800 = vrot.slane %v1572, 7
        %v1801 = vsel %vm729, %v1790, %v1800
        %v1802 = vrot.slane %v1638, 7
        %v1803 = vsel %vm729, %v1792, %v1802
        %v1804 = vrot.slane %v1674, 7
        %v1805 = vsel %vm729, %v1794, %v1804
        %v1806 = vrot.slane %v1713, 7
        %v1807 = vsel %vm729, %v1796, %v1806
        %v1808 = vrot.slane %v1740, 7
        %v1809 = vsel %vm729, %v1798, %v1808
        %v1810 = vrot.slane %v1573, 7
        %v1811 = vsel %vm729, %v1800, %v1810
        %v1812 = vrot.slane %v1646, 7
        %v1813 = vsel %vm729, %v1802, %v1812
        %v1814 = vrot.slane %v1676, 7
        %v1815 = vsel %vm729, %v1804, %v1814
        %v1816 = vrot.slane %v1722, 7
        %v1817 = vsel %vm729, %v1806, %v1816
        %v1818 = vrot.slane %v1742, 7
        %v1819 = vsel %vm729, %v1808, %v1818
        %v1820 = vrot.slane %v1574, 7
        %v1821 = vsel %vm729, %v1810, %v1820
        %v1822 = vrot.slane %v1649, 7
        %v1823 = vsel %vm729, %v1812, %v1822
        %v1824 = vrot.slane %v1675, 7
        %v1825 = vsel %vm729, %v1814, %v1824
        %v1826 = vrot.slane %v1721, 7
        %v1827 = vsel %vm729, %v1816, %v1826
        %v1828 = vrot.slane %v1741, 7
        %v1829 = vsel %vm729, %v1818, %v1828
        %1875 = vst [vmem:[#allocation4] sm:$0xf0] %v1745
        %1876 = vst [vmem:[#allocation4 + $0x8] sm:$0xf0] %v1746
        %1877 = vst [vmem:[#allocation4 + $0x10] sm:$0xf0] %v1747
        %1878 = vst [vmem:[#allocation4 + $0x18] sm:$0xf0] %v1748
        %1879 = vst [vmem:[#allocation4 + $0x20] sm:$0xf0] %v1749
        %1880 = vst [vmem:[#allocation4 + $0x28] sm:$0xff] %v1751
        %1881 = vst [vmem:[#allocation4 + $0x30] sm:$0xff] %v1753
        %1882 = vst [vmem:[#allocation4 + $0x38] sm:$0xff] %v1755
        %1883 = vst [vmem:[#allocation4 + $0x40] sm:$0xff] %v1757
        %1884 = vst [vmem:[#allocation4 + $0x48] sm:$0xff] %v1759
        %1885 = vst [vmem:[#allocation4 + $0x50] sm:$0xff] %v1761
        %1886 = vst [vmem:[#allocation4 + $0x58] sm:$0xff] %v1763
        %1887 = vst [vmem:[#allocation4 + $0x60] sm:$0xff] %v1765
        %1888 = vst [vmem:[#allocation4 + $0x68] sm:$0xff] %v1767
        %1889 = vst [vmem:[#allocation4 + $0x70] sm:$0xff] %v1769
        %1890 = vst [vmem:[#allocation4 + $0x78] sm:$0xff] %v1771
        %1891 = vst [vmem:[#allocation4 + $0x80] sm:$0xff] %v1773
        %1892 = vst [vmem:[#allocation4 + $0x88] sm:$0xff] %v1775
        %1893 = vst [vmem:[#allocation4 + $0x90] sm:$0xff] %v1777
        %1894 = vst [vmem:[#allocation4 + $0x98] sm:$0xff] %v1779
        %1895 = vst [vmem:[#allocation4 + $0xa0] sm:$0xff] %v1781
        %1896 = vst [vmem:[#allocation4 + $0xa8] sm:$0xff] %v1783
        %1897 = vst [vmem:[#allocation4 + $0xb0] sm:$0xff] %v1785
        %1898 = vst [vmem:[#allocation4 + $0xb8] sm:$0xff] %v1787
        %1899 = vst [vmem:[#allocation4 + $0xc0] sm:$0xff] %v1789
        %1900 = vst [vmem:[#allocation4 + $0xc8] sm:$0xff] %v1791
        %1901 = vst [vmem:[#allocation4 + $0xd0] sm:$0xff] %v1793
        %1902 = vst [vmem:[#allocation4 + $0xd8] sm:$0xff] %v1795
        %1903 = vst [vmem:[#allocation4 + $0xe0] sm:$0xff] %v1797
        %1904 = vst [vmem:[#allocation4 + $0xe8] sm:$0xff] %v1799
        %1905 = vst [vmem:[#allocation4 + $0xf0] sm:$0xff] %v1801
        %1906 = vst [vmem:[#allocation4 + $0xf8] sm:$0xff] %v1803
        %1907 = vst [vmem:[#allocation4 + $0x100] sm:$0xff] %v1805
        %1908 = vst [vmem:[#allocation4 + $0x108] sm:$0xff] %v1807
        %1909 = vst [vmem:[#allocation4 + $0x110] sm:$0xff] %v1809
        %1910 = vst [vmem:[#allocation4 + $0x118] sm:$0xff] %v1811
        %1911 = vst [vmem:[#allocation4 + $0x120] sm:$0xff] %v1813
        %1912 = vst [vmem:[#allocation4 + $0x128] sm:$0xff] %v1815
        %1913 = vst [vmem:[#allocation4 + $0x130] sm:$0xff] %v1817
        %1914 = vst [vmem:[#allocation4 + $0x138] sm:$0xff] %v1819
        %1915 = vst [vmem:[#allocation4 + $0x140] sm:$0xf] %v1821
        %1916 = vst [vmem:[#allocation4 + $0x148] sm:$0xf] %v1823
        %1917 = vst [vmem:[#allocation4 + $0x150] sm:$0xf] %v1825
        %1918 = vst [vmem:[#allocation4 + $0x158] sm:$0xf] %v1827
        %1919 = vst [vmem:[#allocation4 + $0x160] sm:$0xf] %v1829
        %v1920 = vld [vmem:[#allocation4] sm:$0xf0]
        %v1921 = vld [vmem:[#allocation4 + $0x8] sm:$0xf0]
        %v1922 = vld [vmem:[#allocation4 + $0x10] sm:$0xf0]
        %v1923 = vld [vmem:[#allocation4 + $0x18] sm:$0xf0]
        %v1924 = vld [vmem:[#allocation4 + $0x20] sm:$0xf0]
        %v1925 = vld [vmem:[#allocation4 + $0x28] sm:$0xff]
        %v1926 = vld [vmem:[#allocation4 + $0x30] sm:$0xff]
        %v1927 = vld [vmem:[#allocation4 + $0x38] sm:$0xff]
        %v1928 = vld [vmem:[#allocation4 + $0x40] sm:$0xff]
        %v1929 = vld [vmem:[#allocation4 + $0x48] sm:$0xff]
        %v1930 = vld [vmem:[#allocation4 + $0x50] sm:$0xff]
        %v1931 = vld [vmem:[#allocation4 + $0x58] sm:$0xff]
        %v1932 = vld [vmem:[#allocation4 + $0x60] sm:$0xff]
        %v1933 = vld [vmem:[#allocation4 + $0x68] sm:$0xff]
        %v1934 = vld [vmem:[#allocation4 + $0x70] sm:$0xff]
        %v1935 = vld [vmem:[#allocation4 + $0x78] sm:$0xff]
        %v1936 = vld [vmem:[#allocation4 + $0x80] sm:$0xff]
        %v1937 = vld [vmem:[#allocation4 + $0x88] sm:$0xff]
        %v1938 = vld [vmem:[#allocation4 + $0x90] sm:$0xff]
        %v1939 = vld [vmem:[#allocation4 + $0x98] sm:$0xff]
        %v1940 = vld [vmem:[#allocation4 + $0xa0] sm:$0xf]
        %v1941 = vld [vmem:[#allocation4 + $0xa8] sm:$0xf]
        %v1942 = vld [vmem:[#allocation4 + $0xb0] sm:$0xf]
        %v1943 = vld [vmem:[#allocation4 + $0xb8] sm:$0xf]
        %v1944 = vld [vmem:[#allocation4 + $0xc0] sm:$0xf]
        %v1945 = vld [vmem:[#allocation9] sm:$0xf]
        %v1946 = vld [vmem:[#allocation9 + $0x4] sm:$0xf]
        %v1947 = vld [vmem:[#allocation9 + $0x8] sm:$0xf]
        %v1948 = vld [vmem:[#allocation9 + $0xc] sm:$0xf]
        %v1949 = vld [vmem:[#allocation9 + $0x10] sm:$0xf]
        %v1950 = vld [vmem:[#allocation9 + $0x14] sm:$0xf]
        %v1951 = vld [vmem:[#allocation9 + $0x18] sm:$0xf]
        %v1952 = vld [vmem:[#allocation9 + $0x1c] sm:$0xf]
        %v1953 = vld [vmem:[#allocation9 + $0x20] sm:$0xf]
        %v1954 = vld [vmem:[#allocation9 + $0x24] sm:$0xf]
        %v1955 = vld [vmem:[#allocation9 + $0x28] sm:$0xf]
        %v1956 = vld [vmem:[#allocation9 + $0x2c] sm:$0xf]
        %v1957 = vld [vmem:[#allocation9 + $0x30] sm:$0xf]
        %v1958 = vld [vmem:[#allocation9 + $0x34] sm:$0xf]
        %v1959 = vld [vmem:[#allocation9 + $0x38] sm:$0xf]
        %v1960 = vld [vmem:[#allocation9 + $0x3c] sm:$0xf]
        %v1961 = vld [vmem:[#allocation9 + $0x40] sm:$0xf]
        %v1962 = vld [vmem:[#allocation9 + $0x44] sm:$0xf]
        %v1963 = vld [vmem:[#allocation9 + $0x48] sm:$0xf]
        %v1964 = vld [vmem:[#allocation9 + $0x4c] sm:$0xf]
        %v1965 = vld [vmem:[#allocation9 + $0x50] sm:$0xf]
        %v1966 = vld [vmem:[#allocation9 + $0x54] sm:$0xf]
        %v1967 = vld [vmem:[#allocation9 + $0x58] sm:$0xf]
        %v1968 = vld [vmem:[#allocation9 + $0x5c] sm:$0xf]
        %v1969 = vld [vmem:[#allocation9 + $0x60] sm:$0xf]
        %v1970 = vld [vmem:[#allocation9 + $0x64] sm:$0xf]
        %v1971 = vld [vmem:[#allocation9 + $0x68] sm:$0xf]
        %v1972 = vld [vmem:[#allocation9 + $0x6c] sm:$0xf]
        %v1973 = vld [vmem:[#allocation9 + $0x70] sm:$0xf]
        %v1974 = vld [vmem:[#allocation9 + $0x74] sm:$0xf]
        %v1975 = vld [vmem:[#allocation9 + $0x78] sm:$0xf]
        %v1976 = vld [vmem:[#allocation9 + $0x7c] sm:$0xf]
        %v1977 = vld [vmem:[#allocation9 + $0x80] sm:$0xf]
        %v1978 = vld [vmem:[#allocation9 + $0x84] sm:$0xf]
        %v1979 = vld [vmem:[#allocation9 + $0x88] sm:$0xf]
        %v1980 = vld [vmem:[#allocation9 + $0x8c] sm:$0xf]
        %v1981 = vld [vmem:[#allocation9 + $0x90] sm:$0xf]
        %v1982 = vld [vmem:[#allocation9 + $0x94] sm:$0xf]
        %v1983 = vld [vmem:[#allocation9 + $0x98] sm:$0xf]
        %v1984 = vld [vmem:[#allocation9 + $0x9c] sm:$0xf]
        %v1985 = vld [vmem:[#allocation9 + $0xa0] sm:$0xf]
        %v1986 = vld [vmem:[#allocation9 + $0xa4] sm:$0xf]
        %v1987 = vld [vmem:[#allocation9 + $0xa8] sm:$0xf]
        %v1988 = vld [vmem:[#allocation9 + $0xac] sm:$0xf]
        %v1989 = vld [vmem:[#allocation9 + $0xb0] sm:$0xf]
        %v1990 = vld [vmem:[#allocation9 + $0xb4] sm:$0xf]
        %v1991 = vld [vmem:[#allocation9 + $0xb8] sm:$0xf]
        %v1992 = vld [vmem:[#allocation9 + $0xbc] sm:$0xf]
        %v1993 = vld [vmem:[#allocation9 + $0xc0] sm:$0xf]
        %v1994 = vld [vmem:[#allocation9 + $0xc4] sm:$0xf]
        %v1995 = vld [vmem:[#allocation9 + $0xc8] sm:$0xf]
        %v1996 = vld [vmem:[#allocation9 + $0xcc] sm:$0xf]
        %v1997 = vld [vmem:[#allocation9 + $0xd0] sm:$0xf]
        %v1998 = vld [vmem:[#allocation9 + $0xd4] sm:$0xf]
        %v1999 = vld [vmem:[#allocation9 + $0xd8] sm:$0xf]
        %v2000 = vld [vmem:[#allocation9 + $0xdc] sm:$0xf]
        %v2001 = vld [vmem:[#allocation9 + $0xe0] sm:$0xf]
        %v2002 = vld [vmem:[#allocation9 + $0xe4] sm:$0xf]
        %v2003 = vld [vmem:[#allocation9 + $0xe8] sm:$0xf]
        %v2004 = vld [vmem:[#allocation9 + $0xec] sm:$0xf]
        %v2005 = vld [vmem:[#allocation9 + $0xf0] sm:$0xf]
        %v2006 = vld [vmem:[#allocation9 + $0xf4] sm:$0xf]
        %v2007 = vld [vmem:[#allocation9 + $0xf8] sm:$0xf]
        %v2008 = vld [vmem:[#allocation9 + $0xfc] sm:$0xf]
        %v2009 = vld [vmem:[#allocation9 + $0x100] sm:$0xf]
        %v2010 = vld [vmem:[#allocation9 + $0x104] sm:$0xf]
        %v2011 = vld [vmem:[#allocation9 + $0x108] sm:$0xf]
        %v2012 = vld [vmem:[#allocation9 + $0x10c] sm:$0xf]
        %v2013 = vld [vmem:[#allocation9 + $0x110] sm:$0xf]
        %v2014 = vld [vmem:[#allocation9 + $0x114] sm:$0xf]
        %v2015 = vld [vmem:[#allocation9 + $0x118] sm:$0xf]
        %v2016 = vld [vmem:[#allocation9 + $0x11c] sm:$0xf]
        %v2017 = vld [vmem:[#allocation9 + $0x120] sm:$0xf]
        %v2018 = vld [vmem:[#allocation9 + $0x124] sm:$0xf]
        %v2019 = vld [vmem:[#allocation9 + $0x128] sm:$0xf]
        %v2020 = vld [vmem:[#allocation9 + $0x12c] sm:$0xf]
        %v2021 = vld [vmem:[#allocation9 + $0x130] sm:$0xf]
        %v2022 = vld [vmem:[#allocation9 + $0x134] sm:$0xf]
        %v2023 = vld [vmem:[#allocation9 + $0x138] sm:$0xf]
        %v2024 = vld [vmem:[#allocation9 + $0x13c] sm:$0xf]
        %v2025 = vld [vmem:[#allocation4 + $0x28] sm:$0xf0]
        %v2026 = vld [vmem:[#allocation4 + $0x30] sm:$0xf0]
        %v2027 = vld [vmem:[#allocation4 + $0x38] sm:$0xf0]
        %v2028 = vld [vmem:[#allocation4 + $0x40] sm:$0xf0]
        %v2029 = vld [vmem:[#allocation4 + $0x48] sm:$0xf0]
        %v2030 = vld [vmem:[#allocation4 + $0xa0] sm:$0xff]
        %v2031 = vld [vmem:[#allocation4 + $0xa8] sm:$0xff]
        %v2032 = vld [vmem:[#allocation4 + $0xb0] sm:$0xff]
        %v2033 = vld [vmem:[#allocation4 + $0xb8] sm:$0xff]
        %v2034 = vld [vmem:[#allocation4 + $0xc0] sm:$0xff]
        %v2035 = vld [vmem:[#allocation4 + $0xc8] sm:$0xf]
        %v2036 = vld [vmem:[#allocation4 + $0xd0] sm:$0xf]
        %v2037 = vld [vmem:[#allocation4 + $0xd8] sm:$0xf]
        %v2038 = vld [vmem:[#allocation4 + $0xe0] sm:$0xf]
        %v2039 = vld [vmem:[#allocation4 + $0xe8] sm:$0xf]
        %s2040 = scalar_lea.vmem [#allocation9], 320
        %v2041 = vld [vmem:[%s2040] sm:$0xf]
        %v2042 = vld [vmem:[%s2040 + $0x4] sm:$0xf]
        %v2043 = vld [vmem:[%s2040 + $0x8] sm:$0xf]
        %v2044 = vld [vmem:[%s2040 + $0xc] sm:$0xf]
        %v2045 = vld [vmem:[%s2040 + $0x10] sm:$0xf]
        %v2046 = vld [vmem:[%s2040 + $0x14] sm:$0xf]
        %v2047 = vld [vmem:[%s2040 + $0x18] sm:$0xf]
        %v2048 = vld [vmem:[%s2040 + $0x1c] sm:$0xf]
        %v2049 = vld [vmem:[%s2040 + $0x20] sm:$0xf]
        %v2050 = vld [vmem:[%s2040 + $0x24] sm:$0xf]
        %v2051 = vld [vmem:[%s2040 + $0x28] sm:$0xf]
        %v2052 = vld [vmem:[%s2040 + $0x2c] sm:$0xf]
        %v2053 = vld [vmem:[%s2040 + $0x30] sm:$0xf]
        %v2054 = vld [vmem:[%s2040 + $0x34] sm:$0xf]
        %v2055 = vld [vmem:[%s2040 + $0x38] sm:$0xf]
        %v2056 = vld [vmem:[%s2040 + $0x3c] sm:$0xf]
        %v2057 = vld [vmem:[%s2040 + $0x40] sm:$0xf]
        %v2058 = vld [vmem:[%s2040 + $0x44] sm:$0xf]
        %v2059 = vld [vmem:[%s2040 + $0x48] sm:$0xf]
        %v2060 = vld [vmem:[%s2040 + $0x4c] sm:$0xf]
        %v2061 = vld [vmem:[%s2040 + $0x50] sm:$0xf]
        %v2062 = vld [vmem:[%s2040 + $0x54] sm:$0xf]
        %v2063 = vld [vmem:[%s2040 + $0x58] sm:$0xf]
        %v2064 = vld [vmem:[%s2040 + $0x5c] sm:$0xf]
        %v2065 = vld [vmem:[%s2040 + $0x60] sm:$0xf]
        %v2066 = vld [vmem:[%s2040 + $0x64] sm:$0xf]
        %v2067 = vld [vmem:[%s2040 + $0x68] sm:$0xf]
        %v2068 = vld [vmem:[%s2040 + $0x6c] sm:$0xf]
        %v2069 = vld [vmem:[%s2040 + $0x70] sm:$0xf]
        %v2070 = vld [vmem:[%s2040 + $0x74] sm:$0xf]
        %v2071 = vld [vmem:[%s2040 + $0x78] sm:$0xf]
        %v2072 = vld [vmem:[%s2040 + $0x7c] sm:$0xf]
        %v2073 = vld [vmem:[%s2040 + $0x80] sm:$0xf]
        %v2074 = vld [vmem:[%s2040 + $0x84] sm:$0xf]
        %v2075 = vld [vmem:[%s2040 + $0x88] sm:$0xf]
        %v2076 = vld [vmem:[%s2040 + $0x8c] sm:$0xf]
        %v2077 = vld [vmem:[%s2040 + $0x90] sm:$0xf]
        %v2078 = vld [vmem:[%s2040 + $0x94] sm:$0xf]
        %v2079 = vld [vmem:[%s2040 + $0x98] sm:$0xf]
        %v2080 = vld [vmem:[%s2040 + $0x9c] sm:$0xf]
        %v2081 = vld [vmem:[%s2040 + $0xa0] sm:$0xf]
        %v2082 = vld [vmem:[%s2040 + $0xa4] sm:$0xf]
        %v2083 = vld [vmem:[%s2040 + $0xa8] sm:$0xf]
        %v2084 = vld [vmem:[%s2040 + $0xac] sm:$0xf]
        %v2085 = vld [vmem:[%s2040 + $0xb0] sm:$0xf]
        %v2086 = vld [vmem:[%s2040 + $0xb4] sm:$0xf]
        %v2087 = vld [vmem:[%s2040 + $0xb8] sm:$0xf]
        %v2088 = vld [vmem:[%s2040 + $0xbc] sm:$0xf]
        %v2089 = vld [vmem:[%s2040 + $0xc0] sm:$0xf]
        %v2090 = vld [vmem:[%s2040 + $0xc4] sm:$0xf]
        %v2091 = vld [vmem:[%s2040 + $0xc8] sm:$0xf]
        %v2092 = vld [vmem:[%s2040 + $0xcc] sm:$0xf]
        %v2093 = vld [vmem:[%s2040 + $0xd0] sm:$0xf]
        %v2094 = vld [vmem:[%s2040 + $0xd4] sm:$0xf]
        %v2095 = vld [vmem:[%s2040 + $0xd8] sm:$0xf]
        %v2096 = vld [vmem:[%s2040 + $0xdc] sm:$0xf]
        %v2097 = vld [vmem:[%s2040 + $0xe0] sm:$0xf]
        %v2098 = vld [vmem:[%s2040 + $0xe4] sm:$0xf]
        %v2099 = vld [vmem:[%s2040 + $0xe8] sm:$0xf]
        %v2100 = vld [vmem:[%s2040 + $0xec] sm:$0xf]
        %v2101 = vld [vmem:[%s2040 + $0xf0] sm:$0xf]
        %v2102 = vld [vmem:[%s2040 + $0xf4] sm:$0xf]
        %v2103 = vld [vmem:[%s2040 + $0xf8] sm:$0xf]
        %v2104 = vld [vmem:[%s2040 + $0xfc] sm:$0xf]
        %v2105 = vld [vmem:[%s2040 + $0x100] sm:$0xf]
        %v2106 = vld [vmem:[%s2040 + $0x104] sm:$0xf]
        %v2107 = vld [vmem:[%s2040 + $0x108] sm:$0xf]
        %v2108 = vld [vmem:[%s2040 + $0x10c] sm:$0xf]
        %v2109 = vld [vmem:[%s2040 + $0x110] sm:$0xf]
        %v2110 = vld [vmem:[%s2040 + $0x114] sm:$0xf]
        %v2111 = vld [vmem:[%s2040 + $0x118] sm:$0xf]
        %v2112 = vld [vmem:[%s2040 + $0x11c] sm:$0xf]
        %v2113 = vld [vmem:[%s2040 + $0x120] sm:$0xf]
        %v2114 = vld [vmem:[%s2040 + $0x124] sm:$0xf]
        %v2115 = vld [vmem:[%s2040 + $0x128] sm:$0xf]
        %v2116 = vld [vmem:[%s2040 + $0x12c] sm:$0xf]
        %v2117 = vld [vmem:[%s2040 + $0x130] sm:$0xf]
        %v2118 = vld [vmem:[%s2040 + $0x134] sm:$0xf]
        %v2119 = vld [vmem:[%s2040 + $0x138] sm:$0xf]
        %v2120 = vld [vmem:[%s2040 + $0x13c] sm:$0xf]
        %v2146 = vrot.slane %v2025, 4
        %v2147 = vrot.slane %v1930, 4
        %v2148 = vsel %vm792, %v2146, %v2147
        %v2149 = vrot.slane %v2026, 4
        %v2150 = vrot.slane %v1931, 4
        %v2151 = vsel %vm792, %v2149, %v2150
        %v2152 = vrot.slane %v2027, 4
        %v2153 = vrot.slane %v1932, 4
        %v2154 = vsel %vm792, %v2152, %v2153
        %v2155 = vrot.slane %v2028, 4
        %v2156 = vrot.slane %v1933, 4
        %v2157 = vsel %vm792, %v2155, %v2156
        %v2158 = vrot.slane %v2029, 4
        %v2159 = vrot.slane %v1934, 4
        %v2160 = vsel %vm792, %v2158, %v2159
        %v2161 = vrot.slane %v1935, 4
        %v2162 = vsel %vm792, %v2147, %v2161
        %v2163 = vrot.slane %v1936, 4
        %v2164 = vsel %vm792, %v2150, %v2163
        %v2165 = vrot.slane %v1937, 4
        %v2166 = vsel %vm792, %v2153, %v2165
        %v2167 = vrot.slane %v1938, 4
        %v2168 = vsel %vm792, %v2156, %v2167
        %v2169 = vrot.slane %v1939, 4
        %v2170 = vsel %vm792, %v2159, %v2169
        %v2171 = vrot.slane %v2030, 4
        %v2172 = vsel %vm792, %v2161, %v2171
        %v2173 = vrot.slane %v2031, 4
        %v2174 = vsel %vm792, %v2163, %v2173
        %v2175 = vrot.slane %v2032, 4
        %v2176 = vsel %vm792, %v2165, %v2175
        %v2177 = vrot.slane %v2033, 4
        %v2178 = vsel %vm792, %v2167, %v2177
        %v2179 = vrot.slane %v2034, 4
        %v2180 = vsel %vm792, %v2169, %v2179
        %v2181 = vrot.slane %v2035, 4
        %v2182 = vsel %vm792, %v2171, %v2181
        %v2183 = vrot.slane %v2036, 4
        %v2184 = vsel %vm792, %v2173, %v2183
        %v2185 = vrot.slane %v2037, 4
        %v2186 = vsel %vm792, %v2175, %v2185
        %v2187 = vrot.slane %v2038, 4
        %v2188 = vsel %vm792, %v2177, %v2187
        %v2189 = vrot.slane %v2039, 4
        %v2190 = vsel %vm792, %v2179, %v2189
        %v2291 = vunpack.c.l.b16 %v2041
        %v2292 = vunpack.c.l.b16 %v2042
        %v2293 = vunpack.c.l.b16 %v2043
        %v2294 = vunpack.c.l.b16 %v2044
        %v2295 = vunpack.c.l.b16 %v2045
        %v2296 = vunpack.c.l.b16 %v2046
        %v2297 = vunpack.c.l.b16 %v2047
        %v2298 = vunpack.c.l.b16 %v2048
        %v2299 = vunpack.c.l.b16 %v2049
        %v2300 = vunpack.c.l.b16 %v2050
        %v2301 = vunpack.c.l.b16 %v2051
        %v2302 = vunpack.c.l.b16 %v2052
        %v2303 = vunpack.c.l.b16 %v2053
        %v2304 = vunpack.c.l.b16 %v2054
        %v2305 = vunpack.c.l.b16 %v2055
        %v2306 = vunpack.c.l.b16 %v2056
        %v2307 = vunpack.c.l.b16 %v2057
        %v2308 = vunpack.c.l.b16 %v2058
        %v2309 = vunpack.c.l.b16 %v2059
        %v2310 = vunpack.c.l.b16 %v2060
        %v2311 = vunpack.c.l.b16 %v2061
        %v2312 = vunpack.c.l.b16 %v2062
        %v2313 = vunpack.c.l.b16 %v2063
        %v2314 = vunpack.c.l.b16 %v2064
        %v2315 = vunpack.c.l.b16 %v2065
        %v2316 = vunpack.c.l.b16 %v2066
        %v2317 = vunpack.c.l.b16 %v2067
        %v2318 = vunpack.c.l.b16 %v2068
        %v2319 = vunpack.c.l.b16 %v2069
        %v2320 = vunpack.c.l.b16 %v2070
        %v2321 = vunpack.c.l.b16 %v2071
        %v2322 = vunpack.c.l.b16 %v2072
        %v2323 = vunpack.c.l.b16 %v2073
        %v2324 = vunpack.c.l.b16 %v2074
        %v2325 = vunpack.c.l.b16 %v2075
        %v2326 = vunpack.c.l.b16 %v2076
        %v2327 = vunpack.c.l.b16 %v2077
        %v2328 = vunpack.c.l.b16 %v2078
        %v2329 = vunpack.c.l.b16 %v2079
        %v2330 = vunpack.c.l.b16 %v2080
        %v2331 = vunpack.c.l.b16 %v2081
        %v2332 = vunpack.c.l.b16 %v2082
        %v2333 = vunpack.c.l.b16 %v2083
        %v2334 = vunpack.c.l.b16 %v2084
        %v2335 = vunpack.c.l.b16 %v2085
        %v2336 = vunpack.c.l.b16 %v2086
        %v2337 = vunpack.c.l.b16 %v2087
        %v2338 = vunpack.c.l.b16 %v2088
        %v2339 = vunpack.c.l.b16 %v2089
        %v2340 = vunpack.c.l.b16 %v2090
        %v2341 = vunpack.c.l.b16 %v2091
        %v2342 = vunpack.c.l.b16 %v2092
        %v2343 = vunpack.c.l.b16 %v2093
        %v2344 = vunpack.c.l.b16 %v2094
        %v2345 = vunpack.c.l.b16 %v2095
        %v2346 = vunpack.c.l.b16 %v2096
        %v2347 = vunpack.c.l.b16 %v2097
        %v2348 = vunpack.c.l.b16 %v2098
        %v2349 = vunpack.c.l.b16 %v2099
        %v2350 = vunpack.c.l.b16 %v2100
        %v2351 = vunpack.c.l.b16 %v2101
        %v2352 = vunpack.c.l.b16 %v2102
        %v2353 = vunpack.c.l.b16 %v2103
        %v2354 = vunpack.c.l.b16 %v2104
        %v2355 = vunpack.c.l.b16 %v2105
        %v2356 = vunpack.c.l.b16 %v2106
        %v2357 = vunpack.c.l.b16 %v2107
        %v2358 = vunpack.c.l.b16 %v2108
        %v2359 = vunpack.c.l.b16 %v2109
        %v2360 = vunpack.c.l.b16 %v2110
        %v2361 = vunpack.c.l.b16 %v2111
        %v2362 = vunpack.c.l.b16 %v2112
        %v2363 = vunpack.c.l.b16 %v2113
        %v2364 = vunpack.c.l.b16 %v2114
        %v2365 = vunpack.c.l.b16 %v2115
        %v2366 = vunpack.c.l.b16 %v2116
        %v2367 = vunpack.c.l.b16 %v2117
        %v2368 = vunpack.c.l.b16 %v2118
        %v2369 = vunpack.c.l.b16 %v2119
        %v2370 = vunpack.c.l.b16 %v2120
        %v2371 = vpack.c.b16 %v2292, %v2291
        %v2372 = vpack.c.b16 %v2294, %v2293
        %v2373 = vpack.c.b16 %v2296, %v2295
        %v2374 = vpack.c.b16 %v2298, %v2297
        %v2375 = vpack.c.b16 %v2300, %v2299
        %v2376 = vpack.c.b16 %v2302, %v2301
        %v2377 = vpack.c.b16 %v2304, %v2303
        %v2378 = vpack.c.b16 %v2306, %v2305
        %v2379 = vpack.c.b16 %v2308, %v2307
        %v2380 = vpack.c.b16 %v2310, %v2309
        %v2381 = vpack.c.b16 %v2312, %v2311
        %v2382 = vpack.c.b16 %v2314, %v2313
        %v2383 = vpack.c.b16 %v2316, %v2315
        %v2384 = vpack.c.b16 %v2318, %v2317
        %v2385 = vpack.c.b16 %v2320, %v2319
        %v2386 = vpack.c.b16 %v2322, %v2321
        %v2387 = vpack.c.b16 %v2324, %v2323
        %v2388 = vpack.c.b16 %v2326, %v2325
        %v2389 = vpack.c.b16 %v2328, %v2327
        %v2390 = vpack.c.b16 %v2330, %v2329
        %v2391 = vpack.c.b16 %v2332, %v2331
        %v2392 = vpack.c.b16 %v2334, %v2333
        %v2393 = vpack.c.b16 %v2336, %v2335
        %v2394 = vpack.c.b16 %v2338, %v2337
        %v2395 = vpack.c.b16 %v2340, %v2339
        %v2396 = vpack.c.b16 %v2342, %v2341
        %v2397 = vpack.c.b16 %v2344, %v2343
        %v2398 = vpack.c.b16 %v2346, %v2345
        %v2399 = vpack.c.b16 %v2348, %v2347
        %v2400 = vpack.c.b16 %v2350, %v2349
        %v2401 = vpack.c.b16 %v2352, %v2351
        %v2402 = vpack.c.b16 %v2354, %v2353
        %v2403 = vpack.c.b16 %v2356, %v2355
        %v2404 = vpack.c.b16 %v2358, %v2357
        %v2405 = vpack.c.b16 %v2360, %v2359
        %v2406 = vpack.c.b16 %v2362, %v2361
        %v2407 = vpack.c.b16 %v2364, %v2363
        %v2408 = vpack.c.b16 %v2366, %v2365
        %v2409 = vpack.c.b16 %v2368, %v2367
        %v2410 = vpack.c.b16 %v2370, %v2369
        %2451 = vmatprep.subr.bf16.mxu0 0
        %2452 = vmatpush1.bf16.msra.mxu0 %v2371
        %2453 = vmatprep.subr.bf16.mxu0 0
        %2454 = vmatpush1.bf16.msra.mxu0 %v2372
        %2455 = vmatprep.subr.bf16.mxu0 0
        %2456 = vmatpush1.bf16.msra.mxu0 %v2373
        %2457 = vmatprep.subr.bf16.mxu0 0
        %2458 = vmatpush1.bf16.msra.mxu0 %v2374
        %2459 = vmatprep.subr.bf16.mxu0 0
        %2460 = vmatpush1.bf16.msra.mxu0 %v2375
        %2461 = vmatprep.subr.bf16.mxu0 0
        %2462 = vmatpush1.bf16.msra.mxu0 %v2376
        %2463 = vmatprep.subr.bf16.mxu0 0
        %2464 = vmatpush1.bf16.msra.mxu0 %v2377
        %2465 = vmatprep.subr.bf16.mxu0 0
        %2466 = vmatpush1.bf16.msra.mxu0 %v2378
        %2467 = vmatprep.subr.bf16.mxu0 0
        %2468 = vmatpush1.bf16.msra.mxu0 %v2379
        %2469 = vmatprep.subr.bf16.mxu0 0
        %2470 = vmatpush1.bf16.msra.mxu0 %v2380
        %2471 = vmatprep.subr.bf16.mxu0 0
        %2472 = vmatpush1.bf16.msra.mxu0 %v2381
        %2473 = vmatprep.subr.bf16.mxu0 0
        %2474 = vmatpush1.bf16.msra.mxu0 %v2382
        %2475 = vmatprep.subr.bf16.mxu0 0
        %2476 = vmatpush1.bf16.msra.mxu0 %v2383
        %2477 = vmatprep.subr.bf16.mxu0 0
        %2478 = vmatpush1.bf16.msra.mxu0 %v2384
        %2479 = vmatprep.subr.bf16.mxu0 0
        %2480 = vmatpush1.bf16.msra.mxu0 %v2385
        %2481 = vmatprep.subr.bf16.mxu0 0
        %2482 = vmatpush1.bf16.msra.mxu0 %v2386
        %2483 = vmatprep.mubr.bf16.mxu0 %v2151
        %2484 = vmatmul.mubr.bf16.gmra.mrb[0].mxu0 %v2148
        %v2485 = vpop.f32.mrb[0].mxu0
        %v2486 = vadd.f32 0.0, %v2485
        %v2487 = vpop.f32.mrb[0].mxu0
        %v2488 = vpop.f32.mrb[0].mxu0
        %v2489 = vadd.f32 0.0, %v2488
        %v2490 = vpop.f32.mrb[0].mxu0
        %2491 = vmatprep.mubr.bf16.mxu0 %v2164
        %2492 = vmatmul.mubr.bf16.gmra.mrb[0].mxu0 %v2162
        %v2493 = vpop.f32.mrb[0].mxu0
        %v2494 = vadd.f32 0.0, %v2493
        %v2495 = vpop.f32.mrb[0].mxu0
        %v2496 = vpop.f32.mrb[0].mxu0
        %v2497 = vadd.f32 0.0, %v2496
        %v2498 = vpop.f32.mrb[0].mxu0
        %2499 = vmatprep.mubr.bf16.mxu0 %v2174
        %2500 = vmatmul.mubr.bf16.gmra.mrb[0].mxu0 %v2172
        %v2501 = vpop.f32.mrb[0].mxu0
        %v2502 = vadd.f32 0.0, %v2501
        %v2503 = vpop.f32.mrb[0].mxu0
        %v2504 = vpop.f32.mrb[0].mxu0
        %v2505 = vadd.f32 0.0, %v2504
        %v2506 = vpop.f32.mrb[0].mxu0
        %2507 = vmatprep.mubr.bf16.mxu0 %v2184
        %2508 = vmatmul.mubr.bf16.gmra.mrb[0].mxu0 %v2182
        %v2509 = vpop.f32.mrb[0].mxu0
        %v2510 = vadd.f32 0.0, %v2509
        %v2511 = vpop.f32.mrb[0].mxu0
        %v2512 = vpop.f32.mrb[0].mxu0
        %v2513 = vadd.f32 0.0, %v2512
        %v2514 = vpop.f32.mrb[0].mxu0
        %2515 = vdwg.mxu0
        %2516 = vmatprep.subr.bf16.mxu0 0
        %2517 = vmatpush1.bf16.msra.mxu0 %v2387
        %2518 = vmatprep.subr.bf16.mxu0 0
        %2519 = vmatpush1.bf16.msra.mxu0 %v2388
        %2520 = vmatprep.subr.bf16.mxu0 0
        %2521 = vmatpush1.bf16.msra.mxu0 %v2389
        %2522 = vmatprep.subr.bf16.mxu0 0
        %2523 = vmatpush1.bf16.msra.mxu0 %v2390
        %2524 = vmatprep.subr.bf16.mxu0 0
        %2525 = vmatpush1.bf16.msra.mxu0 %v2391
        %2526 = vmatprep.subr.bf16.mxu0 0
        %2527 = vmatpush1.bf16.msra.mxu0 %v2392
        %2528 = vmatprep.subr.bf16.mxu0 0
        %2529 = vmatpush1.bf16.msra.mxu0 %v2393
        %2530 = vmatprep.subr.bf16.mxu0 0
        %2531 = vmatpush1.bf16.msra.mxu0 %v2394
        %2532 = vmatprep.subr.bf16.mxu0 0
        %2533 = vmatpush1.bf16.msra.mxu0 %v2395
        %2534 = vmatprep.subr.bf16.mxu0 0
        %2535 = vmatpush1.bf16.msra.mxu0 %v2396
        %2536 = vmatprep.subr.bf16.mxu0 0
        %2537 = vmatpush1.bf16.msra.mxu0 %v2397
        %2538 = vmatprep.subr.bf16.mxu0 0
        %2539 = vmatpush1.bf16.msra.mxu0 %v2398
        %2540 = vmatprep.subr.bf16.mxu0 0
        %2541 = vmatpush1.bf16.msra.mxu0 %v2399
        %2542 = vmatprep.subr.bf16.mxu0 0
        %2543 = vmatpush1.bf16.msra.mxu0 %v2400
        %2544 = vmatprep.subr.bf16.mxu0 0
        %2545 = vmatpush1.bf16.msra.mxu0 %v2401
        %2546 = vmatprep.subr.bf16.mxu0 0
        %2547 = vmatpush1.bf16.msra.mxu0 %v2402
        %2548 = vmatprep.mubr.bf16.mxu0 %v2157
        %2549 = vmatmul.mubr.bf16.gmra.mrb[0].mxu0 %v2154
        %v2550 = vpop.f32.mrb[0].mxu0
        %v2551 = vadd.f32 %v2486, %v2550
        %v2552 = vpop.f32.mrb[0].mxu0
        %v2553 = vpop.f32.mrb[0].mxu0
        %v2554 = vadd.f32 %v2489, %v2553
        %v2555 = vpop.f32.mrb[0].mxu0
        %2556 = vmatprep.mubr.bf16.mxu0 %v2168
        %2557 = vmatmul.mubr.bf16.gmra.mrb[0].mxu0 %v2166
        %v2558 = vpop.f32.mrb[0].mxu0
        %v2559 = vadd.f32 %v2494, %v2558
        %v2560 = vpop.f32.mrb[0].mxu0
        %v2561 = vpop.f32.mrb[0].mxu0
        %v2562 = vadd.f32 %v2497, %v2561
        %v2563 = vpop.f32.mrb[0].mxu0
        %2564 = vmatprep.mubr.bf16.mxu0 %v2178
        %2565 = vmatmul.mubr.bf16.gmra.mrb[0].mxu0 %v2176
        %v2566 = vpop.f32.mrb[0].mxu0
        %v2567 = vadd.f32 %v2502, %v2566
        %v2568 = vpop.f32.mrb[0].mxu0
        %v2569 = vpop.f32.mrb[0].mxu0
        %v2570 = vadd.f32 %v2505, %v2569
        %v2571 = vpop.f32.mrb[0].mxu0
        %2572 = vmatprep.mubr.bf16.mxu0 %v2188
        %2573 = vmatmul.mubr.bf16.gmra.mrb[0].mxu0 %v2186
        %v2574 = vpop.f32.mrb[0].mxu0
        %v2575 = vadd.f32 %v2510, %v2574
        %v2576 = vpop.f32.mrb[0].mxu0
        %v2577 = vpop.f32.mrb[0].mxu0
        %v2578 = vadd.f32 %v2513, %v2577
        %v2579 = vpop.f32.mrb[0].mxu0
        %2580 = vdwg.mxu0
        %2581 = vmatprep.subr.bf16.mxu0 0
        %2582 = vmatpush1.bf16.msra.mxu0 %v2403
        %2583 = vmatprep.subr.bf16.mxu0 0
        %2584 = vmatpush1.bf16.msra.mxu0 %v2404
        %2585 = vmatprep.subr.bf16.mxu0 0
        %2586 = vmatpush1.bf16.msra.mxu0 %v2405
        %2587 = vmatprep.subr.bf16.mxu0 0
        %2588 = vmatpush1.bf16.msra.mxu0 %v2406
        %2589 = vmatprep.subr.bf16.mxu0 0
        %2590 = vmatpush1.bf16.msra.mxu0 %v2407
        %2591 = vmatprep.subr.bf16.mxu0 0
        %2592 = vmatpush1.bf16.msra.mxu0 %v2408
        %2593 = vmatprep.subr.bf16.mxu0 0
        %2594 = vmatpush1.bf16.msra.mxu0 %v2409
        %2595 = vmatprep.subr.bf16.mxu0 0
        %2596 = vmatpush1.bf16.msra.mxu0 %v2410
        %2597 = vmatprep.subr.bf16.mxu0 0
        %2598 = vmatpush1.bf16.msra.mxu0 0
        %2599 = vmatprep.subr.bf16.mxu0 0
        %2600 = vmatpush1.bf16.msra.mxu0 0
        %2601 = vmatprep.subr.bf16.mxu0 0
        %2602 = vmatpush1.bf16.msra.mxu0 0
        %2603 = vmatprep.subr.bf16.mxu0 0
        %2604 = vmatpush1.bf16.msra.mxu0 0
        %2605 = vmatprep.subr.bf16.mxu0 0
        %2606 = vmatpush1.bf16.msra.mxu0 0
        %2607 = vmatprep.subr.bf16.mxu0 0
        %2608 = vmatpush1.bf16.msra.mxu0 0
        %2609 = vmatprep.subr.bf16.mxu0 0
        %2610 = vmatpush1.bf16.msra.mxu0 0
        %2611 = vmatprep.subr.bf16.mxu0 0
        %2612 = vmatpush1.bf16.msra.mxu0 0
        %2613 = vmatprep.mubr.bf16.mxu0 0
        %2614 = vmatmul.mubr.bf16.gmra.mrb[0].mxu0 %v2160
        %v2615 = vpop.f32.mrb[0].mxu0
        %v2616 = vadd.f32 %v2551, %v2615
        %v2617 = vpop.f32.mrb[0].mxu0
        %v2618 = vpop.f32.mrb[0].mxu0
        %v2619 = vadd.f32 %v2554, %v2618
        %v2620 = vpop.f32.mrb[0].mxu0
        %2621 = vmatprep.mubr.bf16.mxu0 0
        %2622 = vmatmul.mubr.bf16.gmra.mrb[0].mxu0 %v2170
        %v2623 = vpop.f32.mrb[0].mxu0
        %v2624 = vadd.f32 %v2559, %v2623
        %v2625 = vpop.f32.mrb[0].mxu0
        %v2626 = vpop.f32.mrb[0].mxu0
        %v2627 = vadd.f32 %v2562, %v2626
        %v2628 = vpop.f32.mrb[0].mxu0
        %2629 = vmatprep.mubr.bf16.mxu0 0
        %2630 = vmatmul.mubr.bf16.gmra.mrb[0].mxu0 %v2180
        %v2631 = vpop.f32.mrb[0].mxu0
        %v2632 = vadd.f32 %v2567, %v2631
        %v2633 = vpop.f32.mrb[0].mxu0
        %v2634 = vpop.f32.mrb[0].mxu0
        %v2635 = vadd.f32 %v2570, %v2634
        %v2636 = vpop.f32.mrb[0].mxu0
        %2637 = vmatprep.mubr.bf16.mxu0 0
        %2638 = vmatmul.mubr.bf16.gmra.mrb[0].mxu0 %v2190
        %v2639 = vpop.f32.mrb[0].mxu0
        %v2640 = vadd.f32 %v2575, %v2639
        %v2641 = vpop.f32.mrb[0].mxu0
        %v2642 = vpop.f32.mrb[0].mxu0
        %v2643 = vadd.f32 %v2578, %v2642
        %v2644 = vpop.f32.mrb[0].mxu0
        %2645 = vdwg.mxu0
        %v2661 = vrot.slane %v1920, 4
        %v2662 = vrot.slane %v1925, 4
        %v2663 = vsel %vm792, %v2661, %v2662
        %v2664 = vrot.slane %v1921, 4
        %v2665 = vrot.slane %v1926, 4
        %v2666 = vsel %vm792, %v2664, %v2665
        %v2667 = vrot.slane %v1922, 4
        %v2668 = vrot.slane %v1927, 4
        %v2669 = vsel %vm792, %v2667, %v2668
        %v2670 = vrot.slane %v1923, 4
        %v2671 = vrot.slane %v1928, 4
        %v2672 = vsel %vm792, %v2670, %v2671
        %v2673 = vrot.slane %v1924, 4
        %v2674 = vrot.slane %v1929, 4
        %v2675 = vsel %vm792, %v2673, %v2674
        %v2676 = vsel %vm792, %v2662, %v2147
        %v2677 = vsel %vm792, %v2665, %v2150
        %v2678 = vsel %vm792, %v2668, %v2153
        %v2679 = vsel %vm792, %v2671, %v2156
        %v2680 = vsel %vm792, %v2674, %v2159
        %v2681 = vrot.slane %v1940, 4
        %v2682 = vsel %vm792, %v2161, %v2681
        %v2683 = vrot.slane %v1941, 4
        %v2684 = vsel %vm792, %v2163, %v2683
        %v2685 = vrot.slane %v1942, 4
        %v2686 = vsel %vm792, %v2165, %v2685
        %v2687 = vrot.slane %v1943, 4
        %v2688 = vsel %vm792, %v2167, %v2687
        %v2689 = vrot.slane %v1944, 4
        %v2690 = vsel %vm792, %v2169, %v2689
        %v2786 = vunpack.c.l.b16 %v1945
        %v2787 = vunpack.c.l.b16 %v1946
        %v2788 = vunpack.c.l.b16 %v1947
        %v2789 = vunpack.c.l.b16 %v1948
        %v2790 = vunpack.c.l.b16 %v1949
        %v2791 = vunpack.c.l.b16 %v1950
        %v2792 = vunpack.c.l.b16 %v1951
        %v2793 = vunpack.c.l.b16 %v1952
        %v2794 = vunpack.c.l.b16 %v1953
        %v2795 = vunpack.c.l.b16 %v1954
        %v2796 = vunpack.c.l.b16 %v1955
        %v2797 = vunpack.c.l.b16 %v1956
        %v2798 = vunpack.c.l.b16 %v1957
        %v2799 = vunpack.c.l.b16 %v1958
        %v2800 = vunpack.c.l.b16 %v1959
        %v2801 = vunpack.c.l.b16 %v1960
        %v2802 = vunpack.c.l.b16 %v1961
        %v2803 = vunpack.c.l.b16 %v1962
        %v2804 = vunpack.c.l.b16 %v1963
        %v2805 = vunpack.c.l.b16 %v1964
        %v2806 = vunpack.c.l.b16 %v1965
        %v2807 = vunpack.c.l.b16 %v1966
        %v2808 = vunpack.c.l.b16 %v1967
        %v2809 = vunpack.c.l.b16 %v1968
        %v2810 = vunpack.c.l.b16 %v1969
        %v2811 = vunpack.c.l.b16 %v1970
        %v2812 = vunpack.c.l.b16 %v1971
        %v2813 = vunpack.c.l.b16 %v1972
        %v2814 = vunpack.c.l.b16 %v1973
        %v2815 = vunpack.c.l.b16 %v1974
        %v2816 = vunpack.c.l.b16 %v1975
        %v2817 = vunpack.c.l.b16 %v1976
        %v2818 = vunpack.c.l.b16 %v1977
        %v2819 = vunpack.c.l.b16 %v1978
        %v2820 = vunpack.c.l.b16 %v1979
        %v2821 = vunpack.c.l.b16 %v1980
        %v2822 = vunpack.c.l.b16 %v1981
        %v2823 = vunpack.c.l.b16 %v1982
        %v2824 = vunpack.c.l.b16 %v1983
        %v2825 = vunpack.c.l.b16 %v1984
        %v2826 = vunpack.c.l.b16 %v1985
        %v2827 = vunpack.c.l.b16 %v1986
        %v2828 = vunpack.c.l.b16 %v1987
        %v2829 = vunpack.c.l.b16 %v1988
        %v2830 = vunpack.c.l.b16 %v1989
        %v2831 = vunpack.c.l.b16 %v1990
        %v2832 = vunpack.c.l.b16 %v1991
        %v2833 = vunpack.c.l.b16 %v1992
        %v2834 = vunpack.c.l.b16 %v1993
        %v2835 = vunpack.c.l.b16 %v1994
        %v2836 = vunpack.c.l.b16 %v1995
        %v2837 = vunpack.c.l.b16 %v1996
        %v2838 = vunpack.c.l.b16 %v1997
        %v2839 = vunpack.c.l.b16 %v1998
        %v2840 = vunpack.c.l.b16 %v1999
        %v2841 = vunpack.c.l.b16 %v2000
        %v2842 = vunpack.c.l.b16 %v2001
        %v2843 = vunpack.c.l.b16 %v2002
        %v2844 = vunpack.c.l.b16 %v2003
        %v2845 = vunpack.c.l.b16 %v2004
        %v2846 = vunpack.c.l.b16 %v2005
        %v2847 = vunpack.c.l.b16 %v2006
        %v2848 = vunpack.c.l.b16 %v2007
        %v2849 = vunpack.c.l.b16 %v2008
        %v2850 = vunpack.c.l.b16 %v2009
        %v2851 = vunpack.c.l.b16 %v2010
        %v2852 = vunpack.c.l.b16 %v2011
        %v2853 = vunpack.c.l.b16 %v2012
        %v2854 = vunpack.c.l.b16 %v2013
        %v2855 = vunpack.c.l.b16 %v2014
        %v2856 = vunpack.c.l.b16 %v2015
        %v2857 = vunpack.c.l.b16 %v2016
        %v2858 = vunpack.c.l.b16 %v2017
        %v2859 = vunpack.c.l.b16 %v2018
        %v2860 = vunpack.c.l.b16 %v2019
        %v2861 = vunpack.c.l.b16 %v2020
        %v2862 = vunpack.c.l.b16 %v2021
        %v2863 = vunpack.c.l.b16 %v2022
        %v2864 = vunpack.c.l.b16 %v2023
        %v2865 = vunpack.c.l.b16 %v2024
        %v2866 = vpack.c.b16 %v2787, %v2786
        %v2867 = vpack.c.b16 %v2789, %v2788
        %v2868 = vpack.c.b16 %v2791, %v2790
        %v2869 = vpack.c.b16 %v2793, %v2792
        %v2870 = vpack.c.b16 %v2795, %v2794
        %v2871 = vpack.c.b16 %v2797, %v2796
        %v2872 = vpack.c.b16 %v2799, %v2798
        %v2873 = vpack.c.b16 %v2801, %v2800
        %v2874 = vpack.c.b16 %v2803, %v2802
        %v2875 = vpack.c.b16 %v2805, %v2804
        %v2876 = vpack.c.b16 %v2807, %v2806
        %v2877 = vpack.c.b16 %v2809, %v2808
        %v2878 = vpack.c.b16 %v2811, %v2810
        %v2879 = vpack.c.b16 %v2813, %v2812
        %v2880 = vpack.c.b16 %v2815, %v2814
        %v2881 = vpack.c.b16 %v2817, %v2816
        %v2882 = vpack.c.b16 %v2819, %v2818
        %v2883 = vpack.c.b16 %v2821, %v2820
        %v2884 = vpack.c.b16 %v2823, %v2822
        %v2885 = vpack.c.b16 %v2825, %v2824
        %v2886 = vpack.c.b16 %v2827, %v2826
        %v2887 = vpack.c.b16 %v2829, %v2828
        %v2888 = vpack.c.b16 %v2831, %v2830
        %v2889 = vpack.c.b16 %v2833, %v2832
        %v2890 = vpack.c.b16 %v2835, %v2834
        %v2891 = vpack.c.b16 %v2837, %v2836
        %v2892 = vpack.c.b16 %v2839, %v2838
        %v2893 = vpack.c.b16 %v2841, %v2840
        %v2894 = vpack.c.b16 %v2843, %v2842
        %v2895 = vpack.c.b16 %v2845, %v2844
        %v2896 = vpack.c.b16 %v2847, %v2846
        %v2897 = vpack.c.b16 %v2849, %v2848
        %v2898 = vpack.c.b16 %v2851, %v2850
        %v2899 = vpack.c.b16 %v2853, %v2852
        %v2900 = vpack.c.b16 %v2855, %v2854
        %v2901 = vpack.c.b16 %v2857, %v2856
        %v2902 = vpack.c.b16 %v2859, %v2858
        %v2903 = vpack.c.b16 %v2861, %v2860
        %v2904 = vpack.c.b16 %v2863, %v2862
        %v2905 = vpack.c.b16 %v2865, %v2864
        %2946 = vmatprep.subr.bf16.mxu0 0
        %2947 = vmatpush1.bf16.msra.mxu0 %v2866
        %2948 = vmatprep.subr.bf16.mxu0 0
        %2949 = vmatpush1.bf16.msra.mxu0 %v2867
        %2950 = vmatprep.subr.bf16.mxu0 0
        %2951 = vmatpush1.bf16.msra.mxu0 %v2868
        %2952 = vmatprep.subr.bf16.mxu0 0
        %2953 = vmatpush1.bf16.msra.mxu0 %v2869
        %2954 = vmatprep.subr.bf16.mxu0 0
        %2955 = vmatpush1.bf16.msra.mxu0 %v2870
        %2956 = vmatprep.subr.bf16.mxu0 0
        %2957 = vmatpush1.bf16.msra.mxu0 %v2871
        %2958 = vmatprep.subr.bf16.mxu0 0
        %2959 = vmatpush1.bf16.msra.mxu0 %v2872
        %2960 = vmatprep.subr.bf16.mxu0 0
        %2961 = vmatpush1.bf16.msra.mxu0 %v2873
        %2962 = vmatprep.subr.bf16.mxu0 0
        %2963 = vmatpush1.bf16.msra.mxu0 %v2874
        %2964 = vmatprep.subr.bf16.mxu0 0
        %2965 = vmatpush1.bf16.msra.mxu0 %v2875
        %2966 = vmatprep.subr.bf16.mxu0 0
        %2967 = vmatpush1.bf16.msra.mxu0 %v2876
        %2968 = vmatprep.subr.bf16.mxu0 0
        %2969 = vmatpush1.bf16.msra.mxu0 %v2877
        %2970 = vmatprep.subr.bf16.mxu0 0
        %2971 = vmatpush1.bf16.msra.mxu0 %v2878
        %2972 = vmatprep.subr.bf16.mxu0 0
        %2973 = vmatpush1.bf16.msra.mxu0 %v2879
        %2974 = vmatprep.subr.bf16.mxu0 0
        %2975 = vmatpush1.bf16.msra.mxu0 %v2880
        %2976 = vmatprep.subr.bf16.mxu0 0
        %2977 = vmatpush1.bf16.msra.mxu0 %v2881
        %2978 = vmatprep.mubr.bf16.mxu0 %v2666
        %2979 = vmatmul.mubr.bf16.gmra.mrb[0].mxu0 %v2663
        %v2980 = vpop.f32.mrb[0].mxu0
        %v2981 = vadd.f32 %v2616, %v2980
        %v2982 = vpop.f32.mrb[0].mxu0
        %v2983 = vpop.f32.mrb[0].mxu0
        %v2984 = vadd.f32 %v2619, %v2983
        %v2985 = vpop.f32.mrb[0].mxu0
        %2986 = vmatprep.mubr.bf16.mxu0 %v2677
        %2987 = vmatmul.mubr.bf16.gmra.mrb[0].mxu0 %v2676
        %v2988 = vpop.f32.mrb[0].mxu0
        %v2989 = vadd.f32 %v2624, %v2988
        %v2990 = vpop.f32.mrb[0].mxu0
        %v2991 = vpop.f32.mrb[0].mxu0
        %v2992 = vadd.f32 %v2627, %v2991
        %v2993 = vpop.f32.mrb[0].mxu0
        %2994 = vmatprep.mubr.bf16.mxu0 %v2164
        %2995 = vmatmul.mubr.bf16.gmra.mrb[0].mxu0 %v2162
        %v2996 = vpop.f32.mrb[0].mxu0
        %v2997 = vadd.f32 %v2632, %v2996
        %v2998 = vpop.f32.mrb[0].mxu0
        %v2999 = vpop.f32.mrb[0].mxu0
        %v3000 = vadd.f32 %v2635, %v2999
        %v3001 = vpop.f32.mrb[0].mxu0
        %3002 = vmatprep.mubr.bf16.mxu0 %v2684
        %3003 = vmatmul.mubr.bf16.gmra.mrb[0].mxu0 %v2682
        %v3004 = vpop.f32.mrb[0].mxu0
        %v3005 = vadd.f32 %v2640, %v3004
        %v3006 = vpop.f32.mrb[0].mxu0
        %v3007 = vpop.f32.mrb[0].mxu0
        %v3008 = vadd.f32 %v2643, %v3007
        %v3009 = vpop.f32.mrb[0].mxu0
        %3010 = vdwg.mxu0
        %3011 = vmatprep.subr.bf16.mxu0 0
        %3012 = vmatpush1.bf16.msra.mxu0 %v2882
        %3013 = vmatprep.subr.bf16.mxu0 0
        %3014 = vmatpush1.bf16.msra.mxu0 %v2883
        %3015 = vmatprep.subr.bf16.mxu0 0
        %3016 = vmatpush1.bf16.msra.mxu0 %v2884
        %3017 = vmatprep.subr.bf16.mxu0 0
        %3018 = vmatpush1.bf16.msra.mxu0 %v2885
        %3019 = vmatprep.subr.bf16.mxu0 0
        %3020 = vmatpush1.bf16.msra.mxu0 %v2886
        %3021 = vmatprep.subr.bf16.mxu0 0
        %3022 = vmatpush1.bf16.msra.mxu0 %v2887
        %3023 = vmatprep.subr.bf16.mxu0 0
        %3024 = vmatpush1.bf16.msra.mxu0 %v2888
        %3025 = vmatprep.subr.bf16.mxu0 0
        %3026 = vmatpush1.bf16.msra.mxu0 %v2889
        %3027 = vmatprep.subr.bf16.mxu0 0
        %3028 = vmatpush1.bf16.msra.mxu0 %v2890
        %3029 = vmatprep.subr.bf16.mxu0 0
        %3030 = vmatpush1.bf16.msra.mxu0 %v2891
        %3031 = vmatprep.subr.bf16.mxu0 0
        %3032 = vmatpush1.bf16.msra.mxu0 %v2892
        %3033 = vmatprep.subr.bf16.mxu0 0
        %3034 = vmatpush1.bf16.msra.mxu0 %v2893
        %3035 = vmatprep.subr.bf16.mxu0 0
        %3036 = vmatpush1.bf16.msra.mxu0 %v2894
        %3037 = vmatprep.subr.bf16.mxu0 0
        %3038 = vmatpush1.bf16.msra.mxu0 %v2895
        %3039 = vmatprep.subr.bf16.mxu0 0
        %3040 = vmatpush1.bf16.msra.mxu0 %v2896
        %3041 = vmatprep.subr.bf16.mxu0 0
        %3042 = vmatpush1.bf16.msra.mxu0 %v2897
        %3043 = vmatprep.mubr.bf16.mxu0 %v2672
        %3044 = vmatmul.mubr.bf16.gmra.mrb[0].mxu0 %v2669
        %v3045 = vpop.f32.mrb[0].mxu0
        %v3046 = vadd.f32 %v2981, %v3045
        %v3047 = vpop.f32.mrb[0].mxu0
        %v3048 = vpop.f32.mrb[0].mxu0
        %v3049 = vadd.f32 %v2984, %v3048
        %v3050 = vpop.f32.mrb[0].mxu0
        %3051 = vmatprep.mubr.bf16.mxu0 %v2679
        %3052 = vmatmul.mubr.bf16.gmra.mrb[0].mxu0 %v2678
        %v3053 = vpop.f32.mrb[0].mxu0
        %v3054 = vadd.f32 %v2989, %v3053
        %v3055 = vpop.f32.mrb[0].mxu0
        %v3056 = vpop.f32.mrb[0].mxu0
        %v3057 = vadd.f32 %v2992, %v3056
        %v3058 = vpop.f32.mrb[0].mxu0
        %3059 = vmatprep.mubr.bf16.mxu0 %v2168
        %3060 = vmatmul.mubr.bf16.gmra.mrb[0].mxu0 %v2166
        %v3061 = vpop.f32.mrb[0].mxu0
        %v3062 = vadd.f32 %v2997, %v3061
        %v3063 = vpop.f32.mrb[0].mxu0
        %v3064 = vpop.f32.mrb[0].mxu0
        %v3065 = vadd.f32 %v3000, %v3064
        %v3066 = vpop.f32.mrb[0].mxu0
        %3067 = vmatprep.mubr.bf16.mxu0 %v2688
        %3068 = vmatmul.mubr.bf16.gmra.mrb[0].mxu0 %v2686
        %v3069 = vpop.f32.mrb[0].mxu0
        %v3070 = vadd.f32 %v3005, %v3069
        %v3071 = vpop.f32.mrb[0].mxu0
        %v3072 = vpop.f32.mrb[0].mxu0
        %v3073 = vadd.f32 %v3008, %v3072
        %v3074 = vpop.f32.mrb[0].mxu0
        %3075 = vdwg.mxu0
        %3076 = vmatprep.subr.bf16.mxu0 0
        %3077 = vmatpush1.bf16.msra.mxu0 %v2898
        %3078 = vmatprep.subr.bf16.mxu0 0
        %3079 = vmatpush1.bf16.msra.mxu0 %v2899
        %3080 = vmatprep.subr.bf16.mxu0 0
        %3081 = vmatpush1.bf16.msra.mxu0 %v2900
        %3082 = vmatprep.subr.bf16.mxu0 0
        %3083 = vmatpush1.bf16.msra.mxu0 %v2901
        %3084 = vmatprep.subr.bf16.mxu0 0
        %3085 = vmatpush1.bf16.msra.mxu0 %v2902
        %3086 = vmatprep.subr.bf16.mxu0 0
        %3087 = vmatpush1.bf16.msra.mxu0 %v2903
        %3088 = vmatprep.subr.bf16.mxu0 0
        %3089 = vmatpush1.bf16.msra.mxu0 %v2904
        %3090 = vmatprep.subr.bf16.mxu0 0
        %3091 = vmatpush1.bf16.msra.mxu0 %v2905
        %3092 = vmatprep.subr.bf16.mxu0 0
        %3093 = vmatpush1.bf16.msra.mxu0 0
        %3094 = vmatprep.subr.bf16.mxu0 0
        %3095 = vmatpush1.bf16.msra.mxu0 0
        %3096 = vmatprep.subr.bf16.mxu0 0
        %3097 = vmatpush1.bf16.msra.mxu0 0
        %3098 = vmatprep.subr.bf16.mxu0 0
        %3099 = vmatpush1.bf16.msra.mxu0 0
        %3100 = vmatprep.subr.bf16.mxu0 0
        %3101 = vmatpush1.bf16.msra.mxu0 0
        %3102 = vmatprep.subr.bf16.mxu0 0
        %3103 = vmatpush1.bf16.msra.mxu0 0
        %3104 = vmatprep.subr.bf16.mxu0 0
        %3105 = vmatpush1.bf16.msra.mxu0 0
        %3106 = vmatprep.subr.bf16.mxu0 0
        %3107 = vmatpush1.bf16.msra.mxu0 0
        %3108 = vmatprep.mubr.bf16.mxu0 0
        %3109 = vmatmul.mubr.bf16.gmra.mrb[0].mxu0 %v2675
        %v3110 = vpop.f32.mrb[0].mxu0
        %v3111 = vadd.f32 %v3046, %v3110
        %v3112 = vpop.f32.mrb[0].mxu0
        %v3113 = vpop.f32.mrb[0].mxu0
        %v3114 = vadd.f32 %v3049, %v3113
        %v3115 = vpop.f32.mrb[0].mxu0
        %3116 = vmatprep.mubr.bf16.mxu0 0
        %3117 = vmatmul.mubr.bf16.gmra.mrb[0].mxu0 %v2680
        %v3118 = vpop.f32.mrb[0].mxu0
        %v3119 = vadd.f32 %v3054, %v3118
        %v3120 = vpop.f32.mrb[0].mxu0
        %v3121 = vpop.f32.mrb[0].mxu0
        %v3122 = vadd.f32 %v3057, %v3121
        %v3123 = vpop.f32.mrb[0].mxu0
        %3124 = vmatprep.mubr.bf16.mxu0 0
        %3125 = vmatmul.mubr.bf16.gmra.mrb[0].mxu0 %v2170
        %v3126 = vpop.f32.mrb[0].mxu0
        %v3127 = vadd.f32 %v3062, %v3126
        %v3128 = vpop.f32.mrb[0].mxu0
        %v3129 = vpop.f32.mrb[0].mxu0
        %v3130 = vadd.f32 %v3065, %v3129
        %v3131 = vpop.f32.mrb[0].mxu0
        %3132 = vmatprep.mubr.bf16.mxu0 0
        %3133 = vmatmul.mubr.bf16.gmra.mrb[0].mxu0 %v2690
        %v3134 = vpop.f32.mrb[0].mxu0
        %v3135 = vadd.f32 %v3070, %v3134
        %v3136 = vpop.f32.mrb[0].mxu0
        %v3137 = vpop.f32.mrb[0].mxu0
        %v3138 = vadd.f32 %v3073, %v3137
        %v3139 = vpop.f32.mrb[0].mxu0
        %3140 = vdwg.mxu0
        %v3141 = vld [vmem:[#allocation4 + $0x50] sm:$0xf0]
        %v3142 = vld [vmem:[#allocation4 + $0x58] sm:$0xf0]
        %v3143 = vld [vmem:[#allocation4 + $0x60] sm:$0xf0]
        %v3144 = vld [vmem:[#allocation4 + $0x68] sm:$0xf0]
        %v3145 = vld [vmem:[#allocation4 + $0x70] sm:$0xf0]
        %v3146 = vld [vmem:[#allocation4 + $0x78] sm:$0xff]
        %v3147 = vld [vmem:[#allocation4 + $0x80] sm:$0xff]
        %v3148 = vld [vmem:[#allocation4 + $0x88] sm:$0xff]
        %v3149 = vld [vmem:[#allocation4 + $0x90] sm:$0xff]
        %v3150 = vld [vmem:[#allocation4 + $0x98] sm:$0xff]
        %v3151 = vld [vmem:[#allocation4 + $0xa0] sm:$0xff]
        %v3152 = vld [vmem:[#allocation4 + $0xa8] sm:$0xff]
        %v3153 = vld [vmem:[#allocation4 + $0xb0] sm:$0xff]
        %v3154 = vld [vmem:[#allocation4 + $0xb8] sm:$0xff]
        %v3155 = vld [vmem:[#allocation4 + $0xc0] sm:$0xff]
        %v3156 = vld [vmem:[#allocation4 + $0xc8] sm:$0xff]
        %v3157 = vld [vmem:[#allocation4 + $0xd0] sm:$0xff]
        %v3158 = vld [vmem:[#allocation4 + $0xd8] sm:$0xff]
        %v3159 = vld [vmem:[#allocation4 + $0xe0] sm:$0xff]
        %v3160 = vld [vmem:[#allocation4 + $0xe8] sm:$0xff]
        %v3161 = vld [vmem:[#allocation4 + $0xf0] sm:$0xf]
        %v3162 = vld [vmem:[#allocation4 + $0xf8] sm:$0xf]
        %v3163 = vld [vmem:[#allocation4 + $0x100] sm:$0xf]
        %v3164 = vld [vmem:[#allocation4 + $0x108] sm:$0xf]
        %v3165 = vld [vmem:[#allocation4 + $0x110] sm:$0xf]
        %s3166 = scalar_lea.vmem [#allocation9], 640
        %v3167 = vld [vmem:[%s3166] sm:$0xf]
        %v3168 = vld [vmem:[%s3166 + $0x4] sm:$0xf]
        %v3169 = vld [vmem:[%s3166 + $0x8] sm:$0xf]
        %v3170 = vld [vmem:[%s3166 + $0xc] sm:$0xf]
        %v3171 = vld [vmem:[%s3166 + $0x10] sm:$0xf]
        %v3172 = vld [vmem:[%s3166 + $0x14] sm:$0xf]
        %v3173 = vld [vmem:[%s3166 + $0x18] sm:$0xf]
        %v3174 = vld [vmem:[%s3166 + $0x1c] sm:$0xf]
        %v3175 = vld [vmem:[%s3166 + $0x20] sm:$0xf]
        %v3176 = vld [vmem:[%s3166 + $0x24] sm:$0xf]
        %v3177 = vld [vmem:[%s3166 + $0x28] sm:$0xf]
        %v3178 = vld [vmem:[%s3166 + $0x2c] sm:$0xf]
        %v3179 = vld [vmem:[%s3166 + $0x30] sm:$0xf]
        %v3180 = vld [vmem:[%s3166 + $0x34] sm:$0xf]
        %v3181 = vld [vmem:[%s3166 + $0x38] sm:$0xf]
        %v3182 = vld [vmem:[%s3166 + $0x3c] sm:$0xf]
        %v3183 = vld [vmem:[%s3166 + $0x40] sm:$0xf]
        %v3184 = vld [vmem:[%s3166 + $0x44] sm:$0xf]
        %v3185 = vld [vmem:[%s3166 + $0x48] sm:$0xf]
        %v3186 = vld [vmem:[%s3166 + $0x4c] sm:$0xf]
        %v3187 = vld [vmem:[%s3166 + $0x50] sm:$0xf]
        %v3188 = vld [vmem:[%s3166 + $0x54] sm:$0xf]
        %v3189 = vld [vmem:[%s3166 + $0x58] sm:$0xf]
        %v3190 = vld [vmem:[%s3166 + $0x5c] sm:$0xf]
        %v3191 = vld [vmem:[%s3166 + $0x60] sm:$0xf]
        %v3192 = vld [vmem:[%s3166 + $0x64] sm:$0xf]
        %v3193 = vld [vmem:[%s3166 + $0x68] sm:$0xf]
        %v3194 = vld [vmem:[%s3166 + $0x6c] sm:$0xf]
        %v3195 = vld [vmem:[%s3166 + $0x70] sm:$0xf]
        %v3196 = vld [vmem:[%s3166 + $0x74] sm:$0xf]
        %v3197 = vld [vmem:[%s3166 + $0x78] sm:$0xf]
        %v3198 = vld [vmem:[%s3166 + $0x7c] sm:$0xf]
        %v3199 = vld [vmem:[%s3166 + $0x80] sm:$0xf]
        %v3200 = vld [vmem:[%s3166 + $0x84] sm:$0xf]
        %v3201 = vld [vmem:[%s3166 + $0x88] sm:$0xf]
        %v3202 = vld [vmem:[%s3166 + $0x8c] sm:$0xf]
        %v3203 = vld [vmem:[%s3166 + $0x90] sm:$0xf]
        %v3204 = vld [vmem:[%s3166 + $0x94] sm:$0xf]
        %v3205 = vld [vmem:[%s3166 + $0x98] sm:$0xf]
        %v3206 = vld [vmem:[%s3166 + $0x9c] sm:$0xf]
        %v3207 = vld [vmem:[%s3166 + $0xa0] sm:$0xf]
        %v3208 = vld [vmem:[%s3166 + $0xa4] sm:$0xf]
        %v3209 = vld [vmem:[%s3166 + $0xa8] sm:$0xf]
        %v3210 = vld [vmem:[%s3166 + $0xac] sm:$0xf]
        %v3211 = vld [vmem:[%s3166 + $0xb0] sm:$0xf]
        %v3212 = vld [vmem:[%s3166 + $0xb4] sm:$0xf]
        %v3213 = vld [vmem:[%s3166 + $0xb8] sm:$0xf]
        %v3214 = vld [vmem:[%s3166 + $0xbc] sm:$0xf]
        %v3215 = vld [vmem:[%s3166 + $0xc0] sm:$0xf]
        %v3216 = vld [vmem:[%s3166 + $0xc4] sm:$0xf]
        %v3217 = vld [vmem:[%s3166 + $0xc8] sm:$0xf]
        %v3218 = vld [vmem:[%s3166 + $0xcc] sm:$0xf]
        %v3219 = vld [vmem:[%s3166 + $0xd0] sm:$0xf]
        %v3220 = vld [vmem:[%s3166 + $0xd4] sm:$0xf]
        %v3221 = vld [vmem:[%s3166 + $0xd8] sm:$0xf]
        %v3222 = vld [vmem:[%s3166 + $0xdc] sm:$0xf]
        %v3223 = vld [vmem:[%s3166 + $0xe0] sm:$0xf]
        %v3224 = vld [vmem:[%s3166 + $0xe4] sm:$0xf]
        %v3225 = vld [vmem:[%s3166 + $0xe8] sm:$0xf]
        %v3226 = vld [vmem:[%s3166 + $0xec] sm:$0xf]
        %v3227 = vld [vmem:[%s3166 + $0xf0] sm:$0xf]
        %v3228 = vld [vmem:[%s3166 + $0xf4] sm:$0xf]
        %v3229 = vld [vmem:[%s3166 + $0xf8] sm:$0xf]
        %v3230 = vld [vmem:[%s3166 + $0xfc] sm:$0xf]
        %v3231 = vld [vmem:[%s3166 + $0x100] sm:$0xf]
        %v3232 = vld [vmem:[%s3166 + $0x104] sm:$0xf]
        %v3233 = vld [vmem:[%s3166 + $0x108] sm:$0xf]
        %v3234 = vld [vmem:[%s3166 + $0x10c] sm:$0xf]
        %v3235 = vld [vmem:[%s3166 + $0x110] sm:$0xf]
        %v3236 = vld [vmem:[%s3166 + $0x114] sm:$0xf]
        %v3237 = vld [vmem:[%s3166 + $0x118] sm:$0xf]
        %v3238 = vld [vmem:[%s3166 + $0x11c] sm:$0xf]
        %v3239 = vld [vmem:[%s3166 + $0x120] sm:$0xf]
        %v3240 = vld [vmem:[%s3166 + $0x124] sm:$0xf]
        %v3241 = vld [vmem:[%s3166 + $0x128] sm:$0xf]
        %v3242 = vld [vmem:[%s3166 + $0x12c] sm:$0xf]
        %v3243 = vld [vmem:[%s3166 + $0x130] sm:$0xf]
        %v3244 = vld [vmem:[%s3166 + $0x134] sm:$0xf]
        %v3245 = vld [vmem:[%s3166 + $0x138] sm:$0xf]
        %v3246 = vld [vmem:[%s3166 + $0x13c] sm:$0xf]
        %v3272 = vrot.slane %v3141, 4
        %v3273 = vrot.slane %v3146, 4
        %v3274 = vsel %vm792, %v3272, %v3273
        %v3275 = vrot.slane %v3142, 4
        %v3276 = vrot.slane %v3147, 4
        %v3277 = vsel %vm792, %v3275, %v3276
        %v3278 = vrot.slane %v3143, 4
        %v3279 = vrot.slane %v3148, 4
        %v3280 = vsel %vm792, %v3278, %v3279
        %v3281 = vrot.slane %v3144, 4
        %v3282 = vrot.slane %v3149, 4
        %v3283 = vsel %vm792, %v3281, %v3282
        %v3284 = vrot.slane %v3145, 4
        %v3285 = vrot.slane %v3150, 4
        %v3286 = vsel %vm792, %v3284, %v3285
        %v3287 = vrot.slane %v3151, 4
        %v3288 = vsel %vm792, %v3273, %v3287
        %v3289 = vrot.slane %v3152, 4
        %v3290 = vsel %vm792, %v3276, %v3289
        %v3291 = vrot.slane %v3153, 4
        %v3292 = vsel %vm792, %v3279, %v3291
        %v3293 = vrot.slane %v3154, 4
        %v3294 = vsel %vm792, %v3282, %v3293
        %v3295 = vrot.slane %v3155, 4
        %v3296 = vsel %vm792, %v3285, %v3295
        %v3297 = vrot.slane %v3156, 4
        %v3298 = vsel %vm792, %v3287, %v3297
        %v3299 = vrot.slane %v3157, 4
        %v3300 = vsel %vm792, %v3289, %v3299
        %v3301 = vrot.slane %v3158, 4
        %v3302 = vsel %vm792, %v3291, %v3301
        %v3303 = vrot.slane %v3159, 4
        %v3304 = vsel %vm792, %v3293, %v3303
        %v3305 = vrot.slane %v3160, 4
        %v3306 = vsel %vm792, %v3295, %v3305
        %v3307 = vrot.slane %v3161, 4
        %v3308 = vsel %vm792, %v3297, %v3307
        %v3309 = vrot.slane %v3162, 4
        %v3310 = vsel %vm792, %v3299, %v3309
        %v3311 = vrot.slane %v3163, 4
        %v3312 = vsel %vm792, %v3301, %v3311
        %v3313 = vrot.slane %v3164, 4
        %v3314 = vsel %vm792, %v3303, %v3313
        %v3315 = vrot.slane %v3165, 4
        %v3316 = vsel %vm792, %v3305, %v3315
        %v3417 = vunpack.c.l.b16 %v3167
        %v3418 = vunpack.c.l.b16 %v3168
        %v3419 = vunpack.c.l.b16 %v3169
        %v3420 = vunpack.c.l.b16 %v3170
        %v3421 = vunpack.c.l.b16 %v3171
        %v3422 = vunpack.c.l.b16 %v3172
        %v3423 = vunpack.c.l.b16 %v3173
        %v3424 = vunpack.c.l.b16 %v3174
        %v3425 = vunpack.c.l.b16 %v3175
        %v3426 = vunpack.c.l.b16 %v3176
        %v3427 = vunpack.c.l.b16 %v3177
        %v3428 = vunpack.c.l.b16 %v3178
        %v3429 = vunpack.c.l.b16 %v3179
        %v3430 = vunpack.c.l.b16 %v3180
        %v3431 = vunpack.c.l.b16 %v3181
        %v3432 = vunpack.c.l.b16 %v3182
        %v3433 = vunpack.c.l.b16 %v3183
        %v3434 = vunpack.c.l.b16 %v3184
        %v3435 = vunpack.c.l.b16 %v3185
        %v3436 = vunpack.c.l.b16 %v3186
        %v3437 = vunpack.c.l.b16 %v3187
        %v3438 = vunpack.c.l.b16 %v3188
        %v3439 = vunpack.c.l.b16 %v3189
        %v3440 = vunpack.c.l.b16 %v3190
        %v3441 = vunpack.c.l.b16 %v3191
        %v3442 = vunpack.c.l.b16 %v3192
        %v3443 = vunpack.c.l.b16 %v3193
        %v3444 = vunpack.c.l.b16 %v3194
        %v3445 = vunpack.c.l.b16 %v3195
        %v3446 = vunpack.c.l.b16 %v3196
        %v3447 = vunpack.c.l.b16 %v3197
        %v3448 = vunpack.c.l.b16 %v3198
        %v3449 = vunpack.c.l.b16 %v3199
        %v3450 = vunpack.c.l.b16 %v3200
        %v3451 = vunpack.c.l.b16 %v3201
        %v3452 = vunpack.c.l.b16 %v3202
        %v3453 = vunpack.c.l.b16 %v3203
        %v3454 = vunpack.c.l.b16 %v3204
        %v3455 = vunpack.c.l.b16 %v3205
        %v3456 = vunpack.c.l.b16 %v3206
        %v3457 = vunpack.c.l.b16 %v3207
        %v3458 = vunpack.c.l.b16 %v3208
        %v3459 = vunpack.c.l.b16 %v3209
        %v3460 = vunpack.c.l.b16 %v3210
        %v3461 = vunpack.c.l.b16 %v3211
        %v3462 = vunpack.c.l.b16 %v3212
        %v3463 = vunpack.c.l.b16 %v3213
        %v3464 = vunpack.c.l.b16 %v3214
        %v3465 = vunpack.c.l.b16 %v3215
        %v3466 = vunpack.c.l.b16 %v3216
        %v3467 = vunpack.c.l.b16 %v3217
        %v3468 = vunpack.c.l.b16 %v3218
        %v3469 = vunpack.c.l.b16 %v3219
        %v3470 = vunpack.c.l.b16 %v3220
        %v3471 = vunpack.c.l.b16 %v3221
        %v3472 = vunpack.c.l.b16 %v3222
        %v3473 = vunpack.c.l.b16 %v3223
        %v3474 = vunpack.c.l.b16 %v3224
        %v3475 = vunpack.c.l.b16 %v3225
        %v3476 = vunpack.c.l.b16 %v3226
        %v3477 = vunpack.c.l.b16 %v3227
        %v3478 = vunpack.c.l.b16 %v3228
        %v3479 = vunpack.c.l.b16 %v3229
        %v3480 = vunpack.c.l.b16 %v3230
        %v3481 = vunpack.c.l.b16 %v3231
        %v3482 = vunpack.c.l.b16 %v3232
        %v3483 = vunpack.c.l.b16 %v3233
        %v3484 = vunpack.c.l.b16 %v3234
        %v3485 = vunpack.c.l.b16 %v3235
        %v3486 = vunpack.c.l.b16 %v3236
        %v3487 = vunpack.c.l.b16 %v3237
        %v3488 = vunpack.c.l.b16 %v3238
        %v3489 = vunpack.c.l.b16 %v3239
        %v3490 = vunpack.c.l.b16 %v3240
        %v3491 = vunpack.c.l.b16 %v3241
        %v3492 = vunpack.c.l.b16 %v3242
        %v3493 = vunpack.c.l.b16 %v3243
        %v3494 = vunpack.c.l.b16 %v3244
        %v3495 = vunpack.c.l.b16 %v3245
        %v3496 = vunpack.c.l.b16 %v3246
        %v3497 = vpack.c.b16 %v3418, %v3417
        %v3498 = vpack.c.b16 %v3420, %v3419
        %v3499 = vpack.c.b16 %v3422, %v3421
        %v3500 = vpack.c.b16 %v3424, %v3423
        %v3501 = vpack.c.b16 %v3426, %v3425
        %v3502 = vpack.c.b16 %v3428, %v3427
        %v3503 = vpack.c.b16 %v3430, %v3429
        %v3504 = vpack.c.b16 %v3432, %v3431
        %v3505 = vpack.c.b16 %v3434, %v3433
        %v3506 = vpack.c.b16 %v3436, %v3435
        %v3507 = vpack.c.b16 %v3438, %v3437
        %v3508 = vpack.c.b16 %v3440, %v3439
        %v3509 = vpack.c.b16 %v3442, %v3441
        %v3510 = vpack.c.b16 %v3444, %v3443
        %v3511 = vpack.c.b16 %v3446, %v3445
        %v3512 = vpack.c.b16 %v3448, %v3447
        %v3513 = vpack.c.b16 %v3450, %v3449
        %v3514 = vpack.c.b16 %v3452, %v3451
        %v3515 = vpack.c.b16 %v3454, %v3453
        %v3516 = vpack.c.b16 %v3456, %v3455
        %v3517 = vpack.c.b16 %v3458, %v3457
        %v3518 = vpack.c.b16 %v3460, %v3459
        %v3519 = vpack.c.b16 %v3462, %v3461
        %v3520 = vpack.c.b16 %v3464, %v3463
        %v3521 = vpack.c.b16 %v3466, %v3465
        %v3522 = vpack.c.b16 %v3468, %v3467
        %v3523 = vpack.c.b16 %v3470, %v3469
        %v3524 = vpack.c.b16 %v3472, %v3471
        %v3525 = vpack.c.b16 %v3474, %v3473
        %v3526 = vpack.c.b16 %v3476, %v3475
        %v3527 = vpack.c.b16 %v3478, %v3477
        %v3528 = vpack.c.b16 %v3480, %v3479
        %v3529 = vpack.c.b16 %v3482, %v3481
        %v3530 = vpack.c.b16 %v3484, %v3483
        %v3531 = vpack.c.b16 %v3486, %v3485
        %v3532 = vpack.c.b16 %v3488, %v3487
        %v3533 = vpack.c.b16 %v3490, %v3489
        %v3534 = vpack.c.b16 %v3492, %v3491
        %v3535 = vpack.c.b16 %v3494, %v3493
        %v3536 = vpack.c.b16 %v3496, %v3495
        %3577 = vmatprep.subr.bf16.mxu0 0
        %3578 = vmatpush1.bf16.msra.mxu0 %v3497
        %3579 = vmatprep.subr.bf16.mxu0 0
        %3580 = vmatpush1.bf16.msra.mxu0 %v3498
        %3581 = vmatprep.subr.bf16.mxu0 0
        %3582 = vmatpush1.bf16.msra.mxu0 %v3499
        %3583 = vmatprep.subr.bf16.mxu0 0
        %3584 = vmatpush1.bf16.msra.mxu0 %v3500
        %3585 = vmatprep.subr.bf16.mxu0 0
        %3586 = vmatpush1.bf16.msra.mxu0 %v3501
        %3587 = vmatprep.subr.bf16.mxu0 0
        %3588 = vmatpush1.bf16.msra.mxu0 %v3502
        %3589 = vmatprep.subr.bf16.mxu0 0
        %3590 = vmatpush1.bf16.msra.mxu0 %v3503
        %3591 = vmatprep.subr.bf16.mxu0 0
        %3592 = vmatpush1.bf16.msra.mxu0 %v3504
        %3593 = vmatprep.subr.bf16.mxu0 0
        %3594 = vmatpush1.bf16.msra.mxu0 %v3505
        %3595 = vmatprep.subr.bf16.mxu0 0
        %3596 = vmatpush1.bf16.msra.mxu0 %v3506
        %3597 = vmatprep.subr.bf16.mxu0 0
        %3598 = vmatpush1.bf16.msra.mxu0 %v3507
        %3599 = vmatprep.subr.bf16.mxu0 0
        %3600 = vmatpush1.bf16.msra.mxu0 %v3508
        %3601 = vmatprep.subr.bf16.mxu0 0
        %3602 = vmatpush1.bf16.msra.mxu0 %v3509
        %3603 = vmatprep.subr.bf16.mxu0 0
        %3604 = vmatpush1.bf16.msra.mxu0 %v3510
        %3605 = vmatprep.subr.bf16.mxu0 0
        %3606 = vmatpush1.bf16.msra.mxu0 %v3511
        %3607 = vmatprep.subr.bf16.mxu0 0
        %3608 = vmatpush1.bf16.msra.mxu0 %v3512
        %3609 = vmatprep.mubr.bf16.mxu0 %v3277
        %3610 = vmatmul.mubr.bf16.gmra.mrb[0].mxu0 %v3274
        %v3611 = vpop.f32.mrb[0].mxu0
        %v3612 = vadd.f32 0.0, %v3611
        %v3613 = vpop.f32.mrb[0].mxu0
        %v3614 = vpop.f32.mrb[0].mxu0
        %v3615 = vadd.f32 0.0, %v3614
        %v3616 = vpop.f32.mrb[0].mxu0
        %3617 = vmatprep.mubr.bf16.mxu0 %v3290
        %3618 = vmatmul.mubr.bf16.gmra.mrb[0].mxu0 %v3288
        %v3619 = vpop.f32.mrb[0].mxu0
        %v3620 = vadd.f32 0.0, %v3619
        %v3621 = vpop.f32.mrb[0].mxu0
        %v3622 = vpop.f32.mrb[0].mxu0
        %v3623 = vadd.f32 0.0, %v3622
        %v3624 = vpop.f32.mrb[0].mxu0
        %3625 = vmatprep.mubr.bf16.mxu0 %v3300
        %3626 = vmatmul.mubr.bf16.gmra.mrb[0].mxu0 %v3298
        %v3627 = vpop.f32.mrb[0].mxu0
        %v3628 = vadd.f32 0.0, %v3627
        %v3629 = vpop.f32.mrb[0].mxu0
        %v3630 = vpop.f32.mrb[0].mxu0
        %v3631 = vadd.f32 0.0, %v3630
        %v3632 = vpop.f32.mrb[0].mxu0
        %3633 = vmatprep.mubr.bf16.mxu0 %v3310
        %3634 = vmatmul.mubr.bf16.gmra.mrb[0].mxu0 %v3308
        %v3635 = vpop.f32.mrb[0].mxu0
        %v3636 = vadd.f32 0.0, %v3635
        %v3637 = vpop.f32.mrb[0].mxu0
        %v3638 = vpop.f32.mrb[0].mxu0
        %v3639 = vadd.f32 0.0, %v3638
        %v3640 = vpop.f32.mrb[0].mxu0
        %3641 = vdwg.mxu0
        %3642 = vmatprep.subr.bf16.mxu0 0
        %3643 = vmatpush1.bf16.msra.mxu0 %v3513
        %3644 = vmatprep.subr.bf16.mxu0 0
        %3645 = vmatpush1.bf16.msra.mxu0 %v3514
        %3646 = vmatprep.subr.bf16.mxu0 0
        %3647 = vmatpush1.bf16.msra.mxu0 %v3515
        %3648 = vmatprep.subr.bf16.mxu0 0
        %3649 = vmatpush1.bf16.msra.mxu0 %v3516
        %3650 = vmatprep.subr.bf16.mxu0 0
        %3651 = vmatpush1.bf16.msra.mxu0 %v3517
        %3652 = vmatprep.subr.bf16.mxu0 0
        %3653 = vmatpush1.bf16.msra.mxu0 %v3518
        %3654 = vmatprep.subr.bf16.mxu0 0
        %3655 = vmatpush1.bf16.msra.mxu0 %v3519
        %3656 = vmatprep.subr.bf16.mxu0 0
        %3657 = vmatpush1.bf16.msra.mxu0 %v3520
        %3658 = vmatprep.subr.bf16.mxu0 0
        %3659 = vmatpush1.bf16.msra.mxu0 %v3521
        %3660 = vmatprep.subr.bf16.mxu0 0
        %3661 = vmatpush1.bf16.msra.mxu0 %v3522
        %3662 = vmatprep.subr.bf16.mxu0 0
        %3663 = vmatpush1.bf16.msra.mxu0 %v3523
        %3664 = vmatprep.subr.bf16.mxu0 0
        %3665 = vmatpush1.bf16.msra.mxu0 %v3524
        %3666 = vmatprep.subr.bf16.mxu0 0
        %3667 = vmatpush1.bf16.msra.mxu0 %v3525
        %3668 = vmatprep.subr.bf16.mxu0 0
        %3669 = vmatpush1.bf16.msra.mxu0 %v3526
        %3670 = vmatprep.subr.bf16.mxu0 0
        %3671 = vmatpush1.bf16.msra.mxu0 %v3527
        %3672 = vmatprep.subr.bf16.mxu0 0
        %3673 = vmatpush1.bf16.msra.mxu0 %v3528
        %3674 = vmatprep.mubr.bf16.mxu0 %v3283
        %3675 = vmatmul.mubr.bf16.gmra.mrb[0].mxu0 %v3280
        %v3676 = vpop.f32.mrb[0].mxu0
        %v3677 = vadd.f32 %v3612, %v3676
        %v3678 = vpop.f32.mrb[0].mxu0
        %v3679 = vpop.f32.mrb[0].mxu0
        %v3680 = vadd.f32 %v3615, %v3679
        %v3681 = vpop.f32.mrb[0].mxu0
        %3682 = vmatprep.mubr.bf16.mxu0 %v3294
        %3683 = vmatmul.mubr.bf16.gmra.mrb[0].mxu0 %v3292
        %v3684 = vpop.f32.mrb[0].mxu0
        %v3685 = vadd.f32 %v3620, %v3684
        %v3686 = vpop.f32.mrb[0].mxu0
        %v3687 = vpop.f32.mrb[0].mxu0
        %v3688 = vadd.f32 %v3623, %v3687
        %v3689 = vpop.f32.mrb[0].mxu0
        %3690 = vmatprep.mubr.bf16.mxu0 %v3304
        %3691 = vmatmul.mubr.bf16.gmra.mrb[0].mxu0 %v3302
        %v3692 = vpop.f32.mrb[0].mxu0
        %v3693 = vadd.f32 %v3628, %v3692
        %v3694 = vpop.f32.mrb[0].mxu0
        %v3695 = vpop.f32.mrb[0].mxu0
        %v3696 = vadd.f32 %v3631, %v3695
        %v3697 = vpop.f32.mrb[0].mxu0
        %3698 = vmatprep.mubr.bf16.mxu0 %v3314
        %3699 = vmatmul.mubr.bf16.gmra.mrb[0].mxu0 %v3312
        %v3700 = vpop.f32.mrb[0].mxu0
        %v3701 = vadd.f32 %v3636, %v3700
        %v3702 = vpop.f32.mrb[0].mxu0
        %v3703 = vpop.f32.mrb[0].mxu0
        %v3704 = vadd.f32 %v3639, %v3703
        %v3705 = vpop.f32.mrb[0].mxu0
        %3706 = vdwg.mxu0
        %3707 = vmatprep.subr.bf16.mxu0 0
        %3708 = vmatpush1.bf16.msra.mxu0 %v3529
        %3709 = vmatprep.subr.bf16.mxu0 0
        %3710 = vmatpush1.bf16.msra.mxu0 %v3530
        %3711 = vmatprep.subr.bf16.mxu0 0
        %3712 = vmatpush1.bf16.msra.mxu0 %v3531
        %3713 = vmatprep.subr.bf16.mxu0 0
        %3714 = vmatpush1.bf16.msra.mxu0 %v3532
        %3715 = vmatprep.subr.bf16.mxu0 0
        %3716 = vmatpush1.bf16.msra.mxu0 %v3533
        %3717 = vmatprep.subr.bf16.mxu0 0
        %3718 = vmatpush1.bf16.msra.mxu0 %v3534
        %3719 = vmatprep.subr.bf16.mxu0 0
        %3720 = vmatpush1.bf16.msra.mxu0 %v3535
        %3721 = vmatprep.subr.bf16.mxu0 0
        %3722 = vmatpush1.bf16.msra.mxu0 %v3536
        %3723 = vmatprep.subr.bf16.mxu0 0
        %3724 = vmatpush1.bf16.msra.mxu0 0
        %3725 = vmatprep.subr.bf16.mxu0 0
        %3726 = vmatpush1.bf16.msra.mxu0 0
        %3727 = vmatprep.subr.bf16.mxu0 0
        %3728 = vmatpush1.bf16.msra.mxu0 0
        %3729 = vmatprep.subr.bf16.mxu0 0
        %3730 = vmatpush1.bf16.msra.mxu0 0
        %3731 = vmatprep.subr.bf16.mxu0 0
        %3732 = vmatpush1.bf16.msra.mxu0 0
        %3733 = vmatprep.subr.bf16.mxu0 0
        %3734 = vmatpush1.bf16.msra.mxu0 0
        %3735 = vmatprep.subr.bf16.mxu0 0
        %3736 = vmatpush1.bf16.msra.mxu0 0
        %3737 = vmatprep.subr.bf16.mxu0 0
        %3738 = vmatpush1.bf16.msra.mxu0 0
        %3739 = vmatprep.mubr.bf16.mxu0 0
        %3740 = vmatmul.mubr.bf16.gmra.mrb[0].mxu0 %v3286
        %v3741 = vpop.f32.mrb[0].mxu0
        %v3742 = vadd.f32 %v3677, %v3741
        %v3743 = vpop.f32.mrb[0].mxu0
        %v3744 = vpop.f32.mrb[0].mxu0
        %v3745 = vadd.f32 %v3680, %v3744
        %v3746 = vpop.f32.mrb[0].mxu0
        %3747 = vmatprep.mubr.bf16.mxu0 0
        %3748 = vmatmul.mubr.bf16.gmra.mrb[0].mxu0 %v3296
        %v3749 = vpop.f32.mrb[0].mxu0
        %v3750 = vadd.f32 %v3685, %v3749
        %v3751 = vpop.f32.mrb[0].mxu0
        %v3752 = vpop.f32.mrb[0].mxu0
        %v3753 = vadd.f32 %v3688, %v3752
        %v3754 = vpop.f32.mrb[0].mxu0
        %3755 = vmatprep.mubr.bf16.mxu0 0
        %3756 = vmatmul.mubr.bf16.gmra.mrb[0].mxu0 %v3306
        %v3757 = vpop.f32.mrb[0].mxu0
        %v3758 = vadd.f32 %v3693, %v3757
        %v3759 = vpop.f32.mrb[0].mxu0
        %v3760 = vpop.f32.mrb[0].mxu0
        %v3761 = vadd.f32 %v3696, %v3760
        %v3762 = vpop.f32.mrb[0].mxu0
        %3763 = vmatprep.mubr.bf16.mxu0 0
        %3764 = vmatmul.mubr.bf16.gmra.mrb[0].mxu0 %v3316
        %v3765 = vpop.f32.mrb[0].mxu0
        %v3766 = vadd.f32 %v3701, %v3765
        %v3767 = vpop.f32.mrb[0].mxu0
        %v3768 = vpop.f32.mrb[0].mxu0
        %v3769 = vadd.f32 %v3704, %v3768
        %v3770 = vpop.f32.mrb[0].mxu0
        %3771 = vdwg.mxu0
        %v3772 = vadd.f32 %v3111, %v3742
        %v3773 = vadd.f32 %v3114, %v3745
        %v3774 = vadd.f32 %v3119, %v3750
        %v3775 = vadd.f32 %v3122, %v3753
        %v3776 = vadd.f32 %v3127, %v3758
        %v3777 = vadd.f32 %v3130, %v3761
        %v3778 = vadd.f32 %v3135, %v3766
        %v3779 = vadd.f32 %v3138, %v3769
        %v3780 = vld [vmem:[#allocation4 + $0x78] sm:$0xf0]
        %v3781 = vld [vmem:[#allocation4 + $0x80] sm:$0xf0]
        %v3782 = vld [vmem:[#allocation4 + $0x88] sm:$0xf0]
        %v3783 = vld [vmem:[#allocation4 + $0x90] sm:$0xf0]
        %v3784 = vld [vmem:[#allocation4 + $0x98] sm:$0xf0]
        %v3785 = vld [vmem:[#allocation4 + $0xa0] sm:$0xff]
        %v3786 = vld [vmem:[#allocation4 + $0xa8] sm:$0xff]
        %v3787 = vld [vmem:[#allocation4 + $0xb0] sm:$0xff]
        %v3788 = vld [vmem:[#allocation4 + $0xb8] sm:$0xff]
        %v3789 = vld [vmem:[#allocation4 + $0xc0] sm:$0xff]
        %v3790 = vld [vmem:[#allocation4 + $0xc8] sm:$0xff]
        %v3791 = vld [vmem:[#allocation4 + $0xd0] sm:$0xff]
        %v3792 = vld [vmem:[#allocation4 + $0xd8] sm:$0xff]
        %v3793 = vld [vmem:[#allocation4 + $0xe0] sm:$0xff]
        %v3794 = vld [vmem:[#allocation4 + $0xe8] sm:$0xff]
        %v3795 = vld [vmem:[#allocation4 + $0xf0] sm:$0xff]
        %v3796 = vld [vmem:[#allocation4 + $0xf8] sm:$0xff]
        %v3797 = vld [vmem:[#allocation4 + $0x100] sm:$0xff]
        %v3798 = vld [vmem:[#allocation4 + $0x108] sm:$0xff]
        %v3799 = vld [vmem:[#allocation4 + $0x110] sm:$0xff]
        %v3800 = vld [vmem:[#allocation4 + $0x118] sm:$0xf]
        %v3801 = vld [vmem:[#allocation4 + $0x120] sm:$0xf]
        %v3802 = vld [vmem:[#allocation4 + $0x128] sm:$0xf]
        %v3803 = vld [vmem:[#allocation4 + $0x130] sm:$0xf]
        %v3804 = vld [vmem:[#allocation4 + $0x138] sm:$0xf]
        %s3805 = scalar_lea.vmem [#allocation9], 960
        %v3806 = vld [vmem:[%s3805] sm:$0xf]
        %v3807 = vld [vmem:[%s3805 + $0x4] sm:$0xf]
        %v3808 = vld [vmem:[%s3805 + $0x8] sm:$0xf]
        %v3809 = vld [vmem:[%s3805 + $0xc] sm:$0xf]
        %v3810 = vld [vmem:[%s3805 + $0x10] sm:$0xf]
        %v3811 = vld [vmem:[%s3805 + $0x14] sm:$0xf]
        %v3812 = vld [vmem:[%s3805 + $0x18] sm:$0xf]
        %v3813 = vld [vmem:[%s3805 + $0x1c] sm:$0xf]
        %v3814 = vld [vmem:[%s3805 + $0x20] sm:$0xf]
        %v3815 = vld [vmem:[%s3805 + $0x24] sm:$0xf]
        %v3816 = vld [vmem:[%s3805 + $0x28] sm:$0xf]
        %v3817 = vld [vmem:[%s3805 + $0x2c] sm:$0xf]
        %v3818 = vld [vmem:[%s3805 + $0x30] sm:$0xf]
        %v3819 = vld [vmem:[%s3805 + $0x34] sm:$0xf]
        %v3820 = vld [vmem:[%s3805 + $0x38] sm:$0xf]
        %v3821 = vld [vmem:[%s3805 + $0x3c] sm:$0xf]
        %v3822 = vld [vmem:[%s3805 + $0x40] sm:$0xf]
        %v3823 = vld [vmem:[%s3805 + $0x44] sm:$0xf]
        %v3824 = vld [vmem:[%s3805 + $0x48] sm:$0xf]
        %v3825 = vld [vmem:[%s3805 + $0x4c] sm:$0xf]
        %v3826 = vld [vmem:[%s3805 + $0x50] sm:$0xf]
        %v3827 = vld [vmem:[%s3805 + $0x54] sm:$0xf]
        %v3828 = vld [vmem:[%s3805 + $0x58] sm:$0xf]
        %v3829 = vld [vmem:[%s3805 + $0x5c] sm:$0xf]
        %v3830 = vld [vmem:[%s3805 + $0x60] sm:$0xf]
        %v3831 = vld [vmem:[%s3805 + $0x64] sm:$0xf]
        %v3832 = vld [vmem:[%s3805 + $0x68] sm:$0xf]
        %v3833 = vld [vmem:[%s3805 + $0x6c] sm:$0xf]
        %v3834 = vld [vmem:[%s3805 + $0x70] sm:$0xf]
        %v3835 = vld [vmem:[%s3805 + $0x74] sm:$0xf]
        %v3836 = vld [vmem:[%s3805 + $0x78] sm:$0xf]
        %v3837 = vld [vmem:[%s3805 + $0x7c] sm:$0xf]
        %v3838 = vld [vmem:[%s3805 + $0x80] sm:$0xf]
        %v3839 = vld [vmem:[%s3805 + $0x84] sm:$0xf]
        %v3840 = vld [vmem:[%s3805 + $0x88] sm:$0xf]
        %v3841 = vld [vmem:[%s3805 + $0x8c] sm:$0xf]
        %v3842 = vld [vmem:[%s3805 + $0x90] sm:$0xf]
        %v3843 = vld [vmem:[%s3805 + $0x94] sm:$0xf]
        %v3844 = vld [vmem:[%s3805 + $0x98] sm:$0xf]
        %v3845 = vld [vmem:[%s3805 + $0x9c] sm:$0xf]
        %v3846 = vld [vmem:[%s3805 + $0xa0] sm:$0xf]
        %v3847 = vld [vmem:[%s3805 + $0xa4] sm:$0xf]
        %v3848 = vld [vmem:[%s3805 + $0xa8] sm:$0xf]
        %v3849 = vld [vmem:[%s3805 + $0xac] sm:$0xf]
        %v3850 = vld [vmem:[%s3805 + $0xb0] sm:$0xf]
        %v3851 = vld [vmem:[%s3805 + $0xb4] sm:$0xf]
        %v3852 = vld [vmem:[%s3805 + $0xb8] sm:$0xf]
        %v3853 = vld [vmem:[%s3805 + $0xbc] sm:$0xf]
        %v3854 = vld [vmem:[%s3805 + $0xc0] sm:$0xf]
        %v3855 = vld [vmem:[%s3805 + $0xc4] sm:$0xf]
        %v3856 = vld [vmem:[%s3805 + $0xc8] sm:$0xf]
        %v3857 = vld [vmem:[%s3805 + $0xcc] sm:$0xf]
        %v3858 = vld [vmem:[%s3805 + $0xd0] sm:$0xf]
        %v3859 = vld [vmem:[%s3805 + $0xd4] sm:$0xf]
        %v3860 = vld [vmem:[%s3805 + $0xd8] sm:$0xf]
        %v3861 = vld [vmem:[%s3805 + $0xdc] sm:$0xf]
        %v3862 = vld [vmem:[%s3805 + $0xe0] sm:$0xf]
        %v3863 = vld [vmem:[%s3805 + $0xe4] sm:$0xf]
        %v3864 = vld [vmem:[%s3805 + $0xe8] sm:$0xf]
        %v3865 = vld [vmem:[%s3805 + $0xec] sm:$0xf]
        %v3866 = vld [vmem:[%s3805 + $0xf0] sm:$0xf]
        %v3867 = vld [vmem:[%s3805 + $0xf4] sm:$0xf]
        %v3868 = vld [vmem:[%s3805 + $0xf8] sm:$0xf]
        %v3869 = vld [vmem:[%s3805 + $0xfc] sm:$0xf]
        %v3870 = vld [vmem:[%s3805 + $0x100] sm:$0xf]
        %v3871 = vld [vmem:[%s3805 + $0x104] sm:$0xf]
        %v3872 = vld [vmem:[%s3805 + $0x108] sm:$0xf]
        %v3873 = vld [vmem:[%s3805 + $0x10c] sm:$0xf]
        %v3874 = vld [vmem:[%s3805 + $0x110] sm:$0xf]
        %v3875 = vld [vmem:[%s3805 + $0x114] sm:$0xf]
        %v3876 = vld [vmem:[%s3805 + $0x118] sm:$0xf]
        %v3877 = vld [vmem:[%s3805 + $0x11c] sm:$0xf]
        %v3878 = vld [vmem:[%s3805 + $0x120] sm:$0xf]
        %v3879 = vld [vmem:[%s3805 + $0x124] sm:$0xf]
        %v3880 = vld [vmem:[%s3805 + $0x128] sm:$0xf]
        %v3881 = vld [vmem:[%s3805 + $0x12c] sm:$0xf]
        %v3882 = vld [vmem:[%s3805 + $0x130] sm:$0xf]
        %v3883 = vld [vmem:[%s3805 + $0x134] sm:$0xf]
        %v3884 = vld [vmem:[%s3805 + $0x138] sm:$0xf]
        %v3885 = vld [vmem:[%s3805 + $0x13c] sm:$0xf]
        %v3911 = vrot.slane %v3780, 4
        %v3912 = vrot.slane %v3785, 4
        %v3913 = vsel %vm792, %v3911, %v3912
        %v3914 = vrot.slane %v3781, 4
        %v3915 = vrot.slane %v3786, 4
        %v3916 = vsel %vm792, %v3914, %v3915
        %v3917 = vrot.slane %v3782, 4
        %v3918 = vrot.slane %v3787, 4
        %v3919 = vsel %vm792, %v3917, %v3918
        %v3920 = vrot.slane %v3783, 4
        %v3921 = vrot.slane %v3788, 4
        %v3922 = vsel %vm792, %v3920, %v3921
        %v3923 = vrot.slane %v3784, 4
        %v3924 = vrot.slane %v3789, 4
        %v3925 = vsel %vm792, %v3923, %v3924
        %v3926 = vrot.slane %v3790, 4
        %v3927 = vsel %vm792, %v3912, %v3926
        %v3928 = vrot.slane %v3791, 4
        %v3929 = vsel %vm792, %v3915, %v3928
        %v3930 = vrot.slane %v3792, 4
        %v3931 = vsel %vm792, %v3918, %v3930
        %v3932 = vrot.slane %v3793, 4
        %v3933 = vsel %vm792, %v3921, %v3932
        %v3934 = vrot.slane %v3794, 4
        %v3935 = vsel %vm792, %v3924, %v3934
        %v3936 = vrot.slane %v3795, 4
        %v3937 = vsel %vm792, %v3926, %v3936
        %v3938 = vrot.slane %v3796, 4
        %v3939 = vsel %vm792, %v3928, %v3938
        %v3940 = vrot.slane %v3797, 4
        %v3941 = vsel %vm792, %v3930, %v3940
        %v3942 = vrot.slane %v3798, 4
        %v3943 = vsel %vm792, %v3932, %v3942
        %v3944 = vrot.slane %v3799, 4
        %v3945 = vsel %vm792, %v3934, %v3944
        %v3946 = vrot.slane %v3800, 4
        %v3947 = vsel %vm792, %v3936, %v3946
        %v3948 = vrot.slane %v3801, 4
        %v3949 = vsel %vm792, %v3938, %v3948
        %v3950 = vrot.slane %v3802, 4
        %v3951 = vsel %vm792, %v3940, %v3950
        %v3952 = vrot.slane %v3803, 4
        %v3953 = vsel %vm792, %v3942, %v3952
        %v3954 = vrot.slane %v3804, 4
        %v3955 = vsel %vm792, %v3944, %v3954
        %v4056 = vunpack.c.l.b16 %v3806
        %v4057 = vunpack.c.l.b16 %v3807
        %v4058 = vunpack.c.l.b16 %v3808
        %v4059 = vunpack.c.l.b16 %v3809
        %v4060 = vunpack.c.l.b16 %v3810
        %v4061 = vunpack.c.l.b16 %v3811
        %v4062 = vunpack.c.l.b16 %v3812
        %v4063 = vunpack.c.l.b16 %v3813
        %v4064 = vunpack.c.l.b16 %v3814
        %v4065 = vunpack.c.l.b16 %v3815
        %v4066 = vunpack.c.l.b16 %v3816
        %v4067 = vunpack.c.l.b16 %v3817
        %v4068 = vunpack.c.l.b16 %v3818
        %v4069 = vunpack.c.l.b16 %v3819
        %v4070 = vunpack.c.l.b16 %v3820
        %v4071 = vunpack.c.l.b16 %v3821
        %v4072 = vunpack.c.l.b16 %v3822
        %v4073 = vunpack.c.l.b16 %v3823
        %v4074 = vunpack.c.l.b16 %v3824
        %v4075 = vunpack.c.l.b16 %v3825
        %v4076 = vunpack.c.l.b16 %v3826
        %v4077 = vunpack.c.l.b16 %v3827
        %v4078 = vunpack.c.l.b16 %v3828
        %v4079 = vunpack.c.l.b16 %v3829
        %v4080 = vunpack.c.l.b16 %v3830
        %v4081 = vunpack.c.l.b16 %v3831
        %v4082 = vunpack.c.l.b16 %v3832
        %v4083 = vunpack.c.l.b16 %v3833
        %v4084 = vunpack.c.l.b16 %v3834
        %v4085 = vunpack.c.l.b16 %v3835
        %v4086 = vunpack.c.l.b16 %v3836
        %v4087 = vunpack.c.l.b16 %v3837
        %v4088 = vunpack.c.l.b16 %v3838
        %v4089 = vunpack.c.l.b16 %v3839
        %v4090 = vunpack.c.l.b16 %v3840
        %v4091 = vunpack.c.l.b16 %v3841
        %v4092 = vunpack.c.l.b16 %v3842
        %v4093 = vunpack.c.l.b16 %v3843
        %v4094 = vunpack.c.l.b16 %v3844
        %v4095 = vunpack.c.l.b16 %v3845
        %v4096 = vunpack.c.l.b16 %v3846
        %v4097 = vunpack.c.l.b16 %v3847
        %v4098 = vunpack.c.l.b16 %v3848
        %v4099 = vunpack.c.l.b16 %v3849
        %v4100 = vunpack.c.l.b16 %v3850
        %v4101 = vunpack.c.l.b16 %v3851
        %v4102 = vunpack.c.l.b16 %v3852
        %v4103 = vunpack.c.l.b16 %v3853
        %v4104 = vunpack.c.l.b16 %v3854
        %v4105 = vunpack.c.l.b16 %v3855
        %v4106 = vunpack.c.l.b16 %v3856
        %v4107 = vunpack.c.l.b16 %v3857
        %v4108 = vunpack.c.l.b16 %v3858
        %v4109 = vunpack.c.l.b16 %v3859
        %v4110 = vunpack.c.l.b16 %v3860
        %v4111 = vunpack.c.l.b16 %v3861
        %v4112 = vunpack.c.l.b16 %v3862
        %v4113 = vunpack.c.l.b16 %v3863
        %v4114 = vunpack.c.l.b16 %v3864
        %v4115 = vunpack.c.l.b16 %v3865
        %v4116 = vunpack.c.l.b16 %v3866
        %v4117 = vunpack.c.l.b16 %v3867
        %v4118 = vunpack.c.l.b16 %v3868
        %v4119 = vunpack.c.l.b16 %v3869
        %v4120 = vunpack.c.l.b16 %v3870
        %v4121 = vunpack.c.l.b16 %v3871
        %v4122 = vunpack.c.l.b16 %v3872
        %v4123 = vunpack.c.l.b16 %v3873
        %v4124 = vunpack.c.l.b16 %v3874
        %v4125 = vunpack.c.l.b16 %v3875
        %v4126 = vunpack.c.l.b16 %v3876
        %v4127 = vunpack.c.l.b16 %v3877
        %v4128 = vunpack.c.l.b16 %v3878
        %v4129 = vunpack.c.l.b16 %v3879
        %v4130 = vunpack.c.l.b16 %v3880
        %v4131 = vunpack.c.l.b16 %v3881
        %v4132 = vunpack.c.l.b16 %v3882
        %v4133 = vunpack.c.l.b16 %v3883
        %v4134 = vunpack.c.l.b16 %v3884
        %v4135 = vunpack.c.l.b16 %v3885
        %v4136 = vpack.c.b16 %v4057, %v4056
        %v4137 = vpack.c.b16 %v4059, %v4058
        %v4138 = vpack.c.b16 %v4061, %v4060
        %v4139 = vpack.c.b16 %v4063, %v4062
        %v4140 = vpack.c.b16 %v4065, %v4064
        %v4141 = vpack.c.b16 %v4067, %v4066
        %v4142 = vpack.c.b16 %v4069, %v4068
        %v4143 = vpack.c.b16 %v4071, %v4070
        %v4144 = vpack.c.b16 %v4073, %v4072
        %v4145 = vpack.c.b16 %v4075, %v4074
        %v4146 = vpack.c.b16 %v4077, %v4076
        %v4147 = vpack.c.b16 %v4079, %v4078
        %v4148 = vpack.c.b16 %v4081, %v4080
        %v4149 = vpack.c.b16 %v4083, %v4082
        %v4150 = vpack.c.b16 %v4085, %v4084
        %v4151 = vpack.c.b16 %v4087, %v4086
        %v4152 = vpack.c.b16 %v4089, %v4088
        %v4153 = vpack.c.b16 %v4091, %v4090
        %v4154 = vpack.c.b16 %v4093, %v4092
        %v4155 = vpack.c.b16 %v4095, %v4094
        %v4156 = vpack.c.b16 %v4097, %v4096
        %v4157 = vpack.c.b16 %v4099, %v4098
        %v4158 = vpack.c.b16 %v4101, %v4100
        %v4159 = vpack.c.b16 %v4103, %v4102
        %v4160 = vpack.c.b16 %v4105, %v4104
        %v4161 = vpack.c.b16 %v4107, %v4106
        %v4162 = vpack.c.b16 %v4109, %v4108
        %v4163 = vpack.c.b16 %v4111, %v4110
        %v4164 = vpack.c.b16 %v4113, %v4112
        %v4165 = vpack.c.b16 %v4115, %v4114
        %v4166 = vpack.c.b16 %v4117, %v4116
        %v4167 = vpack.c.b16 %v4119, %v4118
        %v4168 = vpack.c.b16 %v4121, %v4120
        %v4169 = vpack.c.b16 %v4123, %v4122
        %v4170 = vpack.c.b16 %v4125, %v4124
        %v4171 = vpack.c.b16 %v4127, %v4126
        %v4172 = vpack.c.b16 %v4129, %v4128
        %v4173 = vpack.c.b16 %v4131, %v4130
        %v4174 = vpack.c.b16 %v4133, %v4132
        %v4175 = vpack.c.b16 %v4135, %v4134
        %4216 = vmatprep.subr.bf16.mxu0 0
        %4217 = vmatpush1.bf16.msra.mxu0 %v4136
        %4218 = vmatprep.subr.bf16.mxu0 0
        %4219 = vmatpush1.bf16.msra.mxu0 %v4137
        %4220 = vmatprep.subr.bf16.mxu0 0
        %4221 = vmatpush1.bf16.msra.mxu0 %v4138
        %4222 = vmatprep.subr.bf16.mxu0 0
        %4223 = vmatpush1.bf16.msra.mxu0 %v4139
        %4224 = vmatprep.subr.bf16.mxu0 0
        %4225 = vmatpush1.bf16.msra.mxu0 %v4140
        %4226 = vmatprep.subr.bf16.mxu0 0
        %4227 = vmatpush1.bf16.msra.mxu0 %v4141
        %4228 = vmatprep.subr.bf16.mxu0 0
        %4229 = vmatpush1.bf16.msra.mxu0 %v4142
        %4230 = vmatprep.subr.bf16.mxu0 0
        %4231 = vmatpush1.bf16.msra.mxu0 %v4143
        %4232 = vmatprep.subr.bf16.mxu0 0
        %4233 = vmatpush1.bf16.msra.mxu0 %v4144
        %4234 = vmatprep.subr.bf16.mxu0 0
        %4235 = vmatpush1.bf16.msra.mxu0 %v4145
        %4236 = vmatprep.subr.bf16.mxu0 0
        %4237 = vmatpush1.bf16.msra.mxu0 %v4146
        %4238 = vmatprep.subr.bf16.mxu0 0
        %4239 = vmatpush1.bf16.msra.mxu0 %v4147
        %4240 = vmatprep.subr.bf16.mxu0 0
        %4241 = vmatpush1.bf16.msra.mxu0 %v4148
        %4242 = vmatprep.subr.bf16.mxu0 0
        %4243 = vmatpush1.bf16.msra.mxu0 %v4149
        %4244 = vmatprep.subr.bf16.mxu0 0
        %4245 = vmatpush1.bf16.msra.mxu0 %v4150
        %4246 = vmatprep.subr.bf16.mxu0 0
        %4247 = vmatpush1.bf16.msra.mxu0 %v4151
        %4248 = vmatprep.mubr.bf16.mxu0 %v3916
        %4249 = vmatmul.mubr.bf16.gmra.mrb[0].mxu0 %v3913
        %v4250 = vpop.f32.mrb[0].mxu0
        %v4251 = vadd.f32 0.0, %v4250
        %v4252 = vpop.f32.mrb[0].mxu0
        %v4253 = vpop.f32.mrb[0].mxu0
        %v4254 = vadd.f32 0.0, %v4253
        %v4255 = vpop.f32.mrb[0].mxu0
        %4256 = vmatprep.mubr.bf16.mxu0 %v3929
        %4257 = vmatmul.mubr.bf16.gmra.mrb[0].mxu0 %v3927
        %v4258 = vpop.f32.mrb[0].mxu0
        %v4259 = vadd.f32 0.0, %v4258
        %v4260 = vpop.f32.mrb[0].mxu0
        %v4261 = vpop.f32.mrb[0].mxu0
        %v4262 = vadd.f32 0.0, %v4261
        %v4263 = vpop.f32.mrb[0].mxu0
        %4264 = vmatprep.mubr.bf16.mxu0 %v3939
        %4265 = vmatmul.mubr.bf16.gmra.mrb[0].mxu0 %v3937
        %v4266 = vpop.f32.mrb[0].mxu0
        %v4267 = vadd.f32 0.0, %v4266
        %v4268 = vpop.f32.mrb[0].mxu0
        %v4269 = vpop.f32.mrb[0].mxu0
        %v4270 = vadd.f32 0.0, %v4269
        %v4271 = vpop.f32.mrb[0].mxu0
        %4272 = vmatprep.mubr.bf16.mxu0 %v3949
        %4273 = vmatmul.mubr.bf16.gmra.mrb[0].mxu0 %v3947
        %v4274 = vpop.f32.mrb[0].mxu0
        %v4275 = vadd.f32 0.0, %v4274
        %v4276 = vpop.f32.mrb[0].mxu0
        %v4277 = vpop.f32.mrb[0].mxu0
        %v4278 = vadd.f32 0.0, %v4277
        %v4279 = vpop.f32.mrb[0].mxu0
        %4280 = vdwg.mxu0
        %4281 = vmatprep.subr.bf16.mxu0 0
        %4282 = vmatpush1.bf16.msra.mxu0 %v4152
        %4283 = vmatprep.subr.bf16.mxu0 0
        %4284 = vmatpush1.bf16.msra.mxu0 %v4153
        %4285 = vmatprep.subr.bf16.mxu0 0
        %4286 = vmatpush1.bf16.msra.mxu0 %v4154
        %4287 = vmatprep.subr.bf16.mxu0 0
        %4288 = vmatpush1.bf16.msra.mxu0 %v4155
        %4289 = vmatprep.subr.bf16.mxu0 0
        %4290 = vmatpush1.bf16.msra.mxu0 %v4156
        %4291 = vmatprep.subr.bf16.mxu0 0
        %4292 = vmatpush1.bf16.msra.mxu0 %v4157
        %4293 = vmatprep.subr.bf16.mxu0 0
        %4294 = vmatpush1.bf16.msra.mxu0 %v4158
        %4295 = vmatprep.subr.bf16.mxu0 0
        %4296 = vmatpush1.bf16.msra.mxu0 %v4159
        %4297 = vmatprep.subr.bf16.mxu0 0
        %4298 = vmatpush1.bf16.msra.mxu0 %v4160
        %4299 = vmatprep.subr.bf16.mxu0 0
        %4300 = vmatpush1.bf16.msra.mxu0 %v4161
        %4301 = vmatprep.subr.bf16.mxu0 0
        %4302 = vmatpush1.bf16.msra.mxu0 %v4162
        %4303 = vmatprep.subr.bf16.mxu0 0
        %4304 = vmatpush1.bf16.msra.mxu0 %v4163
        %4305 = vmatprep.subr.bf16.mxu0 0
        %4306 = vmatpush1.bf16.msra.mxu0 %v4164
        %4307 = vmatprep.subr.bf16.mxu0 0
        %4308 = vmatpush1.bf16.msra.mxu0 %v4165
        %4309 = vmatprep.subr.bf16.mxu0 0
        %4310 = vmatpush1.bf16.msra.mxu0 %v4166
        %4311 = vmatprep.subr.bf16.mxu0 0
        %4312 = vmatpush1.bf16.msra.mxu0 %v4167
        %4313 = vmatprep.mubr.bf16.mxu0 %v3922
        %4314 = vmatmul.mubr.bf16.gmra.mrb[0].mxu0 %v3919
        %v4315 = vpop.f32.mrb[0].mxu0
        %v4316 = vadd.f32 %v4251, %v4315
        %v4317 = vpop.f32.mrb[0].mxu0
        %v4318 = vpop.f32.mrb[0].mxu0
        %v4319 = vadd.f32 %v4254, %v4318
        %v4320 = vpop.f32.mrb[0].mxu0
        %4321 = vmatprep.mubr.bf16.mxu0 %v3933
        %4322 = vmatmul.mubr.bf16.gmra.mrb[0].mxu0 %v3931
        %v4323 = vpop.f32.mrb[0].mxu0
        %v4324 = vadd.f32 %v4259, %v4323
        %v4325 = vpop.f32.mrb[0].mxu0
        %v4326 = vpop.f32.mrb[0].mxu0
        %v4327 = vadd.f32 %v4262, %v4326
        %v4328 = vpop.f32.mrb[0].mxu0
        %4329 = vmatprep.mubr.bf16.mxu0 %v3943
        %4330 = vmatmul.mubr.bf16.gmra.mrb[0].mxu0 %v3941
        %v4331 = vpop.f32.mrb[0].mxu0
        %v4332 = vadd.f32 %v4267, %v4331
        %v4333 = vpop.f32.mrb[0].mxu0
        %v4334 = vpop.f32.mrb[0].mxu0
        %v4335 = vadd.f32 %v4270, %v4334
        %v4336 = vpop.f32.mrb[0].mxu0
        %4337 = vmatprep.mubr.bf16.mxu0 %v3953
        %4338 = vmatmul.mubr.bf16.gmra.mrb[0].mxu0 %v3951
        %v4339 = vpop.f32.mrb[0].mxu0
        %v4340 = vadd.f32 %v4275, %v4339
        %v4341 = vpop.f32.mrb[0].mxu0
        %v4342 = vpop.f32.mrb[0].mxu0
        %v4343 = vadd.f32 %v4278, %v4342
        %v4344 = vpop.f32.mrb[0].mxu0
        %4345 = vdwg.mxu0
        %4346 = vmatprep.subr.bf16.mxu0 0
        %4347 = vmatpush1.bf16.msra.mxu0 %v4168
        %4348 = vmatprep.subr.bf16.mxu0 0
        %4349 = vmatpush1.bf16.msra.mxu0 %v4169
        %4350 = vmatprep.subr.bf16.mxu0 0
        %4351 = vmatpush1.bf16.msra.mxu0 %v4170
        %4352 = vmatprep.subr.bf16.mxu0 0
        %4353 = vmatpush1.bf16.msra.mxu0 %v4171
        %4354 = vmatprep.subr.bf16.mxu0 0
        %4355 = vmatpush1.bf16.msra.mxu0 %v4172
        %4356 = vmatprep.subr.bf16.mxu0 0
        %4357 = vmatpush1.bf16.msra.mxu0 %v4173
        %4358 = vmatprep.subr.bf16.mxu0 0
        %4359 = vmatpush1.bf16.msra.mxu0 %v4174
        %4360 = vmatprep.subr.bf16.mxu0 0
        %4361 = vmatpush1.bf16.msra.mxu0 %v4175
        %4362 = vmatprep.subr.bf16.mxu0 0
        %4363 = vmatpush1.bf16.msra.mxu0 0
        %4364 = vmatprep.subr.bf16.mxu0 0
        %4365 = vmatpush1.bf16.msra.mxu0 0
        %4366 = vmatprep.subr.bf16.mxu0 0
        %4367 = vmatpush1.bf16.msra.mxu0 0
        %4368 = vmatprep.subr.bf16.mxu0 0
        %4369 = vmatpush1.bf16.msra.mxu0 0
        %4370 = vmatprep.subr.bf16.mxu0 0
        %4371 = vmatpush1.bf16.msra.mxu0 0
        %4372 = vmatprep.subr.bf16.mxu0 0
        %4373 = vmatpush1.bf16.msra.mxu0 0
        %4374 = vmatprep.subr.bf16.mxu0 0
        %4375 = vmatpush1.bf16.msra.mxu0 0
        %4376 = vmatprep.subr.bf16.mxu0 0
        %4377 = vmatpush1.bf16.msra.mxu0 0
        %4378 = vmatprep.mubr.bf16.mxu0 0
        %4379 = vmatmul.mubr.bf16.gmra.mrb[0].mxu0 %v3925
        %v4380 = vpop.f32.mrb[0].mxu0
        %v4381 = vadd.f32 %v4316, %v4380
        %v4382 = vpop.f32.mrb[0].mxu0
        %v4383 = vpop.f32.mrb[0].mxu0
        %v4384 = vadd.f32 %v4319, %v4383
        %v4385 = vpop.f32.mrb[0].mxu0
        %4386 = vmatprep.mubr.bf16.mxu0 0
        %4387 = vmatmul.mubr.bf16.gmra.mrb[0].mxu0 %v3935
        %v4388 = vpop.f32.mrb[0].mxu0
        %v4389 = vadd.f32 %v4324, %v4388
        %v4390 = vpop.f32.mrb[0].mxu0
        %v4391 = vpop.f32.mrb[0].mxu0
        %v4392 = vadd.f32 %v4327, %v4391
        %v4393 = vpop.f32.mrb[0].mxu0
        %4394 = vmatprep.mubr.bf16.mxu0 0
        %4395 = vmatmul.mubr.bf16.gmra.mrb[0].mxu0 %v3945
        %v4396 = vpop.f32.mrb[0].mxu0
        %v4397 = vadd.f32 %v4332, %v4396
        %v4398 = vpop.f32.mrb[0].mxu0
        %v4399 = vpop.f32.mrb[0].mxu0
        %v4400 = vadd.f32 %v4335, %v4399
        %v4401 = vpop.f32.mrb[0].mxu0
        %4402 = vmatprep.mubr.bf16.mxu0 0
        %4403 = vmatmul.mubr.bf16.gmra.mrb[0].mxu0 %v3955
        %v4404 = vpop.f32.mrb[0].mxu0
        %v4405 = vadd.f32 %v4340, %v4404
        %v4406 = vpop.f32.mrb[0].mxu0
        %v4407 = vpop.f32.mrb[0].mxu0
        %v4408 = vadd.f32 %v4343, %v4407
        %v4409 = vpop.f32.mrb[0].mxu0
        %4410 = vdwg.mxu0
        %v4411 = vadd.f32 %v3772, %v4381
        %v4412 = vadd.f32 %v3773, %v4384
        %v4413 = vadd.f32 %v3774, %v4389
        %v4414 = vadd.f32 %v3775, %v4392
        %v4415 = vadd.f32 %v3776, %v4397
        %v4416 = vadd.f32 %v3777, %v4400
        %v4417 = vadd.f32 %v3778, %v4405
        %v4418 = vadd.f32 %v3779, %v4408
        %v4419 = vld [vmem:[#allocation4 + $0xa0] sm:$0xf0]
        %v4420 = vld [vmem:[#allocation4 + $0xa8] sm:$0xf0]
        %v4421 = vld [vmem:[#allocation4 + $0xb0] sm:$0xf0]
        %v4422 = vld [vmem:[#allocation4 + $0xb8] sm:$0xf0]
        %v4423 = vld [vmem:[#allocation4 + $0xc0] sm:$0xf0]
        %v4424 = vld [vmem:[#allocation4 + $0xc8] sm:$0xff]
        %v4425 = vld [vmem:[#allocation4 + $0xd0] sm:$0xff]
        %v4426 = vld [vmem:[#allocation4 + $0xd8] sm:$0xff]
        %v4427 = vld [vmem:[#allocation4 + $0xe0] sm:$0xff]
        %v4428 = vld [vmem:[#allocation4 + $0xe8] sm:$0xff]
        %v4429 = vld [vmem:[#allocation4 + $0xf0] sm:$0xff]
        %v4430 = vld [vmem:[#allocation4 + $0xf8] sm:$0xff]
        %v4431 = vld [vmem:[#allocation4 + $0x100] sm:$0xff]
        %v4432 = vld [vmem:[#allocation4 + $0x108] sm:$0xff]
        %v4433 = vld [vmem:[#allocation4 + $0x110] sm:$0xff]
        %v4434 = vld [vmem:[#allocation4 + $0x118] sm:$0xff]
        %v4435 = vld [vmem:[#allocation4 + $0x120] sm:$0xff]
        %v4436 = vld [vmem:[#allocation4 + $0x128] sm:$0xff]
        %v4437 = vld [vmem:[#allocation4 + $0x130] sm:$0xff]
        %v4438 = vld [vmem:[#allocation4 + $0x138] sm:$0xff]
        %v4439 = vld [vmem:[#allocation4 + $0x140] sm:$0xf]
        %v4440 = vld [vmem:[#allocation4 + $0x148] sm:$0xf]
        %v4441 = vld [vmem:[#allocation4 + $0x150] sm:$0xf]
        %v4442 = vld [vmem:[#allocation4 + $0x158] sm:$0xf]
        %v4443 = vld [vmem:[#allocation4 + $0x160] sm:$0xf]
        %s4444 = scalar_lea.vmem [#allocation9], 1280
        %v4445 = vld [vmem:[%s4444] sm:$0xf]
        %v4446 = vld [vmem:[%s4444 + $0x4] sm:$0xf]
        %v4447 = vld [vmem:[%s4444 + $0x8] sm:$0xf]
        %v4448 = vld [vmem:[%s4444 + $0xc] sm:$0xf]
        %v4449 = vld [vmem:[%s4444 + $0x10] sm:$0xf]
        %v4450 = vld [vmem:[%s4444 + $0x14] sm:$0xf]
        %v4451 = vld [vmem:[%s4444 + $0x18] sm:$0xf]
        %v4452 = vld [vmem:[%s4444 + $0x1c] sm:$0xf]
        %v4453 = vld [vmem:[%s4444 + $0x20] sm:$0xf]
        %v4454 = vld [vmem:[%s4444 + $0x24] sm:$0xf]
        %v4455 = vld [vmem:[%s4444 + $0x28] sm:$0xf]
        %v4456 = vld [vmem:[%s4444 + $0x2c] sm:$0xf]
        %v4457 = vld [vmem:[%s4444 + $0x30] sm:$0xf]
        %v4458 = vld [vmem:[%s4444 + $0x34] sm:$0xf]
        %v4459 = vld [vmem:[%s4444 + $0x38] sm:$0xf]
        %v4460 = vld [vmem:[%s4444 + $0x3c] sm:$0xf]
        %v4461 = vld [vmem:[%s4444 + $0x40] sm:$0xf]
        %v4462 = vld [vmem:[%s4444 + $0x44] sm:$0xf]
        %v4463 = vld [vmem:[%s4444 + $0x48] sm:$0xf]
        %v4464 = vld [vmem:[%s4444 + $0x4c] sm:$0xf]
        %v4465 = vld [vmem:[%s4444 + $0x50] sm:$0xf]
        %v4466 = vld [vmem:[%s4444 + $0x54] sm:$0xf]
        %v4467 = vld [vmem:[%s4444 + $0x58] sm:$0xf]
        %v4468 = vld [vmem:[%s4444 + $0x5c] sm:$0xf]
        %v4469 = vld [vmem:[%s4444 + $0x60] sm:$0xf]
        %v4470 = vld [vmem:[%s4444 + $0x64] sm:$0xf]
        %v4471 = vld [vmem:[%s4444 + $0x68] sm:$0xf]
        %v4472 = vld [vmem:[%s4444 + $0x6c] sm:$0xf]
        %v4473 = vld [vmem:[%s4444 + $0x70] sm:$0xf]
        %v4474 = vld [vmem:[%s4444 + $0x74] sm:$0xf]
        %v4475 = vld [vmem:[%s4444 + $0x78] sm:$0xf]
        %v4476 = vld [vmem:[%s4444 + $0x7c] sm:$0xf]
        %v4477 = vld [vmem:[%s4444 + $0x80] sm:$0xf]
        %v4478 = vld [vmem:[%s4444 + $0x84] sm:$0xf]
        %v4479 = vld [vmem:[%s4444 + $0x88] sm:$0xf]
        %v4480 = vld [vmem:[%s4444 + $0x8c] sm:$0xf]
        %v4481 = vld [vmem:[%s4444 + $0x90] sm:$0xf]
        %v4482 = vld [vmem:[%s4444 + $0x94] sm:$0xf]
        %v4483 = vld [vmem:[%s4444 + $0x98] sm:$0xf]
        %v4484 = vld [vmem:[%s4444 + $0x9c] sm:$0xf]
        %v4485 = vld [vmem:[%s4444 + $0xa0] sm:$0xf]
        %v4486 = vld [vmem:[%s4444 + $0xa4] sm:$0xf]
        %v4487 = vld [vmem:[%s4444 + $0xa8] sm:$0xf]
        %v4488 = vld [vmem:[%s4444 + $0xac] sm:$0xf]
        %v4489 = vld [vmem:[%s4444 + $0xb0] sm:$0xf]
        %v4490 = vld [vmem:[%s4444 + $0xb4] sm:$0xf]
        %v4491 = vld [vmem:[%s4444 + $0xb8] sm:$0xf]
        %v4492 = vld [vmem:[%s4444 + $0xbc] sm:$0xf]
        %v4493 = vld [vmem:[%s4444 + $0xc0] sm:$0xf]
        %v4494 = vld [vmem:[%s4444 + $0xc4] sm:$0xf]
        %v4495 = vld [vmem:[%s4444 + $0xc8] sm:$0xf]
        %v4496 = vld [vmem:[%s4444 + $0xcc] sm:$0xf]
        %v4497 = vld [vmem:[%s4444 + $0xd0] sm:$0xf]
        %v4498 = vld [vmem:[%s4444 + $0xd4] sm:$0xf]
        %v4499 = vld [vmem:[%s4444 + $0xd8] sm:$0xf]
        %v4500 = vld [vmem:[%s4444 + $0xdc] sm:$0xf]
        %v4501 = vld [vmem:[%s4444 + $0xe0] sm:$0xf]
        %v4502 = vld [vmem:[%s4444 + $0xe4] sm:$0xf]
        %v4503 = vld [vmem:[%s4444 + $0xe8] sm:$0xf]
        %v4504 = vld [vmem:[%s4444 + $0xec] sm:$0xf]
        %v4505 = vld [vmem:[%s4444 + $0xf0] sm:$0xf]
        %v4506 = vld [vmem:[%s4444 + $0xf4] sm:$0xf]
        %v4507 = vld [vmem:[%s4444 + $0xf8] sm:$0xf]
        %v4508 = vld [vmem:[%s4444 + $0xfc] sm:$0xf]
        %v4509 = vld [vmem:[%s4444 + $0x100] sm:$0xf]
        %v4510 = vld [vmem:[%s4444 + $0x104] sm:$0xf]
        %v4511 = vld [vmem:[%s4444 + $0x108] sm:$0xf]
        %v4512 = vld [vmem:[%s4444 + $0x10c] sm:$0xf]
        %v4513 = vld [vmem:[%s4444 + $0x110] sm:$0xf]
        %v4514 = vld [vmem:[%s4444 + $0x114] sm:$0xf]
        %v4515 = vld [vmem:[%s4444 + $0x118] sm:$0xf]
        %v4516 = vld [vmem:[%s4444 + $0x11c] sm:$0xf]
        %v4517 = vld [vmem:[%s4444 + $0x120] sm:$0xf]
        %v4518 = vld [vmem:[%s4444 + $0x124] sm:$0xf]
        %v4519 = vld [vmem:[%s4444 + $0x128] sm:$0xf]
        %v4520 = vld [vmem:[%s4444 + $0x12c] sm:$0xf]
        %v4521 = vld [vmem:[%s4444 + $0x130] sm:$0xf]
        %v4522 = vld [vmem:[%s4444 + $0x134] sm:$0xf]
        %v4523 = vld [vmem:[%s4444 + $0x138] sm:$0xf]
        %v4524 = vld [vmem:[%s4444 + $0x13c] sm:$0xf]
        %v4550 = vrot.slane %v4419, 4
        %v4551 = vrot.slane %v4424, 4
        %v4552 = vsel %vm792, %v4550, %v4551
        %v4553 = vrot.slane %v4420, 4
        %v4554 = vrot.slane %v4425, 4
        %v4555 = vsel %vm792, %v4553, %v4554
        %v4556 = vrot.slane %v4421, 4
        %v4557 = vrot.slane %v4426, 4
        %v4558 = vsel %vm792, %v4556, %v4557
        %v4559 = vrot.slane %v4422, 4
        %v4560 = vrot.slane %v4427, 4
        %v4561 = vsel %vm792, %v4559, %v4560
        %v4562 = vrot.slane %v4423, 4
        %v4563 = vrot.slane %v4428, 4
        %v4564 = vsel %vm792, %v4562, %v4563
        %v4565 = vrot.slane %v4429, 4
        %v4566 = vsel %vm792, %v4551, %v4565
        %v4567 = vrot.slane %v4430, 4
        %v4568 = vsel %vm792, %v4554, %v4567
        %v4569 = vrot.slane %v4431, 4
        %v4570 = vsel %vm792, %v4557, %v4569
        %v4571 = vrot.slane %v4432, 4
        %v4572 = vsel %vm792, %v4560, %v4571
        %v4573 = vrot.slane %v4433, 4
        %v4574 = vsel %vm792, %v4563, %v4573
        %v4575 = vrot.slane %v4434, 4
        %v4576 = vsel %vm792, %v4565, %v4575
        %v4577 = vrot.slane %v4435, 4
        %v4578 = vsel %vm792, %v4567, %v4577
        %v4579 = vrot.slane %v4436, 4
        %v4580 = vsel %vm792, %v4569, %v4579
        %v4581 = vrot.slane %v4437, 4
        %v4582 = vsel %vm792, %v4571, %v4581
        %v4583 = vrot.slane %v4438, 4
        %v4584 = vsel %vm792, %v4573, %v4583
        %v4585 = vrot.slane %v4439, 4
        %v4586 = vsel %vm792, %v4575, %v4585
        %v4587 = vrot.slane %v4440, 4
        %v4588 = vsel %vm792, %v4577, %v4587
        %v4589 = vrot.slane %v4441, 4
        %v4590 = vsel %vm792, %v4579, %v4589
        %v4591 = vrot.slane %v4442, 4
        %v4592 = vsel %vm792, %v4581, %v4591
        %v4593 = vrot.slane %v4443, 4
        %v4594 = vsel %vm792, %v4583, %v4593
        %v4695 = vunpack.c.l.b16 %v4445
        %v4696 = vunpack.c.l.b16 %v4446
        %v4697 = vunpack.c.l.b16 %v4447
        %v4698 = vunpack.c.l.b16 %v4448
        %v4699 = vunpack.c.l.b16 %v4449
        %v4700 = vunpack.c.l.b16 %v4450
        %v4701 = vunpack.c.l.b16 %v4451
        %v4702 = vunpack.c.l.b16 %v4452
        %v4703 = vunpack.c.l.b16 %v4453
        %v4704 = vunpack.c.l.b16 %v4454
        %v4705 = vunpack.c.l.b16 %v4455
        %v4706 = vunpack.c.l.b16 %v4456
        %v4707 = vunpack.c.l.b16 %v4457
        %v4708 = vunpack.c.l.b16 %v4458
        %v4709 = vunpack.c.l.b16 %v4459
        %v4710 = vunpack.c.l.b16 %v4460
        %v4711 = vunpack.c.l.b16 %v4461
        %v4712 = vunpack.c.l.b16 %v4462
        %v4713 = vunpack.c.l.b16 %v4463
        %v4714 = vunpack.c.l.b16 %v4464
        %v4715 = vunpack.c.l.b16 %v4465
        %v4716 = vunpack.c.l.b16 %v4466
        %v4717 = vunpack.c.l.b16 %v4467
        %v4718 = vunpack.c.l.b16 %v4468
        %v4719 = vunpack.c.l.b16 %v4469
        %v4720 = vunpack.c.l.b16 %v4470
        %v4721 = vunpack.c.l.b16 %v4471
        %v4722 = vunpack.c.l.b16 %v4472
        %v4723 = vunpack.c.l.b16 %v4473
        %v4724 = vunpack.c.l.b16 %v4474
        %v4725 = vunpack.c.l.b16 %v4475
        %v4726 = vunpack.c.l.b16 %v4476
        %v4727 = vunpack.c.l.b16 %v4477
        %v4728 = vunpack.c.l.b16 %v4478
        %v4729 = vunpack.c.l.b16 %v4479
        %v4730 = vunpack.c.l.b16 %v4480
        %v4731 = vunpack.c.l.b16 %v4481
        %v4732 = vunpack.c.l.b16 %v4482
        %v4733 = vunpack.c.l.b16 %v4483
        %v4734 = vunpack.c.l.b16 %v4484
        %v4735 = vunpack.c.l.b16 %v4485
        %v4736 = vunpack.c.l.b16 %v4486
        %v4737 = vunpack.c.l.b16 %v4487
        %v4738 = vunpack.c.l.b16 %v4488
        %v4739 = vunpack.c.l.b16 %v4489
        %v4740 = vunpack.c.l.b16 %v4490
        %v4741 = vunpack.c.l.b16 %v4491
        %v4742 = vunpack.c.l.b16 %v4492
        %v4743 = vunpack.c.l.b16 %v4493
        %v4744 = vunpack.c.l.b16 %v4494
        %v4745 = vunpack.c.l.b16 %v4495
        %v4746 = vunpack.c.l.b16 %v4496
        %v4747 = vunpack.c.l.b16 %v4497
        %v4748 = vunpack.c.l.b16 %v4498
        %v4749 = vunpack.c.l.b16 %v4499
        %v4750 = vunpack.c.l.b16 %v4500
        %v4751 = vunpack.c.l.b16 %v4501
        %v4752 = vunpack.c.l.b16 %v4502
        %v4753 = vunpack.c.l.b16 %v4503
        %v4754 = vunpack.c.l.b16 %v4504
        %v4755 = vunpack.c.l.b16 %v4505
        %v4756 = vunpack.c.l.b16 %v4506
        %v4757 = vunpack.c.l.b16 %v4507
        %v4758 = vunpack.c.l.b16 %v4508
        %v4759 = vunpack.c.l.b16 %v4509
        %v4760 = vunpack.c.l.b16 %v4510
        %v4761 = vunpack.c.l.b16 %v4511
        %v4762 = vunpack.c.l.b16 %v4512
        %v4763 = vunpack.c.l.b16 %v4513
        %v4764 = vunpack.c.l.b16 %v4514
        %v4765 = vunpack.c.l.b16 %v4515
        %v4766 = vunpack.c.l.b16 %v4516
        %v4767 = vunpack.c.l.b16 %v4517
        %v4768 = vunpack.c.l.b16 %v4518
        %v4769 = vunpack.c.l.b16 %v4519
        %v4770 = vunpack.c.l.b16 %v4520
        %v4771 = vunpack.c.l.b16 %v4521
        %v4772 = vunpack.c.l.b16 %v4522
        %v4773 = vunpack.c.l.b16 %v4523
        %v4774 = vunpack.c.l.b16 %v4524
        %v4775 = vpack.c.b16 %v4696, %v4695
        %v4776 = vpack.c.b16 %v4698, %v4697
        %v4777 = vpack.c.b16 %v4700, %v4699
        %v4778 = vpack.c.b16 %v4702, %v4701
        %v4779 = vpack.c.b16 %v4704, %v4703
        %v4780 = vpack.c.b16 %v4706, %v4705
        %v4781 = vpack.c.b16 %v4708, %v4707
        %v4782 = vpack.c.b16 %v4710, %v4709
        %v4783 = vpack.c.b16 %v4712, %v4711
        %v4784 = vpack.c.b16 %v4714, %v4713
        %v4785 = vpack.c.b16 %v4716, %v4715
        %v4786 = vpack.c.b16 %v4718, %v4717
        %v4787 = vpack.c.b16 %v4720, %v4719
        %v4788 = vpack.c.b16 %v4722, %v4721
        %v4789 = vpack.c.b16 %v4724, %v4723
        %v4790 = vpack.c.b16 %v4726, %v4725
        %v4791 = vpack.c.b16 %v4728, %v4727
        %v4792 = vpack.c.b16 %v4730, %v4729
        %v4793 = vpack.c.b16 %v4732, %v4731
        %v4794 = vpack.c.b16 %v4734, %v4733
        %v4795 = vpack.c.b16 %v4736, %v4735
        %v4796 = vpack.c.b16 %v4738, %v4737
        %v4797 = vpack.c.b16 %v4740, %v4739
        %v4798 = vpack.c.b16 %v4742, %v4741
        %v4799 = vpack.c.b16 %v4744, %v4743
        %v4800 = vpack.c.b16 %v4746, %v4745
        %v4801 = vpack.c.b16 %v4748, %v4747
        %v4802 = vpack.c.b16 %v4750, %v4749
        %v4803 = vpack.c.b16 %v4752, %v4751
        %v4804 = vpack.c.b16 %v4754, %v4753
        %v4805 = vpack.c.b16 %v4756, %v4755
        %v4806 = vpack.c.b16 %v4758, %v4757
        %v4807 = vpack.c.b16 %v4760, %v4759
        %v4808 = vpack.c.b16 %v4762, %v4761
        %v4809 = vpack.c.b16 %v4764, %v4763
        %v4810 = vpack.c.b16 %v4766, %v4765
        %v4811 = vpack.c.b16 %v4768, %v4767
        %v4812 = vpack.c.b16 %v4770, %v4769
        %v4813 = vpack.c.b16 %v4772, %v4771
        %v4814 = vpack.c.b16 %v4774, %v4773
        %4855 = vmatprep.subr.bf16.mxu0 0
        %4856 = vmatpush1.bf16.msra.mxu0 %v4775
        %4857 = vmatprep.subr.bf16.mxu0 0
        %4858 = vmatpush1.bf16.msra.mxu0 %v4776
        %4859 = vmatprep.subr.bf16.mxu0 0
        %4860 = vmatpush1.bf16.msra.mxu0 %v4777
        %4861 = vmatprep.subr.bf16.mxu0 0
        %4862 = vmatpush1.bf16.msra.mxu0 %v4778
        %4863 = vmatprep.subr.bf16.mxu0 0
        %4864 = vmatpush1.bf16.msra.mxu0 %v4779
        %4865 = vmatprep.subr.bf16.mxu0 0
        %4866 = vmatpush1.bf16.msra.mxu0 %v4780
        %4867 = vmatprep.subr.bf16.mxu0 0
        %4868 = vmatpush1.bf16.msra.mxu0 %v4781
        %4869 = vmatprep.subr.bf16.mxu0 0
        %4870 = vmatpush1.bf16.msra.mxu0 %v4782
        %4871 = vmatprep.subr.bf16.mxu0 0
        %4872 = vmatpush1.bf16.msra.mxu0 %v4783
        %4873 = vmatprep.subr.bf16.mxu0 0
        %4874 = vmatpush1.bf16.msra.mxu0 %v4784
        %4875 = vmatprep.subr.bf16.mxu0 0
        %4876 = vmatpush1.bf16.msra.mxu0 %v4785
        %4877 = vmatprep.subr.bf16.mxu0 0
        %4878 = vmatpush1.bf16.msra.mxu0 %v4786
        %4879 = vmatprep.subr.bf16.mxu0 0
        %4880 = vmatpush1.bf16.msra.mxu0 %v4787
        %4881 = vmatprep.subr.bf16.mxu0 0
        %4882 = vmatpush1.bf16.msra.mxu0 %v4788
        %4883 = vmatprep.subr.bf16.mxu0 0
        %4884 = vmatpush1.bf16.msra.mxu0 %v4789
        %4885 = vmatprep.subr.bf16.mxu0 0
        %4886 = vmatpush1.bf16.msra.mxu0 %v4790
        %4887 = vmatprep.mubr.bf16.mxu0 %v4555
        %4888 = vmatmul.mubr.bf16.gmra.mrb[0].mxu0 %v4552
        %v4889 = vpop.f32.mrb[0].mxu0
        %v4890 = vadd.f32 0.0, %v4889
        %v4891 = vpop.f32.mrb[0].mxu0
        %v4892 = vpop.f32.mrb[0].mxu0
        %v4893 = vadd.f32 0.0, %v4892
        %v4894 = vpop.f32.mrb[0].mxu0
        %4895 = vmatprep.mubr.bf16.mxu0 %v4568
        %4896 = vmatmul.mubr.bf16.gmra.mrb[0].mxu0 %v4566
        %v4897 = vpop.f32.mrb[0].mxu0
        %v4898 = vadd.f32 0.0, %v4897
        %v4899 = vpop.f32.mrb[0].mxu0
        %v4900 = vpop.f32.mrb[0].mxu0
        %v4901 = vadd.f32 0.0, %v4900
        %v4902 = vpop.f32.mrb[0].mxu0
        %4903 = vmatprep.mubr.bf16.mxu0 %v4578
        %4904 = vmatmul.mubr.bf16.gmra.mrb[0].mxu0 %v4576
        %v4905 = vpop.f32.mrb[0].mxu0
        %v4906 = vadd.f32 0.0, %v4905
        %v4907 = vpop.f32.mrb[0].mxu0
        %v4908 = vpop.f32.mrb[0].mxu0
        %v4909 = vadd.f32 0.0, %v4908
        %v4910 = vpop.f32.mrb[0].mxu0
        %4911 = vmatprep.mubr.bf16.mxu0 %v4588
        %4912 = vmatmul.mubr.bf16.gmra.mrb[0].mxu0 %v4586
        %v4913 = vpop.f32.mrb[0].mxu0
        %v4914 = vadd.f32 0.0, %v4913
        %v4915 = vpop.f32.mrb[0].mxu0
        %v4916 = vpop.f32.mrb[0].mxu0
        %v4917 = vadd.f32 0.0, %v4916
        %v4918 = vpop.f32.mrb[0].mxu0
        %4919 = vdwg.mxu0
        %4920 = vmatprep.subr.bf16.mxu0 0
        %4921 = vmatpush1.bf16.msra.mxu0 %v4791
        %4922 = vmatprep.subr.bf16.mxu0 0
        %4923 = vmatpush1.bf16.msra.mxu0 %v4792
        %4924 = vmatprep.subr.bf16.mxu0 0
        %4925 = vmatpush1.bf16.msra.mxu0 %v4793
        %4926 = vmatprep.subr.bf16.mxu0 0
        %4927 = vmatpush1.bf16.msra.mxu0 %v4794
        %4928 = vmatprep.subr.bf16.mxu0 0
        %4929 = vmatpush1.bf16.msra.mxu0 %v4795
        %4930 = vmatprep.subr.bf16.mxu0 0
        %4931 = vmatpush1.bf16.msra.mxu0 %v4796
        %4932 = vmatprep.subr.bf16.mxu0 0
        %4933 = vmatpush1.bf16.msra.mxu0 %v4797
        %4934 = vmatprep.subr.bf16.mxu0 0
        %4935 = vmatpush1.bf16.msra.mxu0 %v4798
        %4936 = vmatprep.subr.bf16.mxu0 0
        %4937 = vmatpush1.bf16.msra.mxu0 %v4799
        %4938 = vmatprep.subr.bf16.mxu0 0
        %4939 = vmatpush1.bf16.msra.mxu0 %v4800
        %4940 = vmatprep.subr.bf16.mxu0 0
        %4941 = vmatpush1.bf16.msra.mxu0 %v4801
        %4942 = vmatprep.subr.bf16.mxu0 0
        %4943 = vmatpush1.bf16.msra.mxu0 %v4802
        %4944 = vmatprep.subr.bf16.mxu0 0
        %4945 = vmatpush1.bf16.msra.mxu0 %v4803
        %4946 = vmatprep.subr.bf16.mxu0 0
        %4947 = vmatpush1.bf16.msra.mxu0 %v4804
        %4948 = vmatprep.subr.bf16.mxu0 0
        %4949 = vmatpush1.bf16.msra.mxu0 %v4805
        %4950 = vmatprep.subr.bf16.mxu0 0
        %4951 = vmatpush1.bf16.msra.mxu0 %v4806
        %4952 = vmatprep.mubr.bf16.mxu0 %v4561
        %4953 = vmatmul.mubr.bf16.gmra.mrb[0].mxu0 %v4558
        %v4954 = vpop.f32.mrb[0].mxu0
        %v4955 = vadd.f32 %v4890, %v4954
        %v4956 = vpop.f32.mrb[0].mxu0
        %v4957 = vpop.f32.mrb[0].mxu0
        %v4958 = vadd.f32 %v4893, %v4957
        %v4959 = vpop.f32.mrb[0].mxu0
        %4960 = vmatprep.mubr.bf16.mxu0 %v4572
        %4961 = vmatmul.mubr.bf16.gmra.mrb[0].mxu0 %v4570
        %v4962 = vpop.f32.mrb[0].mxu0
        %v4963 = vadd.f32 %v4898, %v4962
        %v4964 = vpop.f32.mrb[0].mxu0
        %v4965 = vpop.f32.mrb[0].mxu0
        %v4966 = vadd.f32 %v4901, %v4965
        %v4967 = vpop.f32.mrb[0].mxu0
        %4968 = vmatprep.mubr.bf16.mxu0 %v4582
        %4969 = vmatmul.mubr.bf16.gmra.mrb[0].mxu0 %v4580
        %v4970 = vpop.f32.mrb[0].mxu0
        %v4971 = vadd.f32 %v4906, %v4970
        %v4972 = vpop.f32.mrb[0].mxu0
        %v4973 = vpop.f32.mrb[0].mxu0
        %v4974 = vadd.f32 %v4909, %v4973
        %v4975 = vpop.f32.mrb[0].mxu0
        %4976 = vmatprep.mubr.bf16.mxu0 %v4592
        %4977 = vmatmul.mubr.bf16.gmra.mrb[0].mxu0 %v4590
        %v4978 = vpop.f32.mrb[0].mxu0
        %v4979 = vadd.f32 %v4914, %v4978
        %v4980 = vpop.f32.mrb[0].mxu0
        %v4981 = vpop.f32.mrb[0].mxu0
        %v4982 = vadd.f32 %v4917, %v4981
        %v4983 = vpop.f32.mrb[0].mxu0
        %4984 = vdwg.mxu0
        %4985 = vmatprep.subr.bf16.mxu0 0
        %4986 = vmatpush1.bf16.msra.mxu0 %v4807
        %4987 = vmatprep.subr.bf16.mxu0 0
        %4988 = vmatpush1.bf16.msra.mxu0 %v4808
        %4989 = vmatprep.subr.bf16.mxu0 0
        %4990 = vmatpush1.bf16.msra.mxu0 %v4809
        %4991 = vmatprep.subr.bf16.mxu0 0
        %4992 = vmatpush1.bf16.msra.mxu0 %v4810
        %4993 = vmatprep.subr.bf16.mxu0 0
        %4994 = vmatpush1.bf16.msra.mxu0 %v4811
        %4995 = vmatprep.subr.bf16.mxu0 0
        %4996 = vmatpush1.bf16.msra.mxu0 %v4812
        %4997 = vmatprep.subr.bf16.mxu0 0
        %4998 = vmatpush1.bf16.msra.mxu0 %v4813
        %4999 = vmatprep.subr.bf16.mxu0 0
        %5000 = vmatpush1.bf16.msra.mxu0 %v4814
        %5001 = vmatprep.subr.bf16.mxu0 0
        %5002 = vmatpush1.bf16.msra.mxu0 0
        %5003 = vmatprep.subr.bf16.mxu0 0
        %5004 = vmatpush1.bf16.msra.mxu0 0
        %5005 = vmatprep.subr.bf16.mxu0 0
        %5006 = vmatpush1.bf16.msra.mxu0 0
        %5007 = vmatprep.subr.bf16.mxu0 0
        %5008 = vmatpush1.bf16.msra.mxu0 0
        %5009 = vmatprep.subr.bf16.mxu0 0
        %5010 = vmatpush1.bf16.msra.mxu0 0
        %5011 = vmatprep.subr.bf16.mxu0 0
        %5012 = vmatpush1.bf16.msra.mxu0 0
        %5013 = vmatprep.subr.bf16.mxu0 0
        %5014 = vmatpush1.bf16.msra.mxu0 0
        %5015 = vmatprep.subr.bf16.mxu0 0
        %5016 = vmatpush1.bf16.msra.mxu0 0
        %5017 = vmatprep.mubr.bf16.mxu0 0
        %5018 = vmatmul.mubr.bf16.gmra.mrb[0].mxu0 %v4564
        %v5019 = vpop.f32.mrb[0].mxu0
        %v5020 = vadd.f32 %v4955, %v5019
        %v5021 = vpop.f32.mrb[0].mxu0
        %v5022 = vpop.f32.mrb[0].mxu0
        %v5023 = vadd.f32 %v4958, %v5022
        %v5024 = vpop.f32.mrb[0].mxu0
        %5025 = vmatprep.mubr.bf16.mxu0 0
        %5026 = vmatmul.mubr.bf16.gmra.mrb[0].mxu0 %v4574
        %v5027 = vpop.f32.mrb[0].mxu0
        %v5028 = vadd.f32 %v4963, %v5027
        %v5029 = vpop.f32.mrb[0].mxu0
        %v5030 = vpop.f32.mrb[0].mxu0
        %v5031 = vadd.f32 %v4966, %v5030
        %v5032 = vpop.f32.mrb[0].mxu0
        %5033 = vmatprep.mubr.bf16.mxu0 0
        %5034 = vmatmul.mubr.bf16.gmra.mrb[0].mxu0 %v4584
        %v5035 = vpop.f32.mrb[0].mxu0
        %v5036 = vadd.f32 %v4971, %v5035
        %v5037 = vpop.f32.mrb[0].mxu0
        %v5038 = vpop.f32.mrb[0].mxu0
        %v5039 = vadd.f32 %v4974, %v5038
        %v5040 = vpop.f32.mrb[0].mxu0
        %5041 = vmatprep.mubr.bf16.mxu0 0
        %5042 = vmatmul.mubr.bf16.gmra.mrb[0].mxu0 %v4594
        %v5043 = vpop.f32.mrb[0].mxu0
        %v5044 = vadd.f32 %v4979, %v5043
        %v5045 = vpop.f32.mrb[0].mxu0
        %v5046 = vpop.f32.mrb[0].mxu0
        %v5047 = vadd.f32 %v4982, %v5046
        %v5048 = vpop.f32.mrb[0].mxu0
        %5049 = vdwg.mxu0
        %v5050 = vadd.f32 %v4411, %v5020
        %v5051 = vadd.f32 %v4412, %v5023
        %v5052 = vadd.f32 %v4413, %v5028
        %v5053 = vadd.f32 %v4414, %v5031
        %v5054 = vadd.f32 %v4415, %v5036
        %v5055 = vadd.f32 %v4416, %v5039
        %v5056 = vadd.f32 %v4417, %v5044
        %v5057 = vadd.f32 %v4418, %v5047
        %v5058 = vld [vmem:[%s5] sm:$0x1]
        %v5059 = vmul.f32 %v5058, %v1478
        %v5061 = vlaneseq
        %v5062 = vshrl.u32 %v5061, 7
        %v5063 = vsub.s32 0, %v5062
        %v5064 = vrot.slane %v5059, %v5063
        %v5066 = vadd.f32 %v5050, %v5064
        %v5067 = vadd.f32 %v5051, %v5064
        %v5068 = vadd.f32 %v5052, %v5064
        %v5069 = vadd.f32 %v5053, %v5064
        %v5070 = vadd.f32 %v5054, %v5064
        %v5071 = vadd.f32 %v5055, %v5064
        %v5072 = vadd.f32 %v5056, %v5064
        %v5073 = vadd.f32 %v5057, %v5064
        %5074 = vst [vmem:[%s300] sm:$0xff] %v5066
        %5075 = vst [vmem:[%s300 + $0x8] sm:$0xff] %v5067
        %5076 = vst [vmem:[%s300 + $0x10] sm:$0xff] %v5068
        %5077 = vst [vmem:[%s300 + $0x18] sm:$0xff] %v5069
        %5078 = vst [vmem:[%s300 + $0x20] sm:$0xff] %v5070
        %5079 = vst [vmem:[%s300 + $0x28] sm:$0xff] %v5071
        %5080 = vst [vmem:[%s300 + $0x30] sm:$0xff] %v5072
        %5081 = vst [vmem:[%s300 + $0x38] sm:$0xff] %v5073
        %s5082 = sand.u32 %s183, 1
        %s5083 = scalar_lea.sflag [#allocation7], %s5082
        %s5084 = sand.u32 %s183, 1
        %s5085 = smul.addr %s5084, 64
        %s5086 = scalar_lea.vmem [#allocation10], %s5085
        // Predicated region
        $region57: #{tpu_custom_call.1} parent=47 // pred_check
          %p5087 = pneg %p193
        $region58: #{tpu_custom_call.1} parent=47 // pred_check_branch
          %5089 = sbr.rel (%p5087) target = $region60
        $region59: #{tpu_custom_call.1} parent=47 // pred_region
          %s5091 = ssub.s32 1024, 1024
          %5092 = vsyncadd %s5083, %s5091
          %s5093 = smul.addr %s23, 8
          %s5094 = smul.addr %s5093, 128
          %s5095 = scalar_lea.hbm %s7, %s5094
          %s5096 = sshll.u32 %s5086, 4
          %s5097 = int_to_ptr.vmem [resolvable:$true] %s5096
          %5102 = dma.vmem_to_hbm [thread:$0]  %s5097, 1024, %s5095, %s5083, 128, 128, 8
        $region60: #{tpu_custom_call.1} parent=47 // pred_fallthru
          _
      $region48: #{tpu_custom_call.1} parent=5 // pred_fallthru
        _
      %p5103 = scmp.le.s32.totalorder 2, %s18
      // Predicated region
      $region61: #{tpu_custom_call.1} parent=5 // pred_check
        %p5104 = pneg %p5103
      $region62: #{tpu_custom_call.1} parent=5 // pred_check_branch
        %5106 = sbr.rel (%p5104) target = $region64
      $region63: #{tpu_custom_call.1} parent=5 // pred_region
        %s5107 = ssub.s32 %s18, 2
        // Predicated region
        $region65: #{tpu_custom_call.1} parent=63 // pred_check
          %p5108 = pneg %p199
        $region66: #{tpu_custom_call.1} parent=63 // pred_check_branch
          %5110 = sbr.rel (%p5108) target = $region68
        $region67: #{tpu_custom_call.1} parent=63 // pred_region
          %s5111 = sand.u32 %s184, 1
          %s5112 = scalar_lea.sflag [#allocation7], %s5111
          %s5113 = sand.u32 %s184, 1
          %s5114 = smul.addr %s5113, 64
          %s5115 = scalar_lea.vmem [#allocation10], %s5114
          %5116 = dma.done %s5112, 1024
        $region68: #{tpu_custom_call.1} parent=63 // pred_fallthru
          _
      $region64: #{tpu_custom_call.1} parent=5 // pred_fallthru
        _
    $region6: #{tpu_custom_call.1} parent=1 // loop_footer
      %s22 = sadd.s32 1, %s18
    $region7: #{tpu_custom_call.1} parent=1 // loop_footer_branch
      %17 = sbr.rel target = $region3
    $region8: #{tpu_custom_call.1} parent=1 // loop_exit
      _
    %5117 = vsyncpa [#allocation6], 1
    %s5118 = scalar_lea.sflag [#allocation6], 1
    %5119 = vsyncpa %s5118, 1
    %5120 = vsyncpa [#allocation7], 1
    %s5121 = scalar_lea.sflag [#allocation7], 1
    %5122 = vsyncpa %s5121, 1
    %5123 = vsyncpa [#allocation8], 1
    %s5124 = scalar_lea.sflag [#allocation8], 1
    %5125 = vsyncpa %s5124, 1

</llo_original>
